<compile_context>
chip_gen: v6e
topology: v6e:2x2x1
jax: 0.10.0
libtpu: 0.0.40
codegen_flags: <defaults>
</compile_context>

<pallas_src>
import functools

import jax
import jax.numpy as jnp
from jax.experimental import pallas as pl
from jax.experimental.pallas import tpu as pltpu


def _erf(x):
    # Abramowitz & Stegun 7.1.26 rational approximation, |error| <= 1.5e-7.
    # Uses only exp / reciprocal / polynomial ops (EUP + VPU), so it lowers on
    # every Pallas TPU backend without relying on a native erf primitive.
    p = 0.3275911
    a1, a2, a3, a4, a5 = (0.254829592, -0.284496736, 1.421413741,
                          -1.453152027, 1.061405429)
    ax = jnp.abs(x)
    t = 1.0 / (1.0 + p * ax)
    poly = ((((a5 * t + a4) * t + a3) * t + a2) * t + a1) * t
    y = 1.0 - poly * jnp.exp(-ax * ax)
    return jnp.where(x < 0, -y, y)


def _gelu_exact(x):
    # Matches nn.GELU() (erf form) to ~1e-7.
    return 0.5 * x * (1.0 + _erf(x * (2.0 ** -0.5)))


def _layer_kernel(x_ref, ln1w_ref, ln1b_ref, wqkv_ref, wproj_ref, bproj_ref,
                  ln2w_ref, ln2b_ref, w1_ref, b1_ref, w2_ref, b2_ref,
                  out_ref, attn_ref, ctx_ref, *, num_heads, head_dim,
                  embed_dim, seq_len, batch_block, eps):
    H, Dh, E, S, bb = num_heads, head_dim, embed_dim, seq_len, batch_block

    # Fused rows: (bb*S, E). All token-wise ops (LN, dense matmuls) run at
    # M = bb*S so the MXU sublanes are well occupied.
    x = x_ref[...].astype(jnp.float32)

    # ---- LayerNorm 1 (f32) ----
    mu = jnp.mean(x, axis=-1, keepdims=True)
    var = jnp.mean(jnp.square(x - mu), axis=-1, keepdims=True)
    xn = (x - mu) * jax.lax.rsqrt(var + eps)
    xn = xn * ln1w_ref[...] + ln1b_ref[...]

    # ---- QKV projection (bf16 MXU operands, f32 accumulate; qkv_bias=False).
    # The 1/sqrt(Dh) attention scale is pre-folded into the Q columns of wqkv
    # by the wrapper, so no per-score-tile scale multiply is needed below.
    qkv = jnp.dot(xn.astype(jnp.bfloat16), wqkv_ref[...],
                  preferred_element_type=jnp.float32)            # (bb*S, 3E)
    # bf16-cast q/k/v once per grid step (not inside the per-head loop).
    q16 = qkv[:, 0 * E:1 * E].astype(jnp.bfloat16)               # pre-scaled
    k16 = qkv[:, 1 * E:2 * E].astype(jnp.bfloat16)
    v16 = qkv[:, 2 * E:3 * E].astype(jnp.bfloat16)

    # ---- attention: per (batch element, head). Attention never crosses batch
    # rows. Probabilities stream per-head straight into the (bb, H, S, S)
    # output block; per-head context streams into the f32 VMEM scratch, so
    # vreg pressure stays flat regardless of H / S.
    nt_dims = (((1,), (1,)), ((), ()))        # contract last axes: Q @ K^T
    for b in range(bb):
        r = slice(b * S, (b + 1) * S)
        q_b, k_b, v_b = q16[r], k16[r], v16[r]                   # (S, E) bf16
        for h in range(H):
            c = slice(h * Dh, (h + 1) * Dh)
            # QK^T without an explicit XLU transpose (MXU trans_b form).
            s = jax.lax.dot_general(q_b[:, c], k_b[:, c], nt_dims,
                                    preferred_element_type=jnp.float32)
            s = s - jnp.max(s, axis=-1, keepdims=True)
            e = jnp.exp(s)
            # Exact reciprocal: stored probability rows sum to 1 (the probs
            # are both returned and used for the PV matmul).
            p = e * pl.reciprocal(jnp.sum(e, axis=-1, keepdims=True))
            p16 = p.astype(jnp.bfloat16)
            attn_ref[b, h] = p16.astype(attn_ref.dtype)
            ctx_ref[r, c] = jnp.dot(p16, v_b[:, c],
                                    preferred_element_type=jnp.float32)

    # ---- output projection + residual ----
    proj = jnp.dot(ctx_ref[...].astype(jnp.bfloat16), wproj_ref[...],
                   preferred_element_type=jnp.float32) + bproj_ref[...]
    x1 = x + proj

    # ---- LayerNorm 2 (f32) ----
    mu2 = jnp.mean(x1, axis=-1, keepdims=True)
    var2 = jnp.mean(jnp.square(x1 - mu2), axis=-1, keepdims=True)
    xn2 = (x1 - mu2) * jax.lax.rsqrt(var2 + eps)
    xn2 = xn2 * ln2w_ref[...] + ln2b_ref[...]

    # ---- FeedForward (fc1 -> exact GELU -> fc2) + residual ----
    h1 = jnp.dot(xn2.astype(jnp.bfloat16), w1_ref[...],
                 preferred_element_type=jnp.float32) + b1_ref[...]
    h1 = _gelu_exact(h1)
    ff = jnp.dot(h1.astype(jnp.bfloat16), w2_ref[...],
                 preferred_element_type=jnp.float32) + b2_ref[...]

    out_ref[...] = (x1 + ff).astype(out_ref.dtype)


def looped_transformer_layer(x, params, *, num_heads, batch_block=None):
    """x: (B, S, E) float32.
    Returns (out (B,S,E) f32, attn_scores (B,H,S,S) bf16)."""
    B, S, E = x.shape
    H = num_heads
    Dh = E // H
    hidden = params["w1"].shape[1]

    # Megacore-aware batch fusion: never collapse the grid below 2 steps (one
    # of v7x's two TensorCores would otherwise sit idle); within that, grow
    # bb toward M = bb*S >= 128 rows.  On single-TC chips (v5e/v6e) a larger
    # batch_block may be passed explicitly to amortize per-step overhead.
    if batch_block is None:
        batch_block = 1
        for cand in range(1, B + 1):
            if B % cand != 0:
                continue
            if B >= 2 and B // cand < 2:
                break                       # keep grid >= 2 for megacore
            batch_block = cand
            if cand * S >= 128:
                break
    bb = batch_block
    assert B % bb == 0, "batch_block must divide the batch"
    grid = (B // bb,)

    kernel = functools.partial(_layer_kernel, num_heads=H, head_dim=Dh,
                               embed_dim=E, seq_len=S, batch_block=bb,
                               eps=1e-5)

    # Fold the attention scale into the Q columns of wqkv (before the bf16
    # cast), then ship all matmul weights to the MXU in bf16 (halves weight
    # DMA; accumulation stays f32 in-kernel).
    scale = Dh ** (-0.5)
    wqkv_f32 = params["wqkv"]
    wqkv_f32 = jnp.concatenate([wqkv_f32[:, :E] * scale, wqkv_f32[:, E:]],
                               axis=1)
    wqkv = wqkv_f32.astype(jnp.bfloat16)
    wproj = params["wproj"].astype(jnp.bfloat16)
    w1 = params["w1"].astype(jnp.bfloat16)
    w2 = params["w2"].astype(jnp.bfloat16)

    x_flat = x.reshape(B * S, E)

    def full(shape):
        return pl.BlockSpec(shape, lambda i: (0,) * len(shape))

    grid_spec = pltpu.PrefetchScalarGridSpec(
        num_scalar_prefetch=0,
        grid=grid,
        in_specs=[
            pl.BlockSpec((bb * S, E), lambda i: (i, 0)),       # x (fused rows)
            full((1, E)), full((1, E)),                        # ln1 weight, bias
            full((E, 3 * E)),                                  # qkv weight (bf16, q pre-scaled)
            full((E, E)), full((1, E)),                        # proj weight, bias
            full((1, E)), full((1, E)),                        # ln2 weight, bias
            full((E, hidden)), full((1, hidden)),              # fc1 weight, bias
            full((hidden, E)), full((1, E)),                   # fc2 weight, bias
        ],
        out_specs=[
            pl.BlockSpec((bb * S, E), lambda i: (i, 0)),         # out (fused rows)
            pl.BlockSpec((bb, H, S, S), lambda i: (i, 0, 0, 0)), # attn (bf16)
        ],
        scratch_shapes=[pltpu.VMEM((bb * S, E), jnp.float32)],   # ctx scratch
    )

    flops = (2 * B * S * E * 3 * E          # qkv
             + 2 * B * H * S * S * Dh * 2   # q@k^T and p@v
             + 2 * B * S * E * E            # proj
             + 2 * B * S * E * hidden * 2)  # fc1 + fc2
    transcendentals = B * H * S * S + B * S * hidden
    bytes_accessed = (2 * B * S * E * 4                         # x in + out (f32)
                      + B * H * S * S * 2                       # attn out (bf16)
                      + (3 * E * E + E * E + 2 * E * hidden) * 2  # bf16 weights
                      + (6 * E + hidden) * 4)                   # ln/bias vectors

    out_flat, attn = pl.pallas_call(
        kernel,
        grid_spec=grid_spec,
        out_shape=(
            jax.ShapeDtypeStruct((B * S, E), x.dtype),
            jax.ShapeDtypeStruct((B, H, S, S), jnp.bfloat16),
        ),
        compiler_params=pltpu.CompilerParams(
            dimension_semantics=("parallel",),
            vmem_limit_bytes=32 * 1024 * 1024),
        cost_estimate=pl.CostEstimate(flops=flops,
                                      transcendentals=transcendentals,
                                      bytes_accessed=bytes_accessed),
    )(x_flat, params["ln1_w"], params["ln1_b"], wqkv, wproj,
      params["bproj"], params["ln2_w"], params["ln2_b"], w1,
      params["b1"], w2, params["b2"])

    # No wrapper-side transpose: the kernel writes (B, H, S, S) directly.
    return out_flat.reshape(B, S, E), attn


def _ref_forward(x, p, *, num_heads):
    """Pure-JAX f32 reference mirroring the PyTorch module (eval mode)."""
    B, S, E = x.shape
    H = num_heads
    Dh = E // H

    def ln(t, w, b):
        mu = t.mean(-1, keepdims=True)
        var = ((t - mu) ** 2).mean(-1, keepdims=True)
        return (t - mu) / jnp.sqrt(var + 1e-5) * w + b

    xn = ln(x, p["ln1_w"][0], p["ln1_b"][0])
    qkv = xn @ p["wqkv"]                                    # (B,S,3E)
    q, k, v = jnp.split(qkv, 3, axis=-1)

    def to_heads(t):
        return t.reshape(B, S, H, Dh).transpose(0, 2, 1, 3)  # (B,H,S,Dh)

    q, k, v = to_heads(q), to_heads(k), to_heads(v)
    attn = jnp.einsum("bhqd,bhkd->bhqk", q, k) * (Dh ** -0.5)
    attn = jax.nn.softmax(attn, axis=-1)
    o = jnp.einsum("bhqk,bhkd->bhqd", attn, v)
    o = o.transpose(0, 2, 1, 3).reshape(B, S, E)
    o = o @ p["wproj"] + p["bproj"][0]
    x1 = x + o
    xn2 = ln(x1, p["ln2_w"][0], p["ln2_b"][0])
    h1 = jax.nn.gelu(xn2 @ p["w1"] + p["b1"][0], approximate=False)
    ff = h1 @ p["w2"] + p["b2"][0]
    return x1 + ff, attn


def make_params(key, embed_dim, num_heads, mlp_ratio=4.0):
    hidden = int(embed_dim * mlp_ratio)
    ks = jax.random.split(key, 8)
    init = lambda k, shp: (0.02 * jax.random.normal(k, shp, jnp.float32))
    return {
        "ln1_w": jnp.ones((1, embed_dim), jnp.float32),
        "ln1_b": jnp.zeros((1, embed_dim), jnp.float32),
        "wqkv": init(ks[0], (embed_dim, 3 * embed_dim)),     # (in, out), no bias
        "wproj": init(ks[1], (embed_dim, embed_dim)),
        "bproj": init(ks[2], (1, embed_dim)),
        "ln2_w": jnp.ones((1, embed_dim), jnp.float32),
        "ln2_b": jnp.zeros((1, embed_dim), jnp.float32),
        "w1": init(ks[3], (embed_dim, hidden)),
        "b1": init(ks[4], (1, hidden)),
        "w2": init(ks[5], (hidden, embed_dim)),
        "b2": init(ks[6], (1, embed_dim)),
    }


if __name__ == "__main__":
    # Small shapes consistent with the module: image_size=8 -> seq = 64 tokens.
    B, image_size, E, H = 2, 8, 32, 4
    S = image_size * image_size

    key = jax.random.PRNGKey(0)
    kx, kp = jax.random.split(key)
    x = jax.random.normal(kx, (B, S, E), jnp.float32)
    params = make_params(kp, E, H)

    out, attn = looped_transformer_layer(x, params, num_heads=H)
    out = jax.block_until_ready(out)
    attn = jax.block_until_ready(attn)

    # f32 reference vs bf16-MXU kernel (bf16 attn slab) -> loosened tolerance.
    ref_out, ref_attn = _ref_forward(x, params, num_heads=H)
    assert out.shape == (B, S, E) and attn.shape == (B, H, S, S)
    assert jnp.allclose(out, ref_out, atol=2e-2, rtol=2e-2), "output mismatch"
    assert jnp.allclose(attn.astype(jnp.float32), ref_attn,
                        atol=2e-2, rtol=2e-2), "attn mismatch"

    print("KERNEL_OK")
</pallas_src>

<mosaic_0001>
module attributes {stable_mosaic.version = 11 : i64} {
  func.func @_layer_kernel(%arg0: i32, %arg1: memref<64x32xf32, #tpu.memory_space<vmem>>, %arg2: memref<1x32xf32, #tpu.memory_space<vmem>>, %arg3: memref<1x32xf32, #tpu.memory_space<vmem>>, %arg4: memref<32x96xbf16, #tpu.memory_space<vmem>>, %arg5: memref<32x32xbf16, #tpu.memory_space<vmem>>, %arg6: memref<1x32xf32, #tpu.memory_space<vmem>>, %arg7: memref<1x32xf32, #tpu.memory_space<vmem>>, %arg8: memref<1x32xf32, #tpu.memory_space<vmem>>, %arg9: memref<32x128xbf16, #tpu.memory_space<vmem>>, %arg10: memref<1x128xf32, #tpu.memory_space<vmem>>, %arg11: memref<128x32xbf16, #tpu.memory_space<vmem>>, %arg12: memref<1x32xf32, #tpu.memory_space<vmem>>, %arg13: memref<64x32xf32, #tpu.memory_space<vmem>>, %arg14: memref<1x4x64x64xbf16, #tpu.memory_space<vmem>>, %arg15: memref<64x32xf32, #tpu.memory_space<vmem>>) attributes {dimension_semantics = [#tpu.dimension_semantics<parallel>], iteration_bounds = array<i64: 2>, scalar_prefetch = 0 : i64, scratch_operands = 1 : i64, tpu.core_type = #tpu.core_type<tc>, window_params = [{transform_indices = @transform_0, window_bounds = array<i64: 64, 32>}, {pipeline_mode = #tpu.pipeline_mode<synchronous>, transform_indices = @transform_1, window_bounds = array<i64: 1, 32>}, {pipeline_mode = #tpu.pipeline_mode<synchronous>, transform_indices = @transform_2, window_bounds = array<i64: 1, 32>}, {pipeline_mode = #tpu.pipeline_mode<synchronous>, transform_indices = @transform_3, window_bounds = array<i64: 32, 96>}, {pipeline_mode = #tpu.pipeline_mode<synchronous>, transform_indices = @transform_4, window_bounds = array<i64: 32, 32>}, {pipeline_mode = #tpu.pipeline_mode<synchronous>, transform_indices = @transform_5, window_bounds = array<i64: 1, 32>}, {pipeline_mode = #tpu.pipeline_mode<synchronous>, transform_indices = @transform_6, window_bounds = array<i64: 1, 32>}, {pipeline_mode = #tpu.pipeline_mode<synchronous>, transform_indices = @transform_7, window_bounds = array<i64: 1, 32>}, {pipeline_mode = #tpu.pipeline_mode<synchronous>, transform_indices = @transform_8, window_bounds = array<i64: 32, 128>}, {pipeline_mode = #tpu.pipeline_mode<synchronous>, transform_indices = @transform_9, window_bounds = array<i64: 1, 128>}, {pipeline_mode = #tpu.pipeline_mode<synchronous>, transform_indices = @transform_10, window_bounds = array<i64: 128, 32>}, {pipeline_mode = #tpu.pipeline_mode<synchronous>, transform_indices = @transform_11, window_bounds = array<i64: 1, 32>}, {transform_indices = @transform_12, window_bounds = array<i64: 64, 32>}, {transform_indices = @transform_13, window_bounds = array<i64: 1, 4, 64, 64>}]} {
    %c0 = arith.constant 0 : index
    %c0_0 = arith.constant 0 : index
    %0 = vector.load %arg1[%c0, %c0_0] : memref<64x32xf32, #tpu.memory_space<vmem>>, vector<64x32xf32>
    %cst = arith.constant dense<0.000000e+00> : vector<64xf32>
    %1 = vector.multi_reduction <add>, %0, %cst [1] : vector<64x32xf32> to vector<64xf32>
    %2 = vector.shape_cast %1 : vector<64xf32> to vector<64x1xf32>
    %cst_1 = arith.constant 3.200000e+01 : f32
    %3 = vector.broadcast %cst_1 : f32 to vector<64x1xf32>
    %4 = arith.divf %2, %3 : vector<64x1xf32>
    %5 = vector.broadcast %4 : vector<64x1xf32> to vector<64x32xf32>
    %6 = arith.subf %0, %5 : vector<64x32xf32>
    %7 = arith.mulf %6, %6 : vector<64x32xf32>
    %cst_2 = arith.constant dense<0.000000e+00> : vector<64xf32>
    %8 = vector.multi_reduction <add>, %7, %cst_2 [1] : vector<64x32xf32> to vector<64xf32>
    %9 = vector.shape_cast %8 : vector<64xf32> to vector<64x1xf32>
    %cst_3 = arith.constant 3.200000e+01 : f32
    %10 = vector.broadcast %cst_3 : f32 to vector<64x1xf32>
    %11 = arith.divf %9, %10 : vector<64x1xf32>
    %12 = vector.broadcast %4 : vector<64x1xf32> to vector<64x32xf32>
    %13 = arith.subf %0, %12 : vector<64x32xf32>
    %cst_4 = arith.constant 9.99999974E-6 : f32
    %14 = vector.broadcast %cst_4 : f32 to vector<64x1xf32>
    %15 = arith.addf %11, %14 : vector<64x1xf32>
    %16 = math.rsqrt %15 : vector<64x1xf32>
    %17 = vector.broadcast %16 : vector<64x1xf32> to vector<64x32xf32>
    %18 = arith.mulf %13, %17 : vector<64x32xf32>
    %c0_5 = arith.constant 0 : index
    %c0_6 = arith.constant 0 : index
    %19 = vector.load %arg2[%c0_5, %c0_6] : memref<1x32xf32, #tpu.memory_space<vmem>>, vector<1x32xf32>
    %20 = vector.broadcast %19 : vector<1x32xf32> to vector<64x32xf32>
    %21 = arith.mulf %18, %20 : vector<64x32xf32>
    %c0_7 = arith.constant 0 : index
    %c0_8 = arith.constant 0 : index
    %22 = vector.load %arg3[%c0_7, %c0_8] : memref<1x32xf32, #tpu.memory_space<vmem>>, vector<1x32xf32>
    %23 = vector.broadcast %22 : vector<1x32xf32> to vector<64x32xf32>
    %24 = arith.addf %21, %23 : vector<64x32xf32>
    %25 = arith.truncf %24 : vector<64x32xf32> to vector<64x32xbf16>
    %c0_9 = arith.constant 0 : index
    %c0_10 = arith.constant 0 : index
    %26 = vector.load %arg4[%c0_9, %c0_10] : memref<32x96xbf16, #tpu.memory_space<vmem>>, vector<32x96xbf16>
    %cst_11 = arith.constant dense<0.000000e+00> : vector<64x96xf32>
    %27 = tpu.matmul %25, %26, %cst_11 {dimension_numbers = #tpu.dot_dimension_numbers<[1], [0], [0], [1], [0, 0, 1, 1], [], []>} : vector<64x32xbf16>, vector<32x96xbf16>, vector<64x96xf32> -> vector<64x96xf32>
    %28 = vector.extract_strided_slice %27 {offsets = [0, 0], sizes = [64, 32], strides = [1, 1]} : vector<64x96xf32> to vector<64x32xf32>
    %29 = arith.truncf %28 : vector<64x32xf32> to vector<64x32xbf16>
    %30 = vector.extract_strided_slice %27 {offsets = [0, 32], sizes = [64, 32], strides = [1, 1]} : vector<64x96xf32> to vector<64x32xf32>
    %31 = arith.truncf %30 : vector<64x32xf32> to vector<64x32xbf16>
    %32 = vector.extract_strided_slice %27 {offsets = [0, 64], sizes = [64, 32], strides = [1, 1]} : vector<64x96xf32> to vector<64x32xf32>
    %33 = arith.truncf %32 : vector<64x32xf32> to vector<64x32xbf16>
    %34 = vector.extract_strided_slice %29 {offsets = [0, 0], sizes = [64, 8], strides = [1, 1]} : vector<64x32xbf16> to vector<64x8xbf16>
    %35 = vector.extract_strided_slice %31 {offsets = [0, 0], sizes = [64, 8], strides = [1, 1]} : vector<64x32xbf16> to vector<64x8xbf16>
    %cst_12 = arith.constant dense<0.000000e+00> : vector<64x64xf32>
    %36 = tpu.matmul %34, %35, %cst_12 {dimension_numbers = #tpu.dot_dimension_numbers<[1], [1], [0], [0], [0, 0, 1, 0], [], []>} : vector<64x8xbf16>, vector<64x8xbf16>, vector<64x64xf32> -> vector<64x64xf32>
    %cst_13 = arith.constant dense<0xFF800000> : vector<64xf32>
    %37 = vector.multi_reduction <maximumf>, %36, %cst_13 [1] : vector<64x64xf32> to vector<64xf32>
    %38 = vector.shape_cast %37 : vector<64xf32> to vector<64x1xf32>
    %39 = vector.broadcast %38 : vector<64x1xf32> to vector<64x64xf32>
    %40 = arith.subf %36, %39 : vector<64x64xf32>
    %41 = math.exp %40 : vector<64x64xf32>
    %cst_14 = arith.constant dense<0.000000e+00> : vector<64xf32>
    %42 = vector.multi_reduction <add>, %41, %cst_14 [1] : vector<64x64xf32> to vector<64xf32>
    %43 = vector.shape_cast %42 : vector<64xf32> to vector<64x1xf32>
    %44 = tpu.reciprocal %43 : vector<64x1xf32> -> vector<64x1xf32>
    %45 = vector.broadcast %44 : vector<64x1xf32> to vector<64x64xf32>
    %46 = arith.mulf %41, %45 : vector<64x64xf32>
    %47 = arith.truncf %46 : vector<64x64xf32> to vector<64x64xbf16>
    %c0_15 = arith.constant 0 : index
    %c0_16 = arith.constant 0 : index
    %c0_17 = arith.constant 0 : index
    %c0_18 = arith.constant 0 : index
    %48 = vector.load %arg14[%c0_15, %c0_16, %c0_17, %c0_18] : memref<1x4x64x64xbf16, #tpu.memory_space<vmem>>, vector<1x1x64x64xbf16>
    %49 = vector.shape_cast %48 : vector<1x1x64x64xbf16> to vector<64x64xbf16>
    %50 = vector.shape_cast %47 : vector<64x64xbf16> to vector<1x1x64x64xbf16>
    tpu.vector_store %arg14[%c0_15, %c0_16, %c0_17, %c0_18], %50 {strides = array<i32>} : memref<1x4x64x64xbf16, #tpu.memory_space<vmem>>, vector<1x1x64x64xbf16>,
    %51 = vector.extract_strided_slice %33 {offsets = [0, 0], sizes = [64, 8], strides = [1, 1]} : vector<64x32xbf16> to vector<64x8xbf16>
    %cst_19 = arith.constant dense<0.000000e+00> : vector<64x8xf32>
    %52 = tpu.matmul %47, %51, %cst_19 {dimension_numbers = #tpu.dot_dimension_numbers<[1], [0], [0], [1], [0, 0, 1, 1], [], []>} : vector<64x64xbf16>, vector<64x8xbf16>, vector<64x8xf32> -> vector<64x8xf32>
    %c0_20 = arith.constant 0 : index
    %c0_21 = arith.constant 0 : index
    %53 = vector.load %arg15[%c0_20, %c0_21] : memref<64x32xf32, #tpu.memory_space<vmem>>, vector<64x8xf32>
    tpu.vector_store %arg15[%c0_20, %c0_21], %52 {strides = array<i32>} : memref<64x32xf32, #tpu.memory_space<vmem>>, vector<64x8xf32>,
    %54 = vector.extract_strided_slice %29 {offsets = [0, 8], sizes = [64, 8], strides = [1, 1]} : vector<64x32xbf16> to vector<64x8xbf16>
    %55 = vector.extract_strided_slice %31 {offsets = [0, 8], sizes = [64, 8], strides = [1, 1]} : vector<64x32xbf16> to vector<64x8xbf16>
    %cst_22 = arith.constant dense<0.000000e+00> : vector<64x64xf32>
    %56 = tpu.matmul %54, %55, %cst_22 {dimension_numbers = #tpu.dot_dimension_numbers<[1], [1], [0], [0], [0, 0, 1, 0], [], []>} : vector<64x8xbf16>, vector<64x8xbf16>, vector<64x64xf32> -> vector<64x64xf32>
    %cst_23 = arith.constant dense<0xFF800000> : vector<64xf32>
    %57 = vector.multi_reduction <maximumf>, %56, %cst_23 [1] : vector<64x64xf32> to vector<64xf32>
    %58 = vector.shape_cast %57 : vector<64xf32> to vector<64x1xf32>
    %59 = vector.broadcast %58 : vector<64x1xf32> to vector<64x64xf32>
    %60 = arith.subf %56, %59 : vector<64x64xf32>
    %61 = math.exp %60 : vector<64x64xf32>
    %cst_24 = arith.constant dense<0.000000e+00> : vector<64xf32>
    %62 = vector.multi_reduction <add>, %61, %cst_24 [1] : vector<64x64xf32> to vector<64xf32>
    %63 = vector.shape_cast %62 : vector<64xf32> to vector<64x1xf32>
    %64 = tpu.reciprocal %63 : vector<64x1xf32> -> vector<64x1xf32>
    %65 = vector.broadcast %64 : vector<64x1xf32> to vector<64x64xf32>
    %66 = arith.mulf %61, %65 : vector<64x64xf32>
    %67 = arith.truncf %66 : vector<64x64xf32> to vector<64x64xbf16>
    %c0_25 = arith.constant 0 : index
    %c1 = arith.constant 1 : index
    %c0_26 = arith.constant 0 : index
    %c0_27 = arith.constant 0 : index
    %68 = vector.load %arg14[%c0_25, %c1, %c0_26, %c0_27] : memref<1x4x64x64xbf16, #tpu.memory_space<vmem>>, vector<1x1x64x64xbf16>
    %69 = vector.shape_cast %68 : vector<1x1x64x64xbf16> to vector<64x64xbf16>
    %70 = vector.shape_cast %67 : vector<64x64xbf16> to vector<1x1x64x64xbf16>
    tpu.vector_store %arg14[%c0_25, %c1, %c0_26, %c0_27], %70 {strides = array<i32>} : memref<1x4x64x64xbf16, #tpu.memory_space<vmem>>, vector<1x1x64x64xbf16>,
    %71 = vector.extract_strided_slice %33 {offsets = [0, 8], sizes = [64, 8], strides = [1, 1]} : vector<64x32xbf16> to vector<64x8xbf16>
    %cst_28 = arith.constant dense<0.000000e+00> : vector<64x8xf32>
    %72 = tpu.matmul %67, %71, %cst_28 {dimension_numbers = #tpu.dot_dimension_numbers<[1], [0], [0], [1], [0, 0, 1, 1], [], []>} : vector<64x64xbf16>, vector<64x8xbf16>, vector<64x8xf32> -> vector<64x8xf32>
    %c0_29 = arith.constant 0 : index
    %c8 = arith.constant 8 : index
    %73 = vector.load %arg15[%c0_29, %c8] : memref<64x32xf32, #tpu.memory_space<vmem>>, vector<64x8xf32>
    tpu.vector_store %arg15[%c0_29, %c8], %72 {strides = array<i32>} : memref<64x32xf32, #tpu.memory_space<vmem>>, vector<64x8xf32>,
    %74 = vector.extract_strided_slice %29 {offsets = [0, 16], sizes = [64, 8], strides = [1, 1]} : vector<64x32xbf16> to vector<64x8xbf16>
    %75 = vector.extract_strided_slice %31 {offsets = [0, 16], sizes = [64, 8], strides = [1, 1]} : vector<64x32xbf16> to vector<64x8xbf16>
    %cst_30 = arith.constant dense<0.000000e+00> : vector<64x64xf32>
    %76 = tpu.matmul %74, %75, %cst_30 {dimension_numbers = #tpu.dot_dimension_numbers<[1], [1], [0], [0], [0, 0, 1, 0], [], []>} : vector<64x8xbf16>, vector<64x8xbf16>, vector<64x64xf32> -> vector<64x64xf32>
    %cst_31 = arith.constant dense<0xFF800000> : vector<64xf32>
    %77 = vector.multi_reduction <maximumf>, %76, %cst_31 [1] : vector<64x64xf32> to vector<64xf32>
    %78 = vector.shape_cast %77 : vector<64xf32> to vector<64x1xf32>
    %79 = vector.broadcast %78 : vector<64x1xf32> to vector<64x64xf32>
    %80 = arith.subf %76, %79 : vector<64x64xf32>
    %81 = math.exp %80 : vector<64x64xf32>
    %cst_32 = arith.constant dense<0.000000e+00> : vector<64xf32>
    %82 = vector.multi_reduction <add>, %81, %cst_32 [1] : vector<64x64xf32> to vector<64xf32>
    %83 = vector.shape_cast %82 : vector<64xf32> to vector<64x1xf32>
    %84 = tpu.reciprocal %83 : vector<64x1xf32> -> vector<64x1xf32>
    %85 = vector.broadcast %84 : vector<64x1xf32> to vector<64x64xf32>
    %86 = arith.mulf %81, %85 : vector<64x64xf32>
    %87 = arith.truncf %86 : vector<64x64xf32> to vector<64x64xbf16>
    %c0_33 = arith.constant 0 : index
    %c2 = arith.constant 2 : index
    %c0_34 = arith.constant 0 : index
    %c0_35 = arith.constant 0 : index
    %88 = vector.load %arg14[%c0_33, %c2, %c0_34, %c0_35] : memref<1x4x64x64xbf16, #tpu.memory_space<vmem>>, vector<1x1x64x64xbf16>
    %89 = vector.shape_cast %88 : vector<1x1x64x64xbf16> to vector<64x64xbf16>
    %90 = vector.shape_cast %87 : vector<64x64xbf16> to vector<1x1x64x64xbf16>
    tpu.vector_store %arg14[%c0_33, %c2, %c0_34, %c0_35], %90 {strides = array<i32>} : memref<1x4x64x64xbf16, #tpu.memory_space<vmem>>, vector<1x1x64x64xbf16>,
    %91 = vector.extract_strided_slice %33 {offsets = [0, 16], sizes = [64, 8], strides = [1, 1]} : vector<64x32xbf16> to vector<64x8xbf16>
    %cst_36 = arith.constant dense<0.000000e+00> : vector<64x8xf32>
    %92 = tpu.matmul %87, %91, %cst_36 {dimension_numbers = #tpu.dot_dimension_numbers<[1], [0], [0], [1], [0, 0, 1, 1], [], []>} : vector<64x64xbf16>, vector<64x8xbf16>, vector<64x8xf32> -> vector<64x8xf32>
    %c0_37 = arith.constant 0 : index
    %c16 = arith.constant 16 : index
    %93 = vector.load %arg15[%c0_37, %c16] : memref<64x32xf32, #tpu.memory_space<vmem>>, vector<64x8xf32>
    tpu.vector_store %arg15[%c0_37, %c16], %92 {strides = array<i32>} : memref<64x32xf32, #tpu.memory_space<vmem>>, vector<64x8xf32>,
    %94 = vector.extract_strided_slice %29 {offsets = [0, 24], sizes = [64, 8], strides = [1, 1]} : vector<64x32xbf16> to vector<64x8xbf16>
    %95 = vector.extract_strided_slice %31 {offsets = [0, 24], sizes = [64, 8], strides = [1, 1]} : vector<64x32xbf16> to vector<64x8xbf16>
    %cst_38 = arith.constant dense<0.000000e+00> : vector<64x64xf32>
    %96 = tpu.matmul %94, %95, %cst_38 {dimension_numbers = #tpu.dot_dimension_numbers<[1], [1], [0], [0], [0, 0, 1, 0], [], []>} : vector<64x8xbf16>, vector<64x8xbf16>, vector<64x64xf32> -> vector<64x64xf32>
    %cst_39 = arith.constant dense<0xFF800000> : vector<64xf32>
    %97 = vector.multi_reduction <maximumf>, %96, %cst_39 [1] : vector<64x64xf32> to vector<64xf32>
    %98 = vector.shape_cast %97 : vector<64xf32> to vector<64x1xf32>
    %99 = vector.broadcast %98 : vector<64x1xf32> to vector<64x64xf32>
    %100 = arith.subf %96, %99 : vector<64x64xf32>
    %101 = math.exp %100 : vector<64x64xf32>
    %cst_40 = arith.constant dense<0.000000e+00> : vector<64xf32>
    %102 = vector.multi_reduction <add>, %101, %cst_40 [1] : vector<64x64xf32> to vector<64xf32>
    %103 = vector.shape_cast %102 : vector<64xf32> to vector<64x1xf32>
    %104 = tpu.reciprocal %103 : vector<64x1xf32> -> vector<64x1xf32>
    %105 = vector.broadcast %104 : vector<64x1xf32> to vector<64x64xf32>
    %106 = arith.mulf %101, %105 : vector<64x64xf32>
    %107 = arith.truncf %106 : vector<64x64xf32> to vector<64x64xbf16>
    %c0_41 = arith.constant 0 : index
    %c3 = arith.constant 3 : index
    %c0_42 = arith.constant 0 : index
    %c0_43 = arith.constant 0 : index
    %108 = vector.load %arg14[%c0_41, %c3, %c0_42, %c0_43] : memref<1x4x64x64xbf16, #tpu.memory_space<vmem>>, vector<1x1x64x64xbf16>
    %109 = vector.shape_cast %108 : vector<1x1x64x64xbf16> to vector<64x64xbf16>
    %110 = vector.shape_cast %107 : vector<64x64xbf16> to vector<1x1x64x64xbf16>
    tpu.vector_store %arg14[%c0_41, %c3, %c0_42, %c0_43], %110 {strides = array<i32>} : memref<1x4x64x64xbf16, #tpu.memory_space<vmem>>, vector<1x1x64x64xbf16>,
    %111 = vector.extract_strided_slice %33 {offsets = [0, 24], sizes = [64, 8], strides = [1, 1]} : vector<64x32xbf16> to vector<64x8xbf16>
    %cst_44 = arith.constant dense<0.000000e+00> : vector<64x8xf32>
    %112 = tpu.matmul %107, %111, %cst_44 {dimension_numbers = #tpu.dot_dimension_numbers<[1], [0], [0], [1], [0, 0, 1, 1], [], []>} : vector<64x64xbf16>, vector<64x8xbf16>, vector<64x8xf32> -> vector<64x8xf32>
    %c0_45 = arith.constant 0 : index
    %c24 = arith.constant 24 : index
    %113 = vector.load %arg15[%c0_45, %c24] : memref<64x32xf32, #tpu.memory_space<vmem>>, vector<64x8xf32>
    tpu.vector_store %arg15[%c0_45, %c24], %112 {strides = array<i32>} : memref<64x32xf32, #tpu.memory_space<vmem>>, vector<64x8xf32>,
    %c0_46 = arith.constant 0 : index
    %c0_47 = arith.constant 0 : index
    %114 = vector.load %arg15[%c0_46, %c0_47] : memref<64x32xf32, #tpu.memory_space<vmem>>, vector<64x32xf32>
    %115 = arith.truncf %114 : vector<64x32xf32> to vector<64x32xbf16>
    %c0_48 = arith.constant 0 : index
    %c0_49 = arith.constant 0 : index
    %116 = vector.load %arg5[%c0_48, %c0_49] : memref<32x32xbf16, #tpu.memory_space<vmem>>, vector<32x32xbf16>
    %cst_50 = arith.constant dense<0.000000e+00> : vector<64x32xf32>
    %117 = tpu.matmul %115, %116, %cst_50 {dimension_numbers = #tpu.dot_dimension_numbers<[1], [0], [0], [1], [0, 0, 1, 1], [], []>} : vector<64x32xbf16>, vector<32x32xbf16>, vector<64x32xf32> -> vector<64x32xf32>
    %c0_51 = arith.constant 0 : index
    %c0_52 = arith.constant 0 : index
    %118 = vector.load %arg6[%c0_51, %c0_52] : memref<1x32xf32, #tpu.memory_space<vmem>>, vector<1x32xf32>
    %119 = vector.broadcast %118 : vector<1x32xf32> to vector<64x32xf32>
    %120 = arith.addf %117, %119 : vector<64x32xf32>
    %121 = arith.addf %0, %120 : vector<64x32xf32>
    %cst_53 = arith.constant dense<0.000000e+00> : vector<64xf32>
    %122 = vector.multi_reduction <add>, %121, %cst_53 [1] : vector<64x32xf32> to vector<64xf32>
    %123 = vector.shape_cast %122 : vector<64xf32> to vector<64x1xf32>
    %cst_54 = arith.constant 3.200000e+01 : f32
    %124 = vector.broadcast %cst_54 : f32 to vector<64x1xf32>
    %125 = arith.divf %123, %124 : vector<64x1xf32>
    %126 = vector.broadcast %125 : vector<64x1xf32> to vector<64x32xf32>
    %127 = arith.subf %121, %126 : vector<64x32xf32>
    %128 = arith.mulf %127, %127 : vector<64x32xf32>
    %cst_55 = arith.constant dense<0.000000e+00> : vector<64xf32>
    %129 = vector.multi_reduction <add>, %128, %cst_55 [1] : vector<64x32xf32> to vector<64xf32>
    %130 = vector.shape_cast %129 : vector<64xf32> to vector<64x1xf32>
    %cst_56 = arith.constant 3.200000e+01 : f32
    %131 = vector.broadcast %cst_56 : f32 to vector<64x1xf32>
    %132 = arith.divf %130, %131 : vector<64x1xf32>
    %133 = vector.broadcast %125 : vector<64x1xf32> to vector<64x32xf32>
    %134 = arith.subf %121, %133 : vector<64x32xf32>
    %cst_57 = arith.constant 9.99999974E-6 : f32
    %135 = vector.broadcast %cst_57 : f32 to vector<64x1xf32>
    %136 = arith.addf %132, %135 : vector<64x1xf32>
    %137 = math.rsqrt %136 : vector<64x1xf32>
    %138 = vector.broadcast %137 : vector<64x1xf32> to vector<64x32xf32>
    %139 = arith.mulf %134, %138 : vector<64x32xf32>
    %c0_58 = arith.constant 0 : index
    %c0_59 = arith.constant 0 : index
    %140 = vector.load %arg7[%c0_58, %c0_59] : memref<1x32xf32, #tpu.memory_space<vmem>>, vector<1x32xf32>
    %141 = vector.broadcast %140 : vector<1x32xf32> to vector<64x32xf32>
    %142 = arith.mulf %139, %141 : vector<64x32xf32>
    %c0_60 = arith.constant 0 : index
    %c0_61 = arith.constant 0 : index
    %143 = vector.load %arg8[%c0_60, %c0_61] : memref<1x32xf32, #tpu.memory_space<vmem>>, vector<1x32xf32>
    %144 = vector.broadcast %143 : vector<1x32xf32> to vector<64x32xf32>
    %145 = arith.addf %142, %144 : vector<64x32xf32>
    %146 = arith.truncf %145 : vector<64x32xf32> to vector<64x32xbf16>
    %c0_62 = arith.constant 0 : index
    %c0_63 = arith.constant 0 : index
    %147 = vector.load %arg9[%c0_62, %c0_63] : memref<32x128xbf16, #tpu.memory_space<vmem>>, vector<32x128xbf16>
    %cst_64 = arith.constant dense<0.000000e+00> : vector<64x128xf32>
    %148 = tpu.matmul %146, %147, %cst_64 {dimension_numbers = #tpu.dot_dimension_numbers<[1], [0], [0], [1], [0, 0, 1, 1], [], []>} : vector<64x32xbf16>, vector<32x128xbf16>, vector<64x128xf32> -> vector<64x128xf32>
    %c0_65 = arith.constant 0 : index
    %c0_66 = arith.constant 0 : index
    %149 = vector.load %arg10[%c0_65, %c0_66] : memref<1x128xf32, #tpu.memory_space<vmem>>, vector<1x128xf32>
    %150 = vector.broadcast %149 : vector<1x128xf32> to vector<64x128xf32>
    %151 = arith.addf %148, %150 : vector<64x128xf32>
    %cst_67 = arith.constant 5.000000e-01 : f32
    %152 = vector.broadcast %cst_67 : f32 to vector<64x128xf32>
    %153 = arith.mulf %152, %151 : vector<64x128xf32>
    %cst_68 = arith.constant 0.707106769 : f32
    %154 = vector.broadcast %cst_68 : f32 to vector<64x128xf32>
    %155 = arith.mulf %151, %154 : vector<64x128xf32>
    %156 = math.absf %155 : vector<64x128xf32>
    %cst_69 = arith.constant 0.327591091 : f32
    %157 = vector.broadcast %cst_69 : f32 to vector<64x128xf32>
    %158 = arith.mulf %157, %156 : vector<64x128xf32>
    %cst_70 = arith.constant 1.000000e+00 : f32
    %159 = vector.broadcast %cst_70 : f32 to vector<64x128xf32>
    %160 = arith.addf %159, %158 : vector<64x128xf32>
    %cst_71 = arith.constant 1.000000e+00 : f32
    %161 = vector.broadcast %cst_71 : f32 to vector<64x128xf32>
    %162 = arith.divf %161, %160 : vector<64x128xf32>
    %cst_72 = arith.constant 1.06140542 : f32
    %163 = vector.broadcast %cst_72 : f32 to vector<64x128xf32>
    %164 = arith.mulf %163, %162 : vector<64x128xf32>
    %cst_73 = arith.constant -1.45315206 : f32
    %165 = vector.broadcast %cst_73 : f32 to vector<64x128xf32>
    %166 = arith.addf %164, %165 : vector<64x128xf32>
    %167 = arith.mulf %166, %162 : vector<64x128xf32>
    %cst_74 = arith.constant 1.42141378 : f32
    %168 = vector.broadcast %cst_74 : f32 to vector<64x128xf32>
    %169 = arith.addf %167, %168 : vector<64x128xf32>
    %170 = arith.mulf %169, %162 : vector<64x128xf32>
    %cst_75 = arith.constant -0.284496725 : f32
    %171 = vector.broadcast %cst_75 : f32 to vector<64x128xf32>
    %172 = arith.addf %170, %171 : vector<64x128xf32>
    %173 = arith.mulf %172, %162 : vector<64x128xf32>
    %cst_76 = arith.constant 0.254829586 : f32
    %174 = vector.broadcast %cst_76 : f32 to vector<64x128xf32>
    %175 = arith.addf %173, %174 : vector<64x128xf32>
    %176 = arith.mulf %175, %162 : vector<64x128xf32>
    %cst_77 = arith.constant 0.000000e+00 : f32
    %177 = vector.broadcast %cst_77 : f32 to vector<64x128xf32>
    %178 = arith.subf %177, %156 : vector<64x128xf32>
    %179 = arith.mulf %178, %156 : vector<64x128xf32>
    %180 = math.exp %179 : vector<64x128xf32>
    %181 = arith.mulf %176, %180 : vector<64x128xf32>
    %cst_78 = arith.constant 1.000000e+00 : f32
    %182 = vector.broadcast %cst_78 : f32 to vector<64x128xf32>
    %183 = arith.subf %182, %181 : vector<64x128xf32>
    %cst_79 = arith.constant 0.000000e+00 : f32
    %184 = vector.broadcast %cst_79 : f32 to vector<64x128xf32>
    %185 = arith.cmpf olt, %155, %184 : vector<64x128xf32>
    %cst_80 = arith.constant 0.000000e+00 : f32
    %186 = vector.broadcast %cst_80 : f32 to vector<64x128xf32>
    %187 = arith.subf %186, %183 : vector<64x128xf32>
    %188 = arith.select %185, %187, %183 : vector<64x128xi1>, vector<64x128xf32>
    %cst_81 = arith.constant 1.000000e+00 : f32
    %189 = vector.broadcast %cst_81 : f32 to vector<64x128xf32>
    %190 = arith.addf %189, %188 : vector<64x128xf32>
    %191 = arith.mulf %153, %190 : vector<64x128xf32>
    %192 = arith.truncf %191 : vector<64x128xf32> to vector<64x128xbf16>
    %c0_82 = arith.constant 0 : index
    %c0_83 = arith.constant 0 : index
    %193 = vector.load %arg11[%c0_82, %c0_83] : memref<128x32xbf16, #tpu.memory_space<vmem>>, vector<128x32xbf16>
    %cst_84 = arith.constant dense<0.000000e+00> : vector<64x32xf32>
    %194 = tpu.matmul %192, %193, %cst_84 {dimension_numbers = #tpu.dot_dimension_numbers<[1], [0], [0], [1], [0, 0, 1, 1], [], []>} : vector<64x128xbf16>, vector<128x32xbf16>, vector<64x32xf32> -> vector<64x32xf32>
    %c0_85 = arith.constant 0 : index
    %c0_86 = arith.constant 0 : index
    %195 = vector.load %arg12[%c0_85, %c0_86] : memref<1x32xf32, #tpu.memory_space<vmem>>, vector<1x32xf32>
    %196 = vector.broadcast %195 : vector<1x32xf32> to vector<64x32xf32>
    %197 = arith.addf %194, %196 : vector<64x32xf32>
    %198 = arith.addf %121, %197 : vector<64x32xf32>
    %c0_87 = arith.constant 0 : index
    %c0_88 = arith.constant 0 : index
    %199 = vector.load %arg13[%c0_87, %c0_88] : memref<64x32xf32, #tpu.memory_space<vmem>>, vector<64x32xf32>
    tpu.vector_store %arg13[%c0_87, %c0_88], %198 {strides = array<i32>} : memref<64x32xf32, #tpu.memory_space<vmem>>, vector<64x32xf32>,
    return
  }
  func.func @transform_0(%arg0: i32) -> (i32, i32) {
    %c0_i32 = arith.constant 0 : i32
    %c0_i32_0 = arith.constant 0 : i32
    return %arg0, %c0_i32 : i32, i32
  }
  func.func @transform_1(%arg0: i32) -> (i32, i32) {
    %c0_i32 = arith.constant 0 : i32
    %c0_i32_0 = arith.constant 0 : i32
    %c0_i32_1 = arith.constant 0 : i32
    return %c0_i32, %c0_i32_0 : i32, i32
  }
  func.func @transform_2(%arg0: i32) -> (i32, i32) {
    %c0_i32 = arith.constant 0 : i32
    %c0_i32_0 = arith.constant 0 : i32
    %c0_i32_1 = arith.constant 0 : i32
    return %c0_i32, %c0_i32_0 : i32, i32
  }
  func.func @transform_3(%arg0: i32) -> (i32, i32) {
    %c0_i32 = arith.constant 0 : i32
    %c0_i32_0 = arith.constant 0 : i32
    %c0_i32_1 = arith.constant 0 : i32
    return %c0_i32, %c0_i32_0 : i32, i32
  }
  func.func @transform_4(%arg0: i32) -> (i32, i32) {
    %c0_i32 = arith.constant 0 : i32
    %c0_i32_0 = arith.constant 0 : i32
    %c0_i32_1 = arith.constant 0 : i32
    return %c0_i32, %c0_i32_0 : i32, i32
  }
  func.func @transform_5(%arg0: i32) -> (i32, i32) {
    %c0_i32 = arith.constant 0 : i32
    %c0_i32_0 = arith.constant 0 : i32
    %c0_i32_1 = arith.constant 0 : i32
    return %c0_i32, %c0_i32_0 : i32, i32
  }
  func.func @transform_6(%arg0: i32) -> (i32, i32) {
    %c0_i32 = arith.constant 0 : i32
    %c0_i32_0 = arith.constant 0 : i32
    %c0_i32_1 = arith.constant 0 : i32
    return %c0_i32, %c0_i32_0 : i32, i32
  }
  func.func @transform_7(%arg0: i32) -> (i32, i32) {
    %c0_i32 = arith.constant 0 : i32
    %c0_i32_0 = arith.constant 0 : i32
    %c0_i32_1 = arith.constant 0 : i32
    return %c0_i32, %c0_i32_0 : i32, i32
  }
  func.func @transform_8(%arg0: i32) -> (i32, i32) {
    %c0_i32 = arith.constant 0 : i32
    %c0_i32_0 = arith.constant 0 : i32
    %c0_i32_1 = arith.constant 0 : i32
    return %c0_i32, %c0_i32_0 : i32, i32
  }
  func.func @transform_9(%arg0: i32) -> (i32, i32) {
    %c0_i32 = arith.constant 0 : i32
    %c0_i32_0 = arith.constant 0 : i32
    %c0_i32_1 = arith.constant 0 : i32
    return %c0_i32, %c0_i32_0 : i32, i32
  }
  func.func @transform_10(%arg0: i32) -> (i32, i32) {
    %c0_i32 = arith.constant 0 : i32
    %c0_i32_0 = arith.constant 0 : i32
    %c0_i32_1 = arith.constant 0 : i32
    return %c0_i32, %c0_i32_0 : i32, i32
  }
  func.func @transform_11(%arg0: i32) -> (i32, i32) {
    %c0_i32 = arith.constant 0 : i32
    %c0_i32_0 = arith.constant 0 : i32
    %c0_i32_1 = arith.constant 0 : i32
    return %c0_i32, %c0_i32_0 : i32, i32
  }
  func.func @transform_12(%arg0: i32) -> (i32, i32) {
    %c0_i32 = arith.constant 0 : i32
    %c0_i32_0 = arith.constant 0 : i32
    return %arg0, %c0_i32 : i32, i32
  }
  func.func @transform_13(%arg0: i32) -> (i32, i32, i32, i32) {
    %c0_i32 = arith.constant 0 : i32
    %c0_i32_0 = arith.constant 0 : i32
    %c0_i32_1 = arith.constant 0 : i32
    %c0_i32_2 = arith.constant 0 : i32
    return %arg0, %c0_i32, %c0_i32_0, %c0_i32_1 : i32, i32, i32, i32
  }
}

</mosaic_0001>

<llo_original>
// kernel: tpu_custom_call.1
$region0: #{tpu_custom_call.1}
  #allocation0 [shape = 'u32[]', space=smem, size = 0x4, offset = 0x4, fixed_abs, tag = 'smem constant byte address 0x4 - core index']
  #allocation1 [shape = 'u32[144,128]{1,0:T(1,128)}', space=vmem, size = 0x12000, scoped, tag = 'internal scratch']
  #allocation2 [shape = 'f32[64,32]{1,0:T(8,128)}', space=vmem, size = 0x8000, scoped, tag = 'scratch operand']
  %s0 = inlined_call_operand.vmem [shape: f32[128,32], index: 0, kind: input, shape index: {}]
  %s1 = inlined_call_operand.vmem [shape: f32[1,32], index: 1, kind: input, shape index: {}]
  %s2 = inlined_call_operand.vmem [shape: f32[1,32], index: 2, kind: input, shape index: {}]
  %s3 = inlined_call_operand.vmem [shape: bf16[32,96], index: 3, kind: input, shape index: {}]
  %s4 = inlined_call_operand.vmem [shape: bf16[32,32], index: 4, kind: input, shape index: {}]
  %s5 = inlined_call_operand.vmem [shape: f32[1,32], index: 5, kind: input, shape index: {}]
  %s6 = inlined_call_operand.vmem [shape: f32[1,32], index: 6, kind: input, shape index: {}]
  %s7 = inlined_call_operand.vmem [shape: f32[1,32], index: 7, kind: input, shape index: {}]
  %s8 = inlined_call_operand.vmem [shape: bf16[32,128], index: 8, kind: input, shape index: {}]
  %s9 = inlined_call_operand.vmem [shape: f32[1,128], index: 9, kind: input, shape index: {}]
  %s10 = inlined_call_operand.vmem [shape: bf16[128,32], index: 10, kind: input, shape index: {}]
  %s11 = inlined_call_operand.vmem [shape: f32[1,32], index: 11, kind: input, shape index: {}]
  %s12 = inlined_call_operand.vmem [shape: f32[128,32], index: 12, kind: output, shape index: {0}]
  %s13 = inlined_call_operand.hbm [shape: bf16[2,4,64,64], index: 13, kind: output, shape index: {1}]
  %14 = xla_tuple %s12, %s13
  %s15 = sld [smem:[#allocation0]]
  $region89: #{tpu_custom_call.1} parent=0
    _
  %s17 = ssub.s32 1, %s15
  %s18 = scalar_select 0, %s17, %s15
  $region1: #{tpu_custom_call.1} parent=0
    #allocation3 [shape = 'u8[131072]{0}', space=vmem, size = 0x20000, scoped, tag = 'output window, operand 1']
    #allocation4 [shape = 's32[2]{0}', space=sflag, size = 0x8, scoped, tag = 'scoped memory for tpu_custom_call.1']
    %19 = vsyncpa [#allocation4], 0
    %s20 = scalar_lea.sflag [#allocation4], 1
    %21 = vsyncpa %s20, 0
    loop: start=0, step=1, limit=4
    $region2: #{tpu_custom_call.1} parent=1 // loop_pre_header
      _
    $region3: #{tpu_custom_call.1} parent=1 // loop_header
      %s23 = sphi 0, %s27
      %p24 = scmp.ge.s32.totalorder %s23, 4
      %s33 = sphi 0, %s35
      %s36 = sphi 0, %s33
      %s37 = sphi 0, %s36
      %s53 = sphi 0, %s37
      %s57 = sphi 0, %s57
      %s59 = sphi 0, %s57
      %s60 = sphi 0, %s59
      %s74 = sphi 0, %s60
      %s78 = sphi 0, %s78
      %s80 = sphi 0, %s78
      %s81 = sphi 0, %s80
      %s95 = sphi 0, %s81
      %s99 = sphi 0, %s99
      %s101 = sphi 0, %s99
      %s102 = sphi 0, %s101
      %s116 = sphi 0, %s102
      %s120 = sphi 0, %s120
      %s122 = sphi 0, %s120
      %s123 = sphi 0, %s122
      %s137 = sphi 0, %s123
      %s141 = sphi 0, %s141
      %s143 = sphi 0, %s141
      %s144 = sphi 0, %s143
      %s158 = sphi 0, %s144
      %s162 = sphi 0, %s162
      %s164 = sphi 0, %s162
      %s165 = sphi 0, %s164
      %s179 = sphi 0, %s165
      %s183 = sphi 0, %s183
      %s185 = sphi 0, %s183
      %s186 = sphi 0, %s185
      %s200 = sphi 0, %s186
      %s204 = sphi 0, %s204
      %s206 = sphi 0, %s204
      %s207 = sphi 0, %s206
      %s221 = sphi 0, %s207
      %s225 = sphi 0, %s225
      %s227 = sphi 0, %s225
      %s228 = sphi 0, %s227
      %s242 = sphi 0, %s228
      %s246 = sphi 0, %s246
      %s248 = sphi 0, %s246
      %s249 = sphi 0, %s248
      %s263 = sphi 0, %s249
      %s267 = sphi 0, %s267
      %s269 = sphi 0, %s267
      %s270 = sphi 0, %s269
      %s284 = sphi 0, %s270
      %s290 = sphi 0, %s292
      %s293 = sphi 0, %s290
      %s294 = sphi 0, %s293
      %s310 = sphi 0, %s294
      %s316 = sphi 0, %s318
      %s319 = sphi 0, %s316
      %s320 = sphi 0, %s319
      %s336 = sphi 0, %s320
    $region4: #{tpu_custom_call.1} parent=1 // loop_header_branch
      %26 = sbr.rel (%p24) target = $region8
    $region5: #{tpu_custom_call.1} parent=1 // loop_body
      %s28 = ssub.s32 %s23, 1
      %s29 = ssub.s32 %s23, 2
      %s30 = sadd.s32 %s23, 1
      %s31 = ssub.s32 %s23, %s30
      %p32 = scmp.eq.s32.totalorder %s31, 0
      %s34 = sadd.s32 %s33, 1
      %s35 = scalar_select %p32, %s33, %s34
      %p38 = pneg %p32
      %p39 = scmp.eq.s32.totalorder %s23, 1
      %p40 = por %p38, %p39
      %p41 = scmp.ne.s32.totalorder %s33, %s36
      %p42 = scmp.eq.s32.totalorder %s23, 0
      %p43 = por %p41, %p42
      %p44 = scmp.ne.s32.totalorder %s33, %s36
      %p45 = scmp.eq.s32.totalorder %s28, 1
      %p46 = por %p44, %p45
      %p47 = scmp.ne.s32.totalorder %s36, %s37
      %p48 = scmp.eq.s32.totalorder %s28, 0
      %p49 = por %p47, %p48
      %p50 = scmp.ne.s32.totalorder %s36, %s37
      %p51 = scmp.eq.s32.totalorder %s29, 1
      %p52 = por %p50, %p51
      %p54 = scmp.ne.s32.totalorder %s37, %s53
      %p55 = scmp.eq.s32.totalorder %s29, 0
      %p56 = por %p54, %p55
      %s58 = sadd.s32 %s57, 1
      %p61 = scmp.eq.s32.totalorder %s23, 1
      %p62 = scmp.ne.s32.totalorder %s57, %s59
      %p63 = scmp.eq.s32.totalorder %s23, 0
      %p64 = por %p62, %p63
      %p65 = scmp.ne.s32.totalorder %s57, %s59
      %p66 = scmp.eq.s32.totalorder %s28, 1
      %p67 = por %p65, %p66
      %p68 = scmp.ne.s32.totalorder %s59, %s60
      %p69 = scmp.eq.s32.totalorder %s28, 0
      %p70 = por %p68, %p69
      %p71 = scmp.ne.s32.totalorder %s59, %s60
      %p72 = scmp.eq.s32.totalorder %s29, 1
      %p73 = por %p71, %p72
      %p75 = scmp.ne.s32.totalorder %s60, %s74
      %p76 = scmp.eq.s32.totalorder %s29, 0
      %p77 = por %p75, %p76
      %s79 = sadd.s32 %s78, 1
      %p82 = scmp.eq.s32.totalorder %s23, 1
      %p83 = scmp.ne.s32.totalorder %s78, %s80
      %p84 = scmp.eq.s32.totalorder %s23, 0
      %p85 = por %p83, %p84
      %p86 = scmp.ne.s32.totalorder %s78, %s80
      %p87 = scmp.eq.s32.totalorder %s28, 1
      %p88 = por %p86, %p87
      %p89 = scmp.ne.s32.totalorder %s80, %s81
      %p90 = scmp.eq.s32.totalorder %s28, 0
      %p91 = por %p89, %p90
      %p92 = scmp.ne.s32.totalorder %s80, %s81
      %p93 = scmp.eq.s32.totalorder %s29, 1
      %p94 = por %p92, %p93
      %p96 = scmp.ne.s32.totalorder %s81, %s95
      %p97 = scmp.eq.s32.totalorder %s29, 0
      %p98 = por %p96, %p97
      %s100 = sadd.s32 %s99, 1
      %p103 = scmp.eq.s32.totalorder %s23, 1
      %p104 = scmp.ne.s32.totalorder %s99, %s101
      %p105 = scmp.eq.s32.totalorder %s23, 0
      %p106 = por %p104, %p105
      %p107 = scmp.ne.s32.totalorder %s99, %s101
      %p108 = scmp.eq.s32.totalorder %s28, 1
      %p109 = por %p107, %p108
      %p110 = scmp.ne.s32.totalorder %s101, %s102
      %p111 = scmp.eq.s32.totalorder %s28, 0
      %p112 = por %p110, %p111
      %p113 = scmp.ne.s32.totalorder %s101, %s102
      %p114 = scmp.eq.s32.totalorder %s29, 1
      %p115 = por %p113, %p114
      %p117 = scmp.ne.s32.totalorder %s102, %s116
      %p118 = scmp.eq.s32.totalorder %s29, 0
      %p119 = por %p117, %p118
      %s121 = sadd.s32 %s120, 1
      %p124 = scmp.eq.s32.totalorder %s23, 1
      %p125 = scmp.ne.s32.totalorder %s120, %s122
      %p126 = scmp.eq.s32.totalorder %s23, 0
      %p127 = por %p125, %p126
      %p128 = scmp.ne.s32.totalorder %s120, %s122
      %p129 = scmp.eq.s32.totalorder %s28, 1
      %p130 = por %p128, %p129
      %p131 = scmp.ne.s32.totalorder %s122, %s123
      %p132 = scmp.eq.s32.totalorder %s28, 0
      %p133 = por %p131, %p132
      %p134 = scmp.ne.s32.totalorder %s122, %s123
      %p135 = scmp.eq.s32.totalorder %s29, 1
      %p136 = por %p134, %p135
      %p138 = scmp.ne.s32.totalorder %s123, %s137
      %p139 = scmp.eq.s32.totalorder %s29, 0
      %p140 = por %p138, %p139
      %s142 = sadd.s32 %s141, 1
      %p145 = scmp.eq.s32.totalorder %s23, 1
      %p146 = scmp.ne.s32.totalorder %s141, %s143
      %p147 = scmp.eq.s32.totalorder %s23, 0
      %p148 = por %p146, %p147
      %p149 = scmp.ne.s32.totalorder %s141, %s143
      %p150 = scmp.eq.s32.totalorder %s28, 1
      %p151 = por %p149, %p150
      %p152 = scmp.ne.s32.totalorder %s143, %s144
      %p153 = scmp.eq.s32.totalorder %s28, 0
      %p154 = por %p152, %p153
      %p155 = scmp.ne.s32.totalorder %s143, %s144
      %p156 = scmp.eq.s32.totalorder %s29, 1
      %p157 = por %p155, %p156
      %p159 = scmp.ne.s32.totalorder %s144, %s158
      %p160 = scmp.eq.s32.totalorder %s29, 0
      %p161 = por %p159, %p160
      %s163 = sadd.s32 %s162, 1
      %p166 = scmp.eq.s32.totalorder %s23, 1
      %p167 = scmp.ne.s32.totalorder %s162, %s164
      %p168 = scmp.eq.s32.totalorder %s23, 0
      %p169 = por %p167, %p168
      %p170 = scmp.ne.s32.totalorder %s162, %s164
      %p171 = scmp.eq.s32.totalorder %s28, 1
      %p172 = por %p170, %p171
      %p173 = scmp.ne.s32.totalorder %s164, %s165
      %p174 = scmp.eq.s32.totalorder %s28, 0
      %p175 = por %p173, %p174
      %p176 = scmp.ne.s32.totalorder %s164, %s165
      %p177 = scmp.eq.s32.totalorder %s29, 1
      %p178 = por %p176, %p177
      %p180 = scmp.ne.s32.totalorder %s165, %s179
      %p181 = scmp.eq.s32.totalorder %s29, 0
      %p182 = por %p180, %p181
      %s184 = sadd.s32 %s183, 1
      %p187 = scmp.eq.s32.totalorder %s23, 1
      %p188 = scmp.ne.s32.totalorder %s183, %s185
      %p189 = scmp.eq.s32.totalorder %s23, 0
      %p190 = por %p188, %p189
      %p191 = scmp.ne.s32.totalorder %s183, %s185
      %p192 = scmp.eq.s32.totalorder %s28, 1
      %p193 = por %p191, %p192
      %p194 = scmp.ne.s32.totalorder %s185, %s186
      %p195 = scmp.eq.s32.totalorder %s28, 0
      %p196 = por %p194, %p195
      %p197 = scmp.ne.s32.totalorder %s185, %s186
      %p198 = scmp.eq.s32.totalorder %s29, 1
      %p199 = por %p197, %p198
      %p201 = scmp.ne.s32.totalorder %s186, %s200
      %p202 = scmp.eq.s32.totalorder %s29, 0
      %p203 = por %p201, %p202
      %s205 = sadd.s32 %s204, 1
      %p208 = scmp.eq.s32.totalorder %s23, 1
      %p209 = scmp.ne.s32.totalorder %s204, %s206
      %p210 = scmp.eq.s32.totalorder %s23, 0
      %p211 = por %p209, %p210
      %p212 = scmp.ne.s32.totalorder %s204, %s206
      %p213 = scmp.eq.s32.totalorder %s28, 1
      %p214 = por %p212, %p213
      %p215 = scmp.ne.s32.totalorder %s206, %s207
      %p216 = scmp.eq.s32.totalorder %s28, 0
      %p217 = por %p215, %p216
      %p218 = scmp.ne.s32.totalorder %s206, %s207
      %p219 = scmp.eq.s32.totalorder %s29, 1
      %p220 = por %p218, %p219
      %p222 = scmp.ne.s32.totalorder %s207, %s221
      %p223 = scmp.eq.s32.totalorder %s29, 0
      %p224 = por %p222, %p223
      %s226 = sadd.s32 %s225, 1
      %p229 = scmp.eq.s32.totalorder %s23, 1
      %p230 = scmp.ne.s32.totalorder %s225, %s227
      %p231 = scmp.eq.s32.totalorder %s23, 0
      %p232 = por %p230, %p231
      %p233 = scmp.ne.s32.totalorder %s225, %s227
      %p234 = scmp.eq.s32.totalorder %s28, 1
      %p235 = por %p233, %p234
      %p236 = scmp.ne.s32.totalorder %s227, %s228
      %p237 = scmp.eq.s32.totalorder %s28, 0
      %p238 = por %p236, %p237
      %p239 = scmp.ne.s32.totalorder %s227, %s228
      %p240 = scmp.eq.s32.totalorder %s29, 1
      %p241 = por %p239, %p240
      %p243 = scmp.ne.s32.totalorder %s228, %s242
      %p244 = scmp.eq.s32.totalorder %s29, 0
      %p245 = por %p243, %p244
      %s247 = sadd.s32 %s246, 1
      %p250 = scmp.eq.s32.totalorder %s23, 1
      %p251 = scmp.ne.s32.totalorder %s246, %s248
      %p252 = scmp.eq.s32.totalorder %s23, 0
      %p253 = por %p251, %p252
      %p254 = scmp.ne.s32.totalorder %s246, %s248
      %p255 = scmp.eq.s32.totalorder %s28, 1
      %p256 = por %p254, %p255
      %p257 = scmp.ne.s32.totalorder %s248, %s249
      %p258 = scmp.eq.s32.totalorder %s28, 0
      %p259 = por %p257, %p258
      %p260 = scmp.ne.s32.totalorder %s248, %s249
      %p261 = scmp.eq.s32.totalorder %s29, 1
      %p262 = por %p260, %p261
      %p264 = scmp.ne.s32.totalorder %s249, %s263
      %p265 = scmp.eq.s32.totalorder %s29, 0
      %p266 = por %p264, %p265
      %s268 = sadd.s32 %s267, 1
      %p271 = scmp.eq.s32.totalorder %s23, 1
      %p272 = scmp.ne.s32.totalorder %s267, %s269
      %p273 = scmp.eq.s32.totalorder %s23, 0
      %p274 = por %p272, %p273
      %p275 = scmp.ne.s32.totalorder %s267, %s269
      %p276 = scmp.eq.s32.totalorder %s28, 1
      %p277 = por %p275, %p276
      %p278 = scmp.ne.s32.totalorder %s269, %s270
      %p279 = scmp.eq.s32.totalorder %s28, 0
      %p280 = por %p278, %p279
      %p281 = scmp.ne.s32.totalorder %s269, %s270
      %p282 = scmp.eq.s32.totalorder %s29, 1
      %p283 = por %p281, %p282
      %p285 = scmp.ne.s32.totalorder %s270, %s284
      %p286 = scmp.eq.s32.totalorder %s29, 0
      %p287 = por %p285, %p286
      %s288 = ssub.s32 %s23, %s30
      %p289 = scmp.eq.s32.totalorder %s288, 0
      %s291 = sadd.s32 %s290, 1
      %s292 = scalar_select %p289, %s290, %s291
      %p295 = pneg %p289
      %p296 = scmp.eq.s32.totalorder %s23, 1
      %p297 = por %p295, %p296
      %p298 = scmp.ne.s32.totalorder %s290, %s293
      %p299 = scmp.eq.s32.totalorder %s23, 0
      %p300 = por %p298, %p299
      %p301 = scmp.ne.s32.totalorder %s290, %s293
      %p302 = scmp.eq.s32.totalorder %s28, 1
      %p303 = por %p301, %p302
      %p304 = scmp.ne.s32.totalorder %s293, %s294
      %p305 = scmp.eq.s32.totalorder %s28, 0
      %p306 = por %p304, %p305
      %p307 = scmp.ne.s32.totalorder %s293, %s294
      %p308 = scmp.eq.s32.totalorder %s29, 1
      %p309 = por %p307, %p308
      %p311 = scmp.ne.s32.totalorder %s294, %s310
      %p312 = scmp.eq.s32.totalorder %s29, 0
      %p313 = por %p311, %p312
      %s314 = ssub.s32 %s23, %s30
      %p315 = scmp.eq.s32.totalorder %s314, 0
      %s317 = sadd.s32 %s316, 1
      %s318 = scalar_select %p315, %s316, %s317
      %p321 = pneg %p315
      %p322 = scmp.eq.s32.totalorder %s23, 1
      %p323 = por %p321, %p322
      %p324 = scmp.ne.s32.totalorder %s316, %s319
      %p325 = scmp.eq.s32.totalorder %s23, 0
      %p326 = por %p324, %p325
      %p327 = scmp.ne.s32.totalorder %s316, %s319
      %p328 = scmp.eq.s32.totalorder %s28, 1
      %p329 = por %p327, %p328
      %p330 = scmp.ne.s32.totalorder %s319, %s320
      %p331 = scmp.eq.s32.totalorder %s28, 0
      %p332 = por %p330, %p331
      %p333 = scmp.ne.s32.totalorder %s319, %s320
      %p334 = scmp.eq.s32.totalorder %s29, 1
      %p335 = por %p333, %p334
      %p337 = scmp.ne.s32.totalorder %s320, %s336
      %p338 = scmp.eq.s32.totalorder %s29, 0
      %p339 = por %p337, %p338
      %p340 = scmp.le.s32.totalorder 1, %s23
      %p341 = scmp.lt.s32.totalorder %s23, 3
      %p342 = pnand %p340, %p341
      %p343 = pneg %p342
      // Predicated region
      $region9: #{tpu_custom_call.1} parent=5 // pred_check
        _
      $region10: #{tpu_custom_call.1} parent=5 // pred_check_branch
        %345 = sbr.rel (%p342) target = $region12
      $region11: #{tpu_custom_call.1} parent=5 // pred_region
        %s346 = ssub.s32 %s23, 1
        // Predicated region
        $region13: #{tpu_custom_call.1} parent=11 // pred_check
          %p347 = pneg %p70
        $region14: #{tpu_custom_call.1} parent=11 // pred_check_branch
          %349 = sbr.rel (%p347) target = $region16
        $region15: #{tpu_custom_call.1} parent=11 // pred_region
          _
        $region16: #{tpu_custom_call.1} parent=11 // pred_fallthru
          _
        // Predicated region
        $region17: #{tpu_custom_call.1} parent=11 // pred_check
          %p350 = pneg %p91
        $region18: #{tpu_custom_call.1} parent=11 // pred_check_branch
          %352 = sbr.rel (%p350) target = $region20
        $region19: #{tpu_custom_call.1} parent=11 // pred_region
          _
        $region20: #{tpu_custom_call.1} parent=11 // pred_fallthru
          _
        // Predicated region
        $region21: #{tpu_custom_call.1} parent=11 // pred_check
          %p353 = pneg %p112
        $region22: #{tpu_custom_call.1} parent=11 // pred_check_branch
          %355 = sbr.rel (%p353) target = $region24
        $region23: #{tpu_custom_call.1} parent=11 // pred_region
          _
        $region24: #{tpu_custom_call.1} parent=11 // pred_fallthru
          _
        // Predicated region
        $region25: #{tpu_custom_call.1} parent=11 // pred_check
          %p356 = pneg %p133
        $region26: #{tpu_custom_call.1} parent=11 // pred_check_branch
          %358 = sbr.rel (%p356) target = $region28
        $region27: #{tpu_custom_call.1} parent=11 // pred_region
          _
        $region28: #{tpu_custom_call.1} parent=11 // pred_fallthru
          _
        // Predicated region
        $region29: #{tpu_custom_call.1} parent=11 // pred_check
          %p359 = pneg %p154
        $region30: #{tpu_custom_call.1} parent=11 // pred_check_branch
          %361 = sbr.rel (%p359) target = $region32
        $region31: #{tpu_custom_call.1} parent=11 // pred_region
          _
        $region32: #{tpu_custom_call.1} parent=11 // pred_fallthru
          _
        // Predicated region
        $region33: #{tpu_custom_call.1} parent=11 // pred_check
          %p362 = pneg %p175
        $region34: #{tpu_custom_call.1} parent=11 // pred_check_branch
          %364 = sbr.rel (%p362) target = $region36
        $region35: #{tpu_custom_call.1} parent=11 // pred_region
          _
        $region36: #{tpu_custom_call.1} parent=11 // pred_fallthru
          _
        // Predicated region
        $region37: #{tpu_custom_call.1} parent=11 // pred_check
          %p365 = pneg %p196
        $region38: #{tpu_custom_call.1} parent=11 // pred_check_branch
          %367 = sbr.rel (%p365) target = $region40
        $region39: #{tpu_custom_call.1} parent=11 // pred_region
          _
        $region40: #{tpu_custom_call.1} parent=11 // pred_fallthru
          _
        // Predicated region
        $region41: #{tpu_custom_call.1} parent=11 // pred_check
          %p368 = pneg %p217
        $region42: #{tpu_custom_call.1} parent=11 // pred_check_branch
          %370 = sbr.rel (%p368) target = $region44
        $region43: #{tpu_custom_call.1} parent=11 // pred_region
          _
        $region44: #{tpu_custom_call.1} parent=11 // pred_fallthru
          _
        // Predicated region
        $region45: #{tpu_custom_call.1} parent=11 // pred_check
          %p371 = pneg %p238
        $region46: #{tpu_custom_call.1} parent=11 // pred_check_branch
          %373 = sbr.rel (%p371) target = $region48
        $region47: #{tpu_custom_call.1} parent=11 // pred_region
          _
        $region48: #{tpu_custom_call.1} parent=11 // pred_fallthru
          _
        // Predicated region
        $region49: #{tpu_custom_call.1} parent=11 // pred_check
          %p374 = pneg %p259
        $region50: #{tpu_custom_call.1} parent=11 // pred_check_branch
          %376 = sbr.rel (%p374) target = $region52
        $region51: #{tpu_custom_call.1} parent=11 // pred_region
          _
        $region52: #{tpu_custom_call.1} parent=11 // pred_fallthru
          _
        // Predicated region
        $region53: #{tpu_custom_call.1} parent=11 // pred_check
          %p377 = pneg %p280
        $region54: #{tpu_custom_call.1} parent=11 // pred_check_branch
          %379 = sbr.rel (%p377) target = $region56
        $region55: #{tpu_custom_call.1} parent=11 // pred_region
          _
        $region56: #{tpu_custom_call.1} parent=11 // pred_fallthru
          _
      $region12: #{tpu_custom_call.1} parent=5 // pred_fallthru
        _
      %p380 = scmp.lt.s32.totalorder %s23, 2
      // Predicated region
      $region57: #{tpu_custom_call.1} parent=5 // pred_check
        %p381 = pneg %p380
      $region58: #{tpu_custom_call.1} parent=5 // pred_check_branch
        %383 = sbr.rel (%p381) target = $region60
      $region59: #{tpu_custom_call.1} parent=5 // pred_region
        // Predicated region
        $region61: #{tpu_custom_call.1} parent=59 // pred_check
          %p384 = pneg %p43
        $region62: #{tpu_custom_call.1} parent=59 // pred_check_branch
          %386 = sbr.rel (%p384) target = $region64
        $region63: #{tpu_custom_call.1} parent=59 // pred_region
          %s387 = smul.u32 8, %s23
          %p388 = scmp.lt.s32.totalorder %s387, 15
          %s389 = scalar_select %p388, %s387, 15
          %s390 = smul.addr %s389, 8
          %s391 = scalar_lea.vmem %s0, %s390
          %s392 = smul.u32 8, %s23
        $region64: #{tpu_custom_call.1} parent=59 // pred_fallthru
          _
      $region60: #{tpu_custom_call.1} parent=5 // pred_fallthru
        _
      %p393 = scmp.le.s32.totalorder 1, %s23
      %p394 = scmp.lt.s32.totalorder %s23, 3
      %p395 = pnand %p393, %p394
      %p396 = pneg %p395
      // Predicated region
      $region65: #{tpu_custom_call.1} parent=5 // pred_check
        _
      $region66: #{tpu_custom_call.1} parent=5 // pred_check_branch
        %398 = sbr.rel (%p395) target = $region68
      $region67: #{tpu_custom_call.1} parent=5 // pred_region
        %s399 = ssub.s32 %s23, 1
        %s400 = smul.u32 8, %s28
        %p401 = scmp.lt.s32.totalorder %s400, 15
        %s402 = scalar_select %p401, %s400, 15
        %s403 = smul.addr %s402, 8
        %s404 = scalar_lea.vmem %s0, %s403
        %p405 = pneg %p49
        %p406 = pneg %p46
        %p407 = pneg %p70
        %p408 = pneg %p67
        %p409 = pneg %p91
        %p410 = pneg %p88
        %p411 = pneg %p112
        %p412 = pneg %p109
        %p413 = pneg %p133
        %p414 = pneg %p130
        %p415 = pneg %p154
        %p416 = pneg %p151
        %p417 = pneg %p175
        %p418 = pneg %p172
        %p419 = pneg %p196
        %p420 = pneg %p193
        %p421 = pneg %p217
        %p422 = pneg %p214
        %p423 = pneg %p238
        %p424 = pneg %p235
        %p425 = pneg %p259
        %p426 = pneg %p256
        %p427 = pneg %p280
        %p428 = pneg %p277
        %p429 = pneg %p306
        %p430 = pneg %p303
        %s431 = smul.u32 8, %s28
        %p432 = scmp.lt.s32.totalorder %s431, 15
        %s433 = scalar_select %p432, %s431, 15
        %s434 = smul.addr %s433, 8
        %s435 = scalar_lea.vmem %s12, %s434
        %p436 = pneg %p332
        %p437 = pneg %p329
        %s438 = sand.u32 %s319, 1
        %s439 = scalar_lea.sflag [#allocation4], %s438
        %s440 = sand.u32 %s319, 1
        %s441 = smul.addr %s440, 128
        %s442 = scalar_lea.vmem [#allocation3], %s441
        %s443 = smul.u32 8, %s28
        %p444 = scmp.lt.s32.totalorder %s443, 15
        %s445 = scalar_select %p444, %s443, 15
        %s446 = smul.addr %s445, 8
        %s447 = scalar_lea.vmem %s0, %s446
        %s448 = smul.u32 8, %s28
        %s449 = smul.u32 8, %s28
        %p450 = scmp.lt.s32.totalorder %s449, 15
        %s451 = scalar_select %p450, %s449, 15
        %s452 = smul.addr %s451, 8
        %s453 = scalar_lea.vmem %s12, %s452
        %s454 = smul.u32 8, %s28
        %v456 = vld [vmem:[%s447] sm:$0xff]
        %v457 = vld [vmem:[%s447 + $0x8] sm:$0xff]
        %v458 = vld [vmem:[%s447 + $0x10] sm:$0xff]
        %v459 = vld [vmem:[%s447 + $0x18] sm:$0xff]
        %v460 = vld [vmem:[%s447 + $0x20] sm:$0xff]
        %v461 = vld [vmem:[%s447 + $0x28] sm:$0xff]
        %v462 = vld [vmem:[%s447 + $0x30] sm:$0xff]
        %v463 = vld [vmem:[%s447 + $0x38] sm:$0xff]
        %vm464 = vcmask 261120
        %v465 = vsel %vm464, %v456, 0.0
        %466 = vadd.xlane.f32.xlu0 %v465
        %v467 = vpop.xlane.xlu0 %466
        %v468 = vsel %vm464, %v457, 0.0
        %469 = vadd.xlane.f32.xlu0 %v468
        %v470 = vpop.xlane.xlu0 %469
        %v471 = vsel %vm464, %v458, 0.0
        %472 = vadd.xlane.f32.xlu0 %v471
        %v473 = vpop.xlane.xlu0 %472
        %v474 = vsel %vm464, %v459, 0.0
        %475 = vadd.xlane.f32.xlu0 %v474
        %v476 = vpop.xlane.xlu0 %475
        %v477 = vsel %vm464, %v460, 0.0
        %478 = vadd.xlane.f32.xlu0 %v477
        %v479 = vpop.xlane.xlu0 %478
        %v480 = vsel %vm464, %v461, 0.0
        %481 = vadd.xlane.f32.xlu0 %v480
        %v482 = vpop.xlane.xlu0 %481
        %v483 = vsel %vm464, %v462, 0.0
        %484 = vadd.xlane.f32.xlu0 %v483
        %v485 = vpop.xlane.xlu0 %484
        %v486 = vsel %vm464, %v463, 0.0
        %487 = vadd.xlane.f32.xlu0 %v486
        %v488 = vpop.xlane.xlu0 %487
        %v489 = vrcp.pop 32.0
        %v490 = vmul.f32 %v467, %v489
        %v491 = vmul.f32 %v470, %v489
        %v492 = vmul.f32 %v473, %v489
        %v493 = vmul.f32 %v476, %v489
        %v494 = vmul.f32 %v479, %v489
        %v495 = vmul.f32 %v482, %v489
        %v496 = vmul.f32 %v485, %v489
        %v497 = vmul.f32 %v488, %v489
        %v498 = vsub.f32 %v456, %v490
        %v499 = vsub.f32 %v457, %v491
        %v500 = vsub.f32 %v458, %v492
        %v501 = vsub.f32 %v459, %v493
        %v502 = vsub.f32 %v460, %v494
        %v503 = vsub.f32 %v461, %v495
        %v504 = vsub.f32 %v462, %v496
        %v505 = vsub.f32 %v463, %v497
        %v506 = vmul.f32 %v498, %v498
        %v507 = vmul.f32 %v499, %v499
        %v508 = vmul.f32 %v500, %v500
        %v509 = vmul.f32 %v501, %v501
        %v510 = vmul.f32 %v502, %v502
        %v511 = vmul.f32 %v503, %v503
        %v512 = vmul.f32 %v504, %v504
        %v513 = vmul.f32 %v505, %v505
        %v514 = vsel %vm464, %v506, 0.0
        %515 = vadd.xlane.f32.xlu0 %v514
        %v516 = vpop.xlane.xlu0 %515
        %v517 = vsel %vm464, %v507, 0.0
        %518 = vadd.xlane.f32.xlu0 %v517
        %v519 = vpop.xlane.xlu0 %518
        %v520 = vsel %vm464, %v508, 0.0
        %521 = vadd.xlane.f32.xlu0 %v520
        %v522 = vpop.xlane.xlu0 %521
        %v523 = vsel %vm464, %v509, 0.0
        %524 = vadd.xlane.f32.xlu0 %v523
        %v525 = vpop.xlane.xlu0 %524
        %v526 = vsel %vm464, %v510, 0.0
        %527 = vadd.xlane.f32.xlu0 %v526
        %v528 = vpop.xlane.xlu0 %527
        %v529 = vsel %vm464, %v511, 0.0
        %530 = vadd.xlane.f32.xlu0 %v529
        %v531 = vpop.xlane.xlu0 %530
        %v532 = vsel %vm464, %v512, 0.0
        %533 = vadd.xlane.f32.xlu0 %v532
        %v534 = vpop.xlane.xlu0 %533
        %v535 = vsel %vm464, %v513, 0.0
        %536 = vadd.xlane.f32.xlu0 %v535
        %v537 = vpop.xlane.xlu0 %536
        %v538 = vmul.f32 %v516, %v489
        %v539 = vmul.f32 %v519, %v489
        %v540 = vmul.f32 %v522, %v489
        %v541 = vmul.f32 %v525, %v489
        %v542 = vmul.f32 %v528, %v489
        %v543 = vmul.f32 %v531, %v489
        %v544 = vmul.f32 %v534, %v489
        %v545 = vmul.f32 %v537, %v489
        %v546 = vadd.f32 %v538, 1e-05
        %v547 = vadd.f32 %v539, 1e-05
        %v548 = vadd.f32 %v540, 1e-05
        %v549 = vadd.f32 %v541, 1e-05
        %v550 = vadd.f32 %v542, 1e-05
        %v551 = vadd.f32 %v543, 1e-05
        %v552 = vadd.f32 %v544, 1e-05
        %v553 = vadd.f32 %v545, 1e-05
        %v554 = vrsqrt.pop %v546
        %v555 = vrsqrt.pop %v547
        %v556 = vrsqrt.pop %v548
        %v557 = vrsqrt.pop %v549
        %v558 = vrsqrt.pop %v550
        %v559 = vrsqrt.pop %v551
        %v560 = vrsqrt.pop %v552
        %v561 = vrsqrt.pop %v553
        %v562 = vmul.f32 %v498, %v554
        %v563 = vmul.f32 %v499, %v555
        %v564 = vmul.f32 %v500, %v556
        %v565 = vmul.f32 %v501, %v557
        %v566 = vmul.f32 %v502, %v558
        %v567 = vmul.f32 %v503, %v559
        %v568 = vmul.f32 %v504, %v560
        %v569 = vmul.f32 %v505, %v561
        %v570 = vld [vmem:[%s1] sm:$0x1]
        %v572 = vlaneseq
        %v573 = vshrl.u32 %v572, 7
        %v574 = vsub.s32 0, %v573
        %v575 = vrot.slane %v570, %v574
        %v577 = vmul.f32 %v562, %v575
        %v578 = vmul.f32 %v563, %v575
        %v579 = vmul.f32 %v564, %v575
        %v580 = vmul.f32 %v565, %v575
        %v581 = vmul.f32 %v566, %v575
        %v582 = vmul.f32 %v567, %v575
        %v583 = vmul.f32 %v568, %v575
        %v584 = vmul.f32 %v569, %v575
        %v585 = vld [vmem:[%s2] sm:$0x1]
        %v587 = vlaneseq
        %v588 = vshrl.u32 %v587, 7
        %v589 = vsub.s32 0, %v588
        %v590 = vrot.slane %v585, %v589
        %v592 = vadd.f32 %v577, %v590
        %v593 = vadd.f32 %v578, %v590
        %v594 = vadd.f32 %v579, %v590
        %v595 = vadd.f32 %v580, %v590
        %v596 = vadd.f32 %v581, %v590
        %v597 = vadd.f32 %v582, %v590
        %v598 = vadd.f32 %v583, %v590
        %v599 = vadd.f32 %v584, %v590
        %v600 = vpack.c.bf16 %v593, %v592
        %v601 = vpack.c.bf16 %v595, %v594
        %v602 = vpack.c.bf16 %v597, %v596
        %v603 = vpack.c.bf16 %v599, %v598
        %v604 = vld [vmem:[%s3] sm:$0xf]
        %v605 = vld [vmem:[%s3 + $0x4] sm:$0xf]
        %v606 = vld [vmem:[%s3 + $0x8] sm:$0xf]
        %v607 = vld [vmem:[%s3 + $0xc] sm:$0xf]
        %v612 = vunpack.c.l.b16 %v604
        %v613 = vunpack.c.l.b16 %v605
        %v614 = vunpack.c.l.b16 %v606
        %v615 = vunpack.c.l.b16 %v607
        %v616 = vpack.c.b16 %v613, %v612
        %v617 = vpack.c.b16 %v615, %v614
        %v621 = vsel %vm464, %v600, 0
        %v624 = vsel %vm464, %v601, 0
        %v627 = vsel %vm464, %v602, 0
        %v630 = vsel %vm464, %v603, 0
        %632 = vmatprep.subr.bf16.mxu0 0
        %633 = vmatpush1.bf16.msra.mxu0 0
        %634 = vmatprep.subr.bf16.mxu0 0
        %635 = vmatpush1.bf16.msra.mxu0 0
        %636 = vmatprep.subr.bf16.mxu0 0
        %637 = vmatpush1.bf16.msra.mxu0 0
        %638 = vmatprep.subr.bf16.mxu0 0
        %639 = vmatpush1.bf16.msra.mxu0 0
        %640 = vmatprep.subr.bf16.mxu0 0
        %641 = vmatpush1.bf16.msra.mxu0 0
        %642 = vmatprep.subr.bf16.mxu0 0
        %643 = vmatpush1.bf16.msra.mxu0 0
        %644 = vmatprep.subr.bf16.mxu0 0
        %645 = vmatpush1.bf16.msra.mxu0 %v617
        %646 = vmatprep.subr.bf16.mxu0 0
        %647 = vmatpush1.bf16.msra.mxu0 %v616
        %648 = vmatprep.subr.bf16.mxu0 0
        %649 = vmatpush2.bf16.msra.mxu0 0
        %650 = vmatprep.subr.bf16.mxu0 0
        %651 = vmatpush2.bf16.msra.mxu0 0
        %652 = vmatprep.subr.bf16.mxu0 0
        %653 = vmatpush2.bf16.msra.mxu0 0
        %654 = vmatprep.subr.bf16.mxu0 0
        %655 = vmatpush2.bf16.msra.mxu0 0
        %656 = vmatprep.subr.bf16.mxu0 0
        %657 = vmatpush2.bf16.msra.mxu0 0
        %658 = vmatprep.subr.bf16.mxu0 0
        %659 = vmatpush2.bf16.msra.mxu0 0
        %660 = vmatprep.subr.bf16.mxu0 0
        %661 = vmatpush2.bf16.msra.mxu0 0
        %662 = vmatprep.subr.bf16.mxu0 0
        %663 = vmatpush2.bf16.msra.mxu0 0
        %664 = vmatprep.mubr.bf16.mxu0 0
        %665 = vmatmul.mubr.bf16.gmra.mxu0 %v621
        %v666 = vpop.f32.mrf.mxu0
        %v667 = vadd.f32 0.0, %v666
        %v668 = vpop.f32.mrf.mxu0
        %v669 = vpop.f32.mrf.mxu0
        %v670 = vadd.f32 0.0, %v669
        %v671 = vpop.f32.mrf.mxu0
        %672 = vmatprep.mubr.bf16.mxu0 0
        %673 = vmatmul.mubr.bf16.gmra.mxu0 %v624
        %v674 = vpop.f32.mrf.mxu0
        %v675 = vadd.f32 0.0, %v674
        %v676 = vpop.f32.mrf.mxu0
        %v677 = vpop.f32.mrf.mxu0
        %v678 = vadd.f32 0.0, %v677
        %v679 = vpop.f32.mrf.mxu0
        %680 = vmatprep.mubr.bf16.mxu0 0
        %681 = vmatmul.mubr.bf16.gmra.mxu0 %v627
        %v682 = vpop.f32.mrf.mxu0
        %v683 = vadd.f32 0.0, %v682
        %v684 = vpop.f32.mrf.mxu0
        %v685 = vpop.f32.mrf.mxu0
        %v686 = vadd.f32 0.0, %v685
        %v687 = vpop.f32.mrf.mxu0
        %688 = vmatprep.mubr.bf16.mxu0 0
        %689 = vmatmul.mubr.bf16.gmra.mxu0 %v630
        %v690 = vpop.f32.mrf.mxu0
        %v691 = vadd.f32 0.0, %v690
        %v692 = vpop.f32.mrf.mxu0
        %v693 = vpop.f32.mrf.mxu0
        %v694 = vadd.f32 0.0, %v693
        %v695 = vpop.f32.mrf.mxu0
        %696 = vdwg.mxu0
        %v697 = vpack.c.bf16 %v670, %v667
        %v698 = vpack.c.bf16 %v678, %v675
        %v699 = vpack.c.bf16 %v686, %v683
        %v700 = vpack.c.bf16 %v694, %v691
        %705 = vrot.lane.b32.xlu0 %v697, 96
        %v706 = vpop.permute.xlu0 %705
        %707 = vrot.lane.b32.xlu0 %v698, 96
        %v708 = vpop.permute.xlu0 %707
        %709 = vrot.lane.b32.xlu0 %v699, 96
        %v710 = vpop.permute.xlu0 %709
        %711 = vrot.lane.b32.xlu0 %v700, 96
        %v712 = vpop.permute.xlu0 %711
        %vm713 = vcmask 64512
        %v715 = vsel %vm713, %v697, 0
        %v718 = vsel %vm713, %v698, 0
        %v721 = vsel %vm713, %v699, 0
        %v724 = vsel %vm713, %v700, 0
        %v727 = vsel %vm713, %v706, 0
        %v730 = vsel %vm713, %v708, 0
        %v733 = vsel %vm713, %v710, 0
        %v736 = vsel %vm713, %v712, 0
        %738 = vmatprep.subr.bf16.mxu0 0
        %739 = vmatpush1.bf16.xpose.msra.mxu0 0
        %740 = vmatprep.subr.bf16.mxu0 0
        %741 = vmatpush1.bf16.xpose.msra.mxu0 0
        %742 = vmatprep.subr.bf16.mxu0 0
        %743 = vmatpush1.bf16.xpose.msra.mxu0 0
        %744 = vmatprep.subr.bf16.mxu0 0
        %745 = vmatpush1.bf16.xpose.msra.mxu0 0
        %746 = vmatprep.subr.bf16.mxu0 0
        %747 = vmatpush1.bf16.xpose.msra.mxu0 %v736
        %748 = vmatprep.subr.bf16.mxu0 0
        %749 = vmatpush1.bf16.xpose.msra.mxu0 %v733
        %750 = vmatprep.subr.bf16.mxu0 0
        %751 = vmatpush1.bf16.xpose.msra.mxu0 %v730
        %752 = vmatprep.subr.bf16.mxu0 0
        %753 = vmatpush1.bf16.xpose.msra.mxu0 %v727
        %754 = vmatprep.subr.bf16.mxu0 0
        %755 = vmatpush2.bf16.xpose.msra.mxu0 0
        %756 = vmatprep.subr.bf16.mxu0 0
        %757 = vmatpush2.bf16.xpose.msra.mxu0 0
        %758 = vmatprep.subr.bf16.mxu0 0
        %759 = vmatpush2.bf16.xpose.msra.mxu0 0
        %760 = vmatprep.subr.bf16.mxu0 0
        %761 = vmatpush2.bf16.xpose.msra.mxu0 0
        %762 = vmatprep.subr.bf16.mxu0 0
        %763 = vmatpush2.bf16.xpose.msra.mxu0 0
        %764 = vmatprep.subr.bf16.mxu0 0
        %765 = vmatpush2.bf16.xpose.msra.mxu0 0
        %766 = vmatprep.subr.bf16.mxu0 0
        %767 = vmatpush2.bf16.xpose.msra.mxu0 0
        %768 = vmatprep.subr.bf16.mxu0 0
        %769 = vmatpush2.bf16.xpose.msra.mxu0 0
        %770 = vmatprep.mubr.bf16.mxu0 0
        %771 = vmatmul.mubr.bf16.gmra.mxu0 %v715
        %v772 = vpop.f32.mrf.mxu0
        %v773 = vadd.f32 0.0, %v772
        %v774 = vpop.f32.mrf.mxu0
        %v775 = vpop.f32.mrf.mxu0
        %v776 = vadd.f32 0.0, %v775
        %v777 = vpop.f32.mrf.mxu0
        %778 = vmatprep.mubr.bf16.mxu0 0
        %779 = vmatmul.mubr.bf16.gmra.mxu0 %v718
        %v780 = vpop.f32.mrf.mxu0
        %v781 = vadd.f32 0.0, %v780
        %v782 = vpop.f32.mrf.mxu0
        %v783 = vpop.f32.mrf.mxu0
        %v784 = vadd.f32 0.0, %v783
        %v785 = vpop.f32.mrf.mxu0
        %786 = vmatprep.mubr.bf16.mxu0 0
        %787 = vmatmul.mubr.bf16.gmra.mxu0 %v721
        %v788 = vpop.f32.mrf.mxu0
        %v789 = vadd.f32 0.0, %v788
        %v790 = vpop.f32.mrf.mxu0
        %v791 = vpop.f32.mrf.mxu0
        %v792 = vadd.f32 0.0, %v791
        %v793 = vpop.f32.mrf.mxu0
        %794 = vmatprep.mubr.bf16.mxu0 0
        %795 = vmatmul.mubr.bf16.gmra.mxu0 %v724
        %v796 = vpop.f32.mrf.mxu0
        %v797 = vadd.f32 0.0, %v796
        %v798 = vpop.f32.mrf.mxu0
        %v799 = vpop.f32.mrf.mxu0
        %v800 = vadd.f32 0.0, %v799
        %v801 = vpop.f32.mrf.mxu0
        %802 = vdwg.mxu0
        %vm803 = vcmask 523264
        %v804 = vsel %vm803, %v773, -inf
        %805 = vmax.xlane.f32.xlu0 %v804
        %v806 = vpop.xlane.xlu0 %805
        %v807 = vsel %vm803, %v776, -inf
        %808 = vmax.xlane.f32.xlu0 %v807
        %v809 = vpop.xlane.xlu0 %808
        %v810 = vsel %vm803, %v781, -inf
        %811 = vmax.xlane.f32.xlu0 %v810
        %v812 = vpop.xlane.xlu0 %811
        %v813 = vsel %vm803, %v784, -inf
        %814 = vmax.xlane.f32.xlu0 %v813
        %v815 = vpop.xlane.xlu0 %814
        %v816 = vsel %vm803, %v789, -inf
        %817 = vmax.xlane.f32.xlu0 %v816
        %v818 = vpop.xlane.xlu0 %817
        %v819 = vsel %vm803, %v792, -inf
        %820 = vmax.xlane.f32.xlu0 %v819
        %v821 = vpop.xlane.xlu0 %820
        %v822 = vsel %vm803, %v797, -inf
        %823 = vmax.xlane.f32.xlu0 %v822
        %v824 = vpop.xlane.xlu0 %823
        %v825 = vsel %vm803, %v800, -inf
        %826 = vmax.xlane.f32.xlu0 %v825
        %v827 = vpop.xlane.xlu0 %826
        %v828 = vsub.f32 %v773, %v806
        %v829 = vsub.f32 %v776, %v809
        %v830 = vsub.f32 %v781, %v812
        %v831 = vsub.f32 %v784, %v815
        %v832 = vsub.f32 %v789, %v818
        %v833 = vsub.f32 %v792, %v821
        %v834 = vsub.f32 %v797, %v824
        %v835 = vsub.f32 %v800, %v827
        %v836 = vmul.f32 %v828, 1.442695
        %v837 = vpow.pop %v836
        %v838 = vmul.f32 %v829, 1.442695
        %v839 = vpow.pop %v838
        %v840 = vmul.f32 %v830, 1.442695
        %v841 = vpow.pop %v840
        %v842 = vmul.f32 %v831, 1.442695
        %v843 = vpow.pop %v842
        %v844 = vmul.f32 %v832, 1.442695
        %v845 = vpow.pop %v844
        %v846 = vmul.f32 %v833, 1.442695
        %v847 = vpow.pop %v846
        %v848 = vmul.f32 %v834, 1.442695
        %v849 = vpow.pop %v848
        %v850 = vmul.f32 %v835, 1.442695
        %v851 = vpow.pop %v850
        %v852 = vsel %vm803, %v837, 0.0
        %853 = vadd.xlane.f32.xlu0 %v852
        %v854 = vpop.xlane.xlu0 %853
        %v855 = vsel %vm803, %v839, 0.0
        %856 = vadd.xlane.f32.xlu0 %v855
        %v857 = vpop.xlane.xlu0 %856
        %v858 = vsel %vm803, %v841, 0.0
        %859 = vadd.xlane.f32.xlu0 %v858
        %v860 = vpop.xlane.xlu0 %859
        %v861 = vsel %vm803, %v843, 0.0
        %862 = vadd.xlane.f32.xlu0 %v861
        %v863 = vpop.xlane.xlu0 %862
        %v864 = vsel %vm803, %v845, 0.0
        %865 = vadd.xlane.f32.xlu0 %v864
        %v866 = vpop.xlane.xlu0 %865
        %v867 = vsel %vm803, %v847, 0.0
        %868 = vadd.xlane.f32.xlu0 %v867
        %v869 = vpop.xlane.xlu0 %868
        %v870 = vsel %vm803, %v849, 0.0
        %871 = vadd.xlane.f32.xlu0 %v870
        %v872 = vpop.xlane.xlu0 %871
        %v873 = vsel %vm803, %v851, 0.0
        %874 = vadd.xlane.f32.xlu0 %v873
        %v875 = vpop.xlane.xlu0 %874
        %v876 = vrcp.pop %v854
        %v877 = vrcp.pop %v857
        %v878 = vrcp.pop %v860
        %v879 = vrcp.pop %v863
        %v880 = vrcp.pop %v866
        %v881 = vrcp.pop %v869
        %v882 = vrcp.pop %v872
        %v883 = vrcp.pop %v875
        %v884 = vmul.f32 %v837, %v876
        %v885 = vmul.f32 %v839, %v877
        %v886 = vmul.f32 %v841, %v878
        %v887 = vmul.f32 %v843, %v879
        %v888 = vmul.f32 %v845, %v880
        %v889 = vmul.f32 %v847, %v881
        %v890 = vmul.f32 %v849, %v882
        %v891 = vmul.f32 %v851, %v883
        %v892 = vpack.c.bf16 %v885, %v884
        %v893 = vpack.c.bf16 %v887, %v886
        %v894 = vpack.c.bf16 %v889, %v888
        %v895 = vpack.c.bf16 %v891, %v890
        %v900 = vunpack.c.l.b16 %v892
        %v901 = vunpack.c.h.b16 %v892
        %v902 = vunpack.c.l.b16 %v893
        %v903 = vunpack.c.h.b16 %v893
        %v904 = vunpack.c.l.b16 %v894
        %v905 = vunpack.c.h.b16 %v894
        %v906 = vunpack.c.l.b16 %v895
        %v907 = vunpack.c.h.b16 %v895
        %v908 = vpack.c.b16 %v900, %v900
        %v909 = vpack.c.b16 %v901, %v901
        %v910 = vpack.c.b16 %v902, %v902
        %v911 = vpack.c.b16 %v903, %v903
        %v912 = vpack.c.b16 %v904, %v904
        %v913 = vpack.c.b16 %v905, %v905
        %v914 = vpack.c.b16 %v906, %v906
        %v915 = vpack.c.b16 %v907, %v907
        %vm924 = vcmask 519168
        %925 = vst.msk [vmem:[%s442] sm:$0xf] %vm924, %v908
        %926 = vst.msk [vmem:[%s442 + $0x4] sm:$0xf] %vm924, %v909
        %927 = vst.msk [vmem:[%s442 + $0x8] sm:$0xf] %vm924, %v910
        %928 = vst.msk [vmem:[%s442 + $0xc] sm:$0xf] %vm924, %v911
        %929 = vst.msk [vmem:[%s442 + $0x10] sm:$0xf] %vm924, %v912
        %930 = vst.msk [vmem:[%s442 + $0x14] sm:$0xf] %vm924, %v913
        %931 = vst.msk [vmem:[%s442 + $0x18] sm:$0xf] %vm924, %v914
        %932 = vst.msk [vmem:[%s442 + $0x1c] sm:$0xf] %vm924, %v915
        %933 = vrot.lane.b32.xlu0 %v697, 64
        %v934 = vpop.permute.xlu0 %933
        %935 = vrot.lane.b32.xlu0 %v698, 64
        %v936 = vpop.permute.xlu0 %935
        %937 = vrot.lane.b32.xlu0 %v699, 64
        %v938 = vpop.permute.xlu0 %937
        %939 = vrot.lane.b32.xlu0 %v700, 64
        %v940 = vpop.permute.xlu0 %939
        %v946 = vsel %vm803, %v892, 0
        %v949 = vsel %vm803, %v893, 0
        %v952 = vsel %vm803, %v894, 0
        %v955 = vsel %vm803, %v895, 0
        %957 = vmatprep.subr.bf16.mxu0 0
        %958 = vmatpush1.bf16.msra.mxu0 0
        %959 = vmatprep.subr.bf16.mxu0 0
        %960 = vmatpush1.bf16.msra.mxu0 0
        %961 = vmatprep.subr.bf16.mxu0 0
        %962 = vmatpush1.bf16.msra.mxu0 0
        %963 = vmatprep.subr.bf16.mxu0 0
        %964 = vmatpush1.bf16.msra.mxu0 0
        %965 = vmatprep.subr.bf16.mxu0 0
        %966 = vmatpush1.bf16.msra.mxu0 %v940
        %967 = vmatprep.subr.bf16.mxu0 0
        %968 = vmatpush1.bf16.msra.mxu0 %v938
        %969 = vmatprep.subr.bf16.mxu0 0
        %970 = vmatpush1.bf16.msra.mxu0 %v936
        %971 = vmatprep.subr.bf16.mxu0 0
        %972 = vmatpush1.bf16.msra.mxu0 %v934
        %973 = vmatprep.subr.bf16.mxu0 0
        %974 = vmatpush2.bf16.msra.mxu0 0
        %975 = vmatprep.subr.bf16.mxu0 0
        %976 = vmatpush2.bf16.msra.mxu0 0
        %977 = vmatprep.subr.bf16.mxu0 0
        %978 = vmatpush2.bf16.msra.mxu0 0
        %979 = vmatprep.subr.bf16.mxu0 0
        %980 = vmatpush2.bf16.msra.mxu0 0
        %981 = vmatprep.subr.bf16.mxu0 0
        %982 = vmatpush2.bf16.msra.mxu0 0
        %983 = vmatprep.subr.bf16.mxu0 0
        %984 = vmatpush2.bf16.msra.mxu0 0
        %985 = vmatprep.subr.bf16.mxu0 0
        %986 = vmatpush2.bf16.msra.mxu0 0
        %987 = vmatprep.subr.bf16.mxu0 0
        %988 = vmatpush2.bf16.msra.mxu0 0
        %989 = vmatprep.mubr.bf16.mxu0 0
        %990 = vmatmul.mubr.bf16.gmra.mxu0 %v946
        %v991 = vpop.f32.mrf.mxu0
        %v992 = vadd.f32 0.0, %v991
        %v993 = vpop.f32.mrf.mxu0
        %v994 = vpop.f32.mrf.mxu0
        %v995 = vadd.f32 0.0, %v994
        %v996 = vpop.f32.mrf.mxu0
        %997 = vmatprep.mubr.bf16.mxu0 0
        %998 = vmatmul.mubr.bf16.gmra.mxu0 %v949
        %v999 = vpop.f32.mrf.mxu0
        %v1000 = vadd.f32 0.0, %v999
        %v1001 = vpop.f32.mrf.mxu0
        %v1002 = vpop.f32.mrf.mxu0
        %v1003 = vadd.f32 0.0, %v1002
        %v1004 = vpop.f32.mrf.mxu0
        %1005 = vmatprep.mubr.bf16.mxu0 0
        %1006 = vmatmul.mubr.bf16.gmra.mxu0 %v952
        %v1007 = vpop.f32.mrf.mxu0
        %v1008 = vadd.f32 0.0, %v1007
        %v1009 = vpop.f32.mrf.mxu0
        %v1010 = vpop.f32.mrf.mxu0
        %v1011 = vadd.f32 0.0, %v1010
        %v1012 = vpop.f32.mrf.mxu0
        %1013 = vmatprep.mubr.bf16.mxu0 0
        %1014 = vmatmul.mubr.bf16.gmra.mxu0 %v955
        %v1015 = vpop.f32.mrf.mxu0
        %v1016 = vadd.f32 0.0, %v1015
        %v1017 = vpop.f32.mrf.mxu0
        %v1018 = vpop.f32.mrf.mxu0
        %v1019 = vadd.f32 0.0, %v1018
        %v1020 = vpop.f32.mrf.mxu0
        %1021 = vdwg.mxu0
        %1022 = vst.msk [vmem:[#allocation2] sm:$0xff] %vm713, %v992
        %1023 = vst.msk [vmem:[#allocation2 + $0x8] sm:$0xff] %vm713, %v995
        %1024 = vst.msk [vmem:[#allocation2 + $0x10] sm:$0xff] %vm713, %v1000
        %1025 = vst.msk [vmem:[#allocation2 + $0x18] sm:$0xff] %vm713, %v1003
        %1026 = vst.msk [vmem:[#allocation2 + $0x20] sm:$0xff] %vm713, %v1008
        %1027 = vst.msk [vmem:[#allocation2 + $0x28] sm:$0xff] %vm713, %v1011
        %1028 = vst.msk [vmem:[#allocation2 + $0x30] sm:$0xff] %vm713, %v1016
        %1029 = vst.msk [vmem:[#allocation2 + $0x38] sm:$0xff] %vm713, %v1019
        %1030 = vrot.lane.b32.xlu0 %v697, 120
        %v1031 = vpop.permute.xlu0 %1030
        %1032 = vrot.lane.b32.xlu0 %v698, 120
        %v1033 = vpop.permute.xlu0 %1032
        %1034 = vrot.lane.b32.xlu0 %v699, 120
        %v1035 = vpop.permute.xlu0 %1034
        %1036 = vrot.lane.b32.xlu0 %v700, 120
        %v1037 = vpop.permute.xlu0 %1036
        %1038 = vrot.lane.b32.xlu0 %v697, 88
        %v1039 = vpop.permute.xlu0 %1038
        %1040 = vrot.lane.b32.xlu0 %v698, 88
        %v1041 = vpop.permute.xlu0 %1040
        %1042 = vrot.lane.b32.xlu0 %v699, 88
        %v1043 = vpop.permute.xlu0 %1042
        %1044 = vrot.lane.b32.xlu0 %v700, 88
        %v1045 = vpop.permute.xlu0 %1044
        %v1047 = vsel %vm713, %v1031, 0
        %v1050 = vsel %vm713, %v1033, 0
        %v1053 = vsel %vm713, %v1035, 0
        %v1056 = vsel %vm713, %v1037, 0
        %v1059 = vsel %vm713, %v1039, 0
        %v1062 = vsel %vm713, %v1041, 0
        %v1065 = vsel %vm713, %v1043, 0
        %v1068 = vsel %vm713, %v1045, 0
        %1070 = vmatprep.subr.bf16.mxu0 0
        %1071 = vmatpush1.bf16.xpose.msra.mxu0 0
        %1072 = vmatprep.subr.bf16.mxu0 0
        %1073 = vmatpush1.bf16.xpose.msra.mxu0 0
        %1074 = vmatprep.subr.bf16.mxu0 0
        %1075 = vmatpush1.bf16.xpose.msra.mxu0 0
        %1076 = vmatprep.subr.bf16.mxu0 0
        %1077 = vmatpush1.bf16.xpose.msra.mxu0 0
        %1078 = vmatprep.subr.bf16.mxu0 0
        %1079 = vmatpush1.bf16.xpose.msra.mxu0 %v1068
        %1080 = vmatprep.subr.bf16.mxu0 0
        %1081 = vmatpush1.bf16.xpose.msra.mxu0 %v1065
        %1082 = vmatprep.subr.bf16.mxu0 0
        %1083 = vmatpush1.bf16.xpose.msra.mxu0 %v1062
        %1084 = vmatprep.subr.bf16.mxu0 0
        %1085 = vmatpush1.bf16.xpose.msra.mxu0 %v1059
        %1086 = vmatprep.subr.bf16.mxu0 0
        %1087 = vmatpush2.bf16.xpose.msra.mxu0 0
        %1088 = vmatprep.subr.bf16.mxu0 0
        %1089 = vmatpush2.bf16.xpose.msra.mxu0 0
        %1090 = vmatprep.subr.bf16.mxu0 0
        %1091 = vmatpush2.bf16.xpose.msra.mxu0 0
        %1092 = vmatprep.subr.bf16.mxu0 0
        %1093 = vmatpush2.bf16.xpose.msra.mxu0 0
        %1094 = vmatprep.subr.bf16.mxu0 0
        %1095 = vmatpush2.bf16.xpose.msra.mxu0 0
        %1096 = vmatprep.subr.bf16.mxu0 0
        %1097 = vmatpush2.bf16.xpose.msra.mxu0 0
        %1098 = vmatprep.subr.bf16.mxu0 0
        %1099 = vmatpush2.bf16.xpose.msra.mxu0 0
        %1100 = vmatprep.subr.bf16.mxu0 0
        %1101 = vmatpush2.bf16.xpose.msra.mxu0 0
        %1102 = vmatprep.mubr.bf16.mxu0 0
        %1103 = vmatmul.mubr.bf16.gmra.mxu0 %v1047
        %v1104 = vpop.f32.mrf.mxu0
        %v1105 = vadd.f32 0.0, %v1104
        %v1106 = vpop.f32.mrf.mxu0
        %v1107 = vpop.f32.mrf.mxu0
        %v1108 = vadd.f32 0.0, %v1107
        %v1109 = vpop.f32.mrf.mxu0
        %1110 = vmatprep.mubr.bf16.mxu0 0
        %1111 = vmatmul.mubr.bf16.gmra.mxu0 %v1050
        %v1112 = vpop.f32.mrf.mxu0
        %v1113 = vadd.f32 0.0, %v1112
        %v1114 = vpop.f32.mrf.mxu0
        %v1115 = vpop.f32.mrf.mxu0
        %v1116 = vadd.f32 0.0, %v1115
        %v1117 = vpop.f32.mrf.mxu0
        %1118 = vmatprep.mubr.bf16.mxu0 0
        %1119 = vmatmul.mubr.bf16.gmra.mxu0 %v1053
        %v1120 = vpop.f32.mrf.mxu0
        %v1121 = vadd.f32 0.0, %v1120
        %v1122 = vpop.f32.mrf.mxu0
        %v1123 = vpop.f32.mrf.mxu0
        %v1124 = vadd.f32 0.0, %v1123
        %v1125 = vpop.f32.mrf.mxu0
        %1126 = vmatprep.mubr.bf16.mxu0 0
        %1127 = vmatmul.mubr.bf16.gmra.mxu0 %v1056
        %v1128 = vpop.f32.mrf.mxu0
        %v1129 = vadd.f32 0.0, %v1128
        %v1130 = vpop.f32.mrf.mxu0
        %v1131 = vpop.f32.mrf.mxu0
        %v1132 = vadd.f32 0.0, %v1131
        %v1133 = vpop.f32.mrf.mxu0
        %1134 = vdwg.mxu0
        %v1135 = vsel %vm803, %v1105, -inf
        %1136 = vmax.xlane.f32.xlu0 %v1135
        %v1137 = vpop.xlane.xlu0 %1136
        %v1138 = vsel %vm803, %v1108, -inf
        %1139 = vmax.xlane.f32.xlu0 %v1138
        %v1140 = vpop.xlane.xlu0 %1139
        %v1141 = vsel %vm803, %v1113, -inf
        %1142 = vmax.xlane.f32.xlu0 %v1141
        %v1143 = vpop.xlane.xlu0 %1142
        %v1144 = vsel %vm803, %v1116, -inf
        %1145 = vmax.xlane.f32.xlu0 %v1144
        %v1146 = vpop.xlane.xlu0 %1145
        %v1147 = vsel %vm803, %v1121, -inf
        %1148 = vmax.xlane.f32.xlu0 %v1147
        %v1149 = vpop.xlane.xlu0 %1148
        %v1150 = vsel %vm803, %v1124, -inf
        %1151 = vmax.xlane.f32.xlu0 %v1150
        %v1152 = vpop.xlane.xlu0 %1151
        %v1153 = vsel %vm803, %v1129, -inf
        %1154 = vmax.xlane.f32.xlu0 %v1153
        %v1155 = vpop.xlane.xlu0 %1154
        %v1156 = vsel %vm803, %v1132, -inf
        %1157 = vmax.xlane.f32.xlu0 %v1156
        %v1158 = vpop.xlane.xlu0 %1157
        %v1159 = vsub.f32 %v1105, %v1137
        %v1160 = vsub.f32 %v1108, %v1140
        %v1161 = vsub.f32 %v1113, %v1143
        %v1162 = vsub.f32 %v1116, %v1146
        %v1163 = vsub.f32 %v1121, %v1149
        %v1164 = vsub.f32 %v1124, %v1152
        %v1165 = vsub.f32 %v1129, %v1155
        %v1166 = vsub.f32 %v1132, %v1158
        %v1167 = vmul.f32 %v1159, 1.442695
        %v1168 = vpow.pop %v1167
        %v1169 = vmul.f32 %v1160, 1.442695
        %v1170 = vpow.pop %v1169
        %v1171 = vmul.f32 %v1161, 1.442695
        %v1172 = vpow.pop %v1171
        %v1173 = vmul.f32 %v1162, 1.442695
        %v1174 = vpow.pop %v1173
        %v1175 = vmul.f32 %v1163, 1.442695
        %v1176 = vpow.pop %v1175
        %v1177 = vmul.f32 %v1164, 1.442695
        %v1178 = vpow.pop %v1177
        %v1179 = vmul.f32 %v1165, 1.442695
        %v1180 = vpow.pop %v1179
        %v1181 = vmul.f32 %v1166, 1.442695
        %v1182 = vpow.pop %v1181
        %v1183 = vsel %vm803, %v1168, 0.0
        %1184 = vadd.xlane.f32.xlu0 %v1183
        %v1185 = vpop.xlane.xlu0 %1184
        %v1186 = vsel %vm803, %v1170, 0.0
        %1187 = vadd.xlane.f32.xlu0 %v1186
        %v1188 = vpop.xlane.xlu0 %1187
        %v1189 = vsel %vm803, %v1172, 0.0
        %1190 = vadd.xlane.f32.xlu0 %v1189
        %v1191 = vpop.xlane.xlu0 %1190
        %v1192 = vsel %vm803, %v1174, 0.0
        %1193 = vadd.xlane.f32.xlu0 %v1192
        %v1194 = vpop.xlane.xlu0 %1193
        %v1195 = vsel %vm803, %v1176, 0.0
        %1196 = vadd.xlane.f32.xlu0 %v1195
        %v1197 = vpop.xlane.xlu0 %1196
        %v1198 = vsel %vm803, %v1178, 0.0
        %1199 = vadd.xlane.f32.xlu0 %v1198
        %v1200 = vpop.xlane.xlu0 %1199
        %v1201 = vsel %vm803, %v1180, 0.0
        %1202 = vadd.xlane.f32.xlu0 %v1201
        %v1203 = vpop.xlane.xlu0 %1202
        %v1204 = vsel %vm803, %v1182, 0.0
        %1205 = vadd.xlane.f32.xlu0 %v1204
        %v1206 = vpop.xlane.xlu0 %1205
        %v1207 = vrcp.pop %v1185
        %v1208 = vrcp.pop %v1188
        %v1209 = vrcp.pop %v1191
        %v1210 = vrcp.pop %v1194
        %v1211 = vrcp.pop %v1197
        %v1212 = vrcp.pop %v1200
        %v1213 = vrcp.pop %v1203
        %v1214 = vrcp.pop %v1206
        %v1215 = vmul.f32 %v1168, %v1207
        %v1216 = vmul.f32 %v1170, %v1208
        %v1217 = vmul.f32 %v1172, %v1209
        %v1218 = vmul.f32 %v1174, %v1210
        %v1219 = vmul.f32 %v1176, %v1211
        %v1220 = vmul.f32 %v1178, %v1212
        %v1221 = vmul.f32 %v1180, %v1213
        %v1222 = vmul.f32 %v1182, %v1214
        %v1223 = vpack.c.bf16 %v1216, %v1215
        %v1224 = vpack.c.bf16 %v1218, %v1217
        %v1225 = vpack.c.bf16 %v1220, %v1219
        %v1226 = vpack.c.bf16 %v1222, %v1221
        %v1231 = vunpack.c.l.b16 %v1223
        %v1232 = vunpack.c.h.b16 %v1223
        %v1233 = vunpack.c.l.b16 %v1224
        %v1234 = vunpack.c.h.b16 %v1224
        %v1235 = vunpack.c.l.b16 %v1225
        %v1236 = vunpack.c.h.b16 %v1225
        %v1237 = vunpack.c.l.b16 %v1226
        %v1238 = vunpack.c.h.b16 %v1226
        %v1239 = vpack.c.b16 %v1231, %v1231
        %v1240 = vpack.c.b16 %v1232, %v1232
        %v1241 = vpack.c.b16 %v1233, %v1233
        %v1242 = vpack.c.b16 %v1234, %v1234
        %v1243 = vpack.c.b16 %v1235, %v1235
        %v1244 = vpack.c.b16 %v1236, %v1236
        %v1245 = vpack.c.b16 %v1237, %v1237
        %v1246 = vpack.c.b16 %v1238, %v1238
        %s1255 = scalar_lea.vmem %s442, 32 [#allocation3]
        %1256 = vst.msk [vmem:[%s1255] sm:$0xf] %vm924, %v1239
        %1257 = vst.msk [vmem:[%s1255 + $0x4] sm:$0xf] %vm924, %v1240
        %1258 = vst.msk [vmem:[%s1255 + $0x8] sm:$0xf] %vm924, %v1241
        %1259 = vst.msk [vmem:[%s1255 + $0xc] sm:$0xf] %vm924, %v1242
        %1260 = vst.msk [vmem:[%s1255 + $0x10] sm:$0xf] %vm924, %v1243
        %1261 = vst.msk [vmem:[%s1255 + $0x14] sm:$0xf] %vm924, %v1244
        %1262 = vst.msk [vmem:[%s1255 + $0x18] sm:$0xf] %vm924, %v1245
        %1263 = vst.msk [vmem:[%s1255 + $0x1c] sm:$0xf] %vm924, %v1246
        %1264 = vrot.lane.b32.xlu0 %v697, 56
        %v1265 = vpop.permute.xlu0 %1264
        %1266 = vrot.lane.b32.xlu0 %v698, 56
        %v1267 = vpop.permute.xlu0 %1266
        %1268 = vrot.lane.b32.xlu0 %v699, 56
        %v1269 = vpop.permute.xlu0 %1268
        %1270 = vrot.lane.b32.xlu0 %v700, 56
        %v1271 = vpop.permute.xlu0 %1270
        %v1277 = vsel %vm803, %v1223, 0
        %v1280 = vsel %vm803, %v1224, 0
        %v1283 = vsel %vm803, %v1225, 0
        %v1286 = vsel %vm803, %v1226, 0
        %1288 = vmatprep.subr.bf16.mxu0 0
        %1289 = vmatpush1.bf16.msra.mxu0 0
        %1290 = vmatprep.subr.bf16.mxu0 0
        %1291 = vmatpush1.bf16.msra.mxu0 0
        %1292 = vmatprep.subr.bf16.mxu0 0
        %1293 = vmatpush1.bf16.msra.mxu0 0
        %1294 = vmatprep.subr.bf16.mxu0 0
        %1295 = vmatpush1.bf16.msra.mxu0 0
        %1296 = vmatprep.subr.bf16.mxu0 0
        %1297 = vmatpush1.bf16.msra.mxu0 %v1271
        %1298 = vmatprep.subr.bf16.mxu0 0
        %1299 = vmatpush1.bf16.msra.mxu0 %v1269
        %1300 = vmatprep.subr.bf16.mxu0 0
        %1301 = vmatpush1.bf16.msra.mxu0 %v1267
        %1302 = vmatprep.subr.bf16.mxu0 0
        %1303 = vmatpush1.bf16.msra.mxu0 %v1265
        %1304 = vmatprep.subr.bf16.mxu0 0
        %1305 = vmatpush2.bf16.msra.mxu0 0
        %1306 = vmatprep.subr.bf16.mxu0 0
        %1307 = vmatpush2.bf16.msra.mxu0 0
        %1308 = vmatprep.subr.bf16.mxu0 0
        %1309 = vmatpush2.bf16.msra.mxu0 0
        %1310 = vmatprep.subr.bf16.mxu0 0
        %1311 = vmatpush2.bf16.msra.mxu0 0
        %1312 = vmatprep.subr.bf16.mxu0 0
        %1313 = vmatpush2.bf16.msra.mxu0 0
        %1314 = vmatprep.subr.bf16.mxu0 0
        %1315 = vmatpush2.bf16.msra.mxu0 0
        %1316 = vmatprep.subr.bf16.mxu0 0
        %1317 = vmatpush2.bf16.msra.mxu0 0
        %1318 = vmatprep.subr.bf16.mxu0 0
        %1319 = vmatpush2.bf16.msra.mxu0 0
        %1320 = vmatprep.mubr.bf16.mxu0 0
        %1321 = vmatmul.mubr.bf16.gmra.mxu0 %v1277
        %v1322 = vpop.f32.mrf.mxu0
        %v1323 = vadd.f32 0.0, %v1322
        %v1324 = vpop.f32.mrf.mxu0
        %v1325 = vpop.f32.mrf.mxu0
        %v1326 = vadd.f32 0.0, %v1325
        %v1327 = vpop.f32.mrf.mxu0
        %1328 = vmatprep.mubr.bf16.mxu0 0
        %1329 = vmatmul.mubr.bf16.gmra.mxu0 %v1280
        %v1330 = vpop.f32.mrf.mxu0
        %v1331 = vadd.f32 0.0, %v1330
        %v1332 = vpop.f32.mrf.mxu0
        %v1333 = vpop.f32.mrf.mxu0
        %v1334 = vadd.f32 0.0, %v1333
        %v1335 = vpop.f32.mrf.mxu0
        %1336 = vmatprep.mubr.bf16.mxu0 0
        %1337 = vmatmul.mubr.bf16.gmra.mxu0 %v1283
        %v1338 = vpop.f32.mrf.mxu0
        %v1339 = vadd.f32 0.0, %v1338
        %v1340 = vpop.f32.mrf.mxu0
        %v1341 = vpop.f32.mrf.mxu0
        %v1342 = vadd.f32 0.0, %v1341
        %v1343 = vpop.f32.mrf.mxu0
        %1344 = vmatprep.mubr.bf16.mxu0 0
        %1345 = vmatmul.mubr.bf16.gmra.mxu0 %v1286
        %v1346 = vpop.f32.mrf.mxu0
        %v1347 = vadd.f32 0.0, %v1346
        %v1348 = vpop.f32.mrf.mxu0
        %v1349 = vpop.f32.mrf.mxu0
        %v1350 = vadd.f32 0.0, %v1349
        %v1351 = vpop.f32.mrf.mxu0
        %1352 = vdwg.mxu0
        %1361 = vrot.lane.b32.xlu0 %v1323, 8
        %v1362 = vpop.permute.xlu0 %1361
        %1363 = vrot.lane.b32.xlu0 %v1326, 8
        %v1364 = vpop.permute.xlu0 %1363
        %1365 = vrot.lane.b32.xlu0 %v1331, 8
        %v1366 = vpop.permute.xlu0 %1365
        %1367 = vrot.lane.b32.xlu0 %v1334, 8
        %v1368 = vpop.permute.xlu0 %1367
        %1369 = vrot.lane.b32.xlu0 %v1339, 8
        %v1370 = vpop.permute.xlu0 %1369
        %1371 = vrot.lane.b32.xlu0 %v1342, 8
        %v1372 = vpop.permute.xlu0 %1371
        %1373 = vrot.lane.b32.xlu0 %v1347, 8
        %v1374 = vpop.permute.xlu0 %1373
        %1375 = vrot.lane.b32.xlu0 %v1350, 8
        %v1376 = vpop.permute.xlu0 %1375
        %vm1385 = vcmask 130112
        %1386 = vst.msk [vmem:[#allocation2] sm:$0xff] %vm1385, %v1362
        %1387 = vst.msk [vmem:[#allocation2 + $0x8] sm:$0xff] %vm1385, %v1364
        %1388 = vst.msk [vmem:[#allocation2 + $0x10] sm:$0xff] %vm1385, %v1366
        %1389 = vst.msk [vmem:[#allocation2 + $0x18] sm:$0xff] %vm1385, %v1368
        %1390 = vst.msk [vmem:[#allocation2 + $0x20] sm:$0xff] %vm1385, %v1370
        %1391 = vst.msk [vmem:[#allocation2 + $0x28] sm:$0xff] %vm1385, %v1372
        %1392 = vst.msk [vmem:[#allocation2 + $0x30] sm:$0xff] %vm1385, %v1374
        %1393 = vst.msk [vmem:[#allocation2 + $0x38] sm:$0xff] %vm1385, %v1376
        %1394 = vrot.lane.b32.xlu0 %v697, 112
        %v1395 = vpop.permute.xlu0 %1394
        %1396 = vrot.lane.b32.xlu0 %v698, 112
        %v1397 = vpop.permute.xlu0 %1396
        %1398 = vrot.lane.b32.xlu0 %v699, 112
        %v1399 = vpop.permute.xlu0 %1398
        %1400 = vrot.lane.b32.xlu0 %v700, 112
        %v1401 = vpop.permute.xlu0 %1400
        %1402 = vrot.lane.b32.xlu0 %v697, 80
        %v1403 = vpop.permute.xlu0 %1402
        %1404 = vrot.lane.b32.xlu0 %v698, 80
        %v1405 = vpop.permute.xlu0 %1404
        %1406 = vrot.lane.b32.xlu0 %v699, 80
        %v1407 = vpop.permute.xlu0 %1406
        %1408 = vrot.lane.b32.xlu0 %v700, 80
        %v1409 = vpop.permute.xlu0 %1408
        %v1411 = vsel %vm713, %v1395, 0
        %v1414 = vsel %vm713, %v1397, 0
        %v1417 = vsel %vm713, %v1399, 0
        %v1420 = vsel %vm713, %v1401, 0
        %v1423 = vsel %vm713, %v1403, 0
        %v1426 = vsel %vm713, %v1405, 0
        %v1429 = vsel %vm713, %v1407, 0
        %v1432 = vsel %vm713, %v1409, 0
        %1434 = vmatprep.subr.bf16.mxu0 0
        %1435 = vmatpush1.bf16.xpose.msra.mxu0 0
        %1436 = vmatprep.subr.bf16.mxu0 0
        %1437 = vmatpush1.bf16.xpose.msra.mxu0 0
        %1438 = vmatprep.subr.bf16.mxu0 0
        %1439 = vmatpush1.bf16.xpose.msra.mxu0 0
        %1440 = vmatprep.subr.bf16.mxu0 0
        %1441 = vmatpush1.bf16.xpose.msra.mxu0 0
        %1442 = vmatprep.subr.bf16.mxu0 0
        %1443 = vmatpush1.bf16.xpose.msra.mxu0 %v1432
        %1444 = vmatprep.subr.bf16.mxu0 0
        %1445 = vmatpush1.bf16.xpose.msra.mxu0 %v1429
        %1446 = vmatprep.subr.bf16.mxu0 0
        %1447 = vmatpush1.bf16.xpose.msra.mxu0 %v1426
        %1448 = vmatprep.subr.bf16.mxu0 0
        %1449 = vmatpush1.bf16.xpose.msra.mxu0 %v1423
        %1450 = vmatprep.subr.bf16.mxu0 0
        %1451 = vmatpush2.bf16.xpose.msra.mxu0 0
        %1452 = vmatprep.subr.bf16.mxu0 0
        %1453 = vmatpush2.bf16.xpose.msra.mxu0 0
        %1454 = vmatprep.subr.bf16.mxu0 0
        %1455 = vmatpush2.bf16.xpose.msra.mxu0 0
        %1456 = vmatprep.subr.bf16.mxu0 0
        %1457 = vmatpush2.bf16.xpose.msra.mxu0 0
        %1458 = vmatprep.subr.bf16.mxu0 0
        %1459 = vmatpush2.bf16.xpose.msra.mxu0 0
        %1460 = vmatprep.subr.bf16.mxu0 0
        %1461 = vmatpush2.bf16.xpose.msra.mxu0 0
        %1462 = vmatprep.subr.bf16.mxu0 0
        %1463 = vmatpush2.bf16.xpose.msra.mxu0 0
        %1464 = vmatprep.subr.bf16.mxu0 0
        %1465 = vmatpush2.bf16.xpose.msra.mxu0 0
        %1466 = vmatprep.mubr.bf16.mxu0 0
        %1467 = vmatmul.mubr.bf16.gmra.mxu0 %v1411
        %v1468 = vpop.f32.mrf.mxu0
        %v1469 = vadd.f32 0.0, %v1468
        %v1470 = vpop.f32.mrf.mxu0
        %v1471 = vpop.f32.mrf.mxu0
        %v1472 = vadd.f32 0.0, %v1471
        %v1473 = vpop.f32.mrf.mxu0
        %1474 = vmatprep.mubr.bf16.mxu0 0
        %1475 = vmatmul.mubr.bf16.gmra.mxu0 %v1414
        %v1476 = vpop.f32.mrf.mxu0
        %v1477 = vadd.f32 0.0, %v1476
        %v1478 = vpop.f32.mrf.mxu0
        %v1479 = vpop.f32.mrf.mxu0
        %v1480 = vadd.f32 0.0, %v1479
        %v1481 = vpop.f32.mrf.mxu0
        %1482 = vmatprep.mubr.bf16.mxu0 0
        %1483 = vmatmul.mubr.bf16.gmra.mxu0 %v1417
        %v1484 = vpop.f32.mrf.mxu0
        %v1485 = vadd.f32 0.0, %v1484
        %v1486 = vpop.f32.mrf.mxu0
        %v1487 = vpop.f32.mrf.mxu0
        %v1488 = vadd.f32 0.0, %v1487
        %v1489 = vpop.f32.mrf.mxu0
        %1490 = vmatprep.mubr.bf16.mxu0 0
        %1491 = vmatmul.mubr.bf16.gmra.mxu0 %v1420
        %v1492 = vpop.f32.mrf.mxu0
        %v1493 = vadd.f32 0.0, %v1492
        %v1494 = vpop.f32.mrf.mxu0
        %v1495 = vpop.f32.mrf.mxu0
        %v1496 = vadd.f32 0.0, %v1495
        %v1497 = vpop.f32.mrf.mxu0
        %1498 = vdwg.mxu0
        %v1499 = vsel %vm803, %v1469, -inf
        %1500 = vmax.xlane.f32.xlu0 %v1499
        %v1501 = vpop.xlane.xlu0 %1500
        %v1502 = vsel %vm803, %v1472, -inf
        %1503 = vmax.xlane.f32.xlu0 %v1502
        %v1504 = vpop.xlane.xlu0 %1503
        %v1505 = vsel %vm803, %v1477, -inf
        %1506 = vmax.xlane.f32.xlu0 %v1505
        %v1507 = vpop.xlane.xlu0 %1506
        %v1508 = vsel %vm803, %v1480, -inf
        %1509 = vmax.xlane.f32.xlu0 %v1508
        %v1510 = vpop.xlane.xlu0 %1509
        %v1511 = vsel %vm803, %v1485, -inf
        %1512 = vmax.xlane.f32.xlu0 %v1511
        %v1513 = vpop.xlane.xlu0 %1512
        %v1514 = vsel %vm803, %v1488, -inf
        %1515 = vmax.xlane.f32.xlu0 %v1514
        %v1516 = vpop.xlane.xlu0 %1515
        %v1517 = vsel %vm803, %v1493, -inf
        %1518 = vmax.xlane.f32.xlu0 %v1517
        %v1519 = vpop.xlane.xlu0 %1518
        %v1520 = vsel %vm803, %v1496, -inf
        %1521 = vmax.xlane.f32.xlu0 %v1520
        %v1522 = vpop.xlane.xlu0 %1521
        %v1523 = vsub.f32 %v1469, %v1501
        %v1524 = vsub.f32 %v1472, %v1504
        %v1525 = vsub.f32 %v1477, %v1507
        %v1526 = vsub.f32 %v1480, %v1510
        %v1527 = vsub.f32 %v1485, %v1513
        %v1528 = vsub.f32 %v1488, %v1516
        %v1529 = vsub.f32 %v1493, %v1519
        %v1530 = vsub.f32 %v1496, %v1522
        %v1531 = vmul.f32 %v1523, 1.442695
        %v1532 = vpow.pop %v1531
        %v1533 = vmul.f32 %v1524, 1.442695
        %v1534 = vpow.pop %v1533
        %v1535 = vmul.f32 %v1525, 1.442695
        %v1536 = vpow.pop %v1535
        %v1537 = vmul.f32 %v1526, 1.442695
        %v1538 = vpow.pop %v1537
        %v1539 = vmul.f32 %v1527, 1.442695
        %v1540 = vpow.pop %v1539
        %v1541 = vmul.f32 %v1528, 1.442695
        %v1542 = vpow.pop %v1541
        %v1543 = vmul.f32 %v1529, 1.442695
        %v1544 = vpow.pop %v1543
        %v1545 = vmul.f32 %v1530, 1.442695
        %v1546 = vpow.pop %v1545
        %v1547 = vsel %vm803, %v1532, 0.0
        %1548 = vadd.xlane.f32.xlu0 %v1547
        %v1549 = vpop.xlane.xlu0 %1548
        %v1550 = vsel %vm803, %v1534, 0.0
        %1551 = vadd.xlane.f32.xlu0 %v1550
        %v1552 = vpop.xlane.xlu0 %1551
        %v1553 = vsel %vm803, %v1536, 0.0
        %1554 = vadd.xlane.f32.xlu0 %v1553
        %v1555 = vpop.xlane.xlu0 %1554
        %v1556 = vsel %vm803, %v1538, 0.0
        %1557 = vadd.xlane.f32.xlu0 %v1556
        %v1558 = vpop.xlane.xlu0 %1557
        %v1559 = vsel %vm803, %v1540, 0.0
        %1560 = vadd.xlane.f32.xlu0 %v1559
        %v1561 = vpop.xlane.xlu0 %1560
        %v1562 = vsel %vm803, %v1542, 0.0
        %1563 = vadd.xlane.f32.xlu0 %v1562
        %v1564 = vpop.xlane.xlu0 %1563
        %v1565 = vsel %vm803, %v1544, 0.0
        %1566 = vadd.xlane.f32.xlu0 %v1565
        %v1567 = vpop.xlane.xlu0 %1566
        %v1568 = vsel %vm803, %v1546, 0.0
        %1569 = vadd.xlane.f32.xlu0 %v1568
        %v1570 = vpop.xlane.xlu0 %1569
        %v1571 = vrcp.pop %v1549
        %v1572 = vrcp.pop %v1552
        %v1573 = vrcp.pop %v1555
        %v1574 = vrcp.pop %v1558
        %v1575 = vrcp.pop %v1561
        %v1576 = vrcp.pop %v1564
        %v1577 = vrcp.pop %v1567
        %v1578 = vrcp.pop %v1570
        %v1579 = vmul.f32 %v1532, %v1571
        %v1580 = vmul.f32 %v1534, %v1572
        %v1581 = vmul.f32 %v1536, %v1573
        %v1582 = vmul.f32 %v1538, %v1574
        %v1583 = vmul.f32 %v1540, %v1575
        %v1584 = vmul.f32 %v1542, %v1576
        %v1585 = vmul.f32 %v1544, %v1577
        %v1586 = vmul.f32 %v1546, %v1578
        %v1587 = vpack.c.bf16 %v1580, %v1579
        %v1588 = vpack.c.bf16 %v1582, %v1581
        %v1589 = vpack.c.bf16 %v1584, %v1583
        %v1590 = vpack.c.bf16 %v1586, %v1585
        %v1595 = vunpack.c.l.b16 %v1587
        %v1596 = vunpack.c.h.b16 %v1587
        %v1597 = vunpack.c.l.b16 %v1588
        %v1598 = vunpack.c.h.b16 %v1588
        %v1599 = vunpack.c.l.b16 %v1589
        %v1600 = vunpack.c.h.b16 %v1589
        %v1601 = vunpack.c.l.b16 %v1590
        %v1602 = vunpack.c.h.b16 %v1590
        %v1603 = vpack.c.b16 %v1595, %v1595
        %v1604 = vpack.c.b16 %v1596, %v1596
        %v1605 = vpack.c.b16 %v1597, %v1597
        %v1606 = vpack.c.b16 %v1598, %v1598
        %v1607 = vpack.c.b16 %v1599, %v1599
        %v1608 = vpack.c.b16 %v1600, %v1600
        %v1609 = vpack.c.b16 %v1601, %v1601
        %v1610 = vpack.c.b16 %v1602, %v1602
        %s1619 = scalar_lea.vmem %s442, 64 [#allocation3]
        %1620 = vst.msk [vmem:[%s1619] sm:$0xf] %vm924, %v1603
        %1621 = vst.msk [vmem:[%s1619 + $0x4] sm:$0xf] %vm924, %v1604
        %1622 = vst.msk [vmem:[%s1619 + $0x8] sm:$0xf] %vm924, %v1605
        %1623 = vst.msk [vmem:[%s1619 + $0xc] sm:$0xf] %vm924, %v1606
        %1624 = vst.msk [vmem:[%s1619 + $0x10] sm:$0xf] %vm924, %v1607
        %1625 = vst.msk [vmem:[%s1619 + $0x14] sm:$0xf] %vm924, %v1608
        %1626 = vst.msk [vmem:[%s1619 + $0x18] sm:$0xf] %vm924, %v1609
        %1627 = vst.msk [vmem:[%s1619 + $0x1c] sm:$0xf] %vm924, %v1610
        %1628 = vrot.lane.b32.xlu0 %v697, 48
        %v1629 = vpop.permute.xlu0 %1628
        %1630 = vrot.lane.b32.xlu0 %v698, 48
        %v1631 = vpop.permute.xlu0 %1630
        %1632 = vrot.lane.b32.xlu0 %v699, 48
        %v1633 = vpop.permute.xlu0 %1632
        %1634 = vrot.lane.b32.xlu0 %v700, 48
        %v1635 = vpop.permute.xlu0 %1634
        %v1641 = vsel %vm803, %v1587, 0
        %v1644 = vsel %vm803, %v1588, 0
        %v1647 = vsel %vm803, %v1589, 0
        %v1650 = vsel %vm803, %v1590, 0
        %1652 = vmatprep.subr.bf16.mxu0 0
        %1653 = vmatpush1.bf16.msra.mxu0 0
        %1654 = vmatprep.subr.bf16.mxu0 0
        %1655 = vmatpush1.bf16.msra.mxu0 0
        %1656 = vmatprep.subr.bf16.mxu0 0
        %1657 = vmatpush1.bf16.msra.mxu0 0
        %1658 = vmatprep.subr.bf16.mxu0 0
        %1659 = vmatpush1.bf16.msra.mxu0 0
        %1660 = vmatprep.subr.bf16.mxu0 0
        %1661 = vmatpush1.bf16.msra.mxu0 %v1635
        %1662 = vmatprep.subr.bf16.mxu0 0
        %1663 = vmatpush1.bf16.msra.mxu0 %v1633
        %1664 = vmatprep.subr.bf16.mxu0 0
        %1665 = vmatpush1.bf16.msra.mxu0 %v1631
        %1666 = vmatprep.subr.bf16.mxu0 0
        %1667 = vmatpush1.bf16.msra.mxu0 %v1629
        %1668 = vmatprep.subr.bf16.mxu0 0
        %1669 = vmatpush2.bf16.msra.mxu0 0
        %1670 = vmatprep.subr.bf16.mxu0 0
        %1671 = vmatpush2.bf16.msra.mxu0 0
        %1672 = vmatprep.subr.bf16.mxu0 0
        %1673 = vmatpush2.bf16.msra.mxu0 0
        %1674 = vmatprep.subr.bf16.mxu0 0
        %1675 = vmatpush2.bf16.msra.mxu0 0
        %1676 = vmatprep.subr.bf16.mxu0 0
        %1677 = vmatpush2.bf16.msra.mxu0 0
        %1678 = vmatprep.subr.bf16.mxu0 0
        %1679 = vmatpush2.bf16.msra.mxu0 0
        %1680 = vmatprep.subr.bf16.mxu0 0
        %1681 = vmatpush2.bf16.msra.mxu0 0
        %1682 = vmatprep.subr.bf16.mxu0 0
        %1683 = vmatpush2.bf16.msra.mxu0 0
        %1684 = vmatprep.mubr.bf16.mxu0 0
        %1685 = vmatmul.mubr.bf16.gmra.mxu0 %v1641
        %v1686 = vpop.f32.mrf.mxu0
        %v1687 = vadd.f32 0.0, %v1686
        %v1688 = vpop.f32.mrf.mxu0
        %v1689 = vpop.f32.mrf.mxu0
        %v1690 = vadd.f32 0.0, %v1689
        %v1691 = vpop.f32.mrf.mxu0
        %1692 = vmatprep.mubr.bf16.mxu0 0
        %1693 = vmatmul.mubr.bf16.gmra.mxu0 %v1644
        %v1694 = vpop.f32.mrf.mxu0
        %v1695 = vadd.f32 0.0, %v1694
        %v1696 = vpop.f32.mrf.mxu0
        %v1697 = vpop.f32.mrf.mxu0
        %v1698 = vadd.f32 0.0, %v1697
        %v1699 = vpop.f32.mrf.mxu0
        %1700 = vmatprep.mubr.bf16.mxu0 0
        %1701 = vmatmul.mubr.bf16.gmra.mxu0 %v1647
        %v1702 = vpop.f32.mrf.mxu0
        %v1703 = vadd.f32 0.0, %v1702
        %v1704 = vpop.f32.mrf.mxu0
        %v1705 = vpop.f32.mrf.mxu0
        %v1706 = vadd.f32 0.0, %v1705
        %v1707 = vpop.f32.mrf.mxu0
        %1708 = vmatprep.mubr.bf16.mxu0 0
        %1709 = vmatmul.mubr.bf16.gmra.mxu0 %v1650
        %v1710 = vpop.f32.mrf.mxu0
        %v1711 = vadd.f32 0.0, %v1710
        %v1712 = vpop.f32.mrf.mxu0
        %v1713 = vpop.f32.mrf.mxu0
        %v1714 = vadd.f32 0.0, %v1713
        %v1715 = vpop.f32.mrf.mxu0
        %1716 = vdwg.mxu0
        %1725 = vrot.lane.b32.xlu0 %v1687, 16
        %v1726 = vpop.permute.xlu0 %1725
        %1727 = vrot.lane.b32.xlu0 %v1690, 16
        %v1728 = vpop.permute.xlu0 %1727
        %1729 = vrot.lane.b32.xlu0 %v1695, 16
        %v1730 = vpop.permute.xlu0 %1729
        %1731 = vrot.lane.b32.xlu0 %v1698, 16
        %v1732 = vpop.permute.xlu0 %1731
        %1733 = vrot.lane.b32.xlu0 %v1703, 16
        %v1734 = vpop.permute.xlu0 %1733
        %1735 = vrot.lane.b32.xlu0 %v1706, 16
        %v1736 = vpop.permute.xlu0 %1735
        %1737 = vrot.lane.b32.xlu0 %v1711, 16
        %v1738 = vpop.permute.xlu0 %1737
        %1739 = vrot.lane.b32.xlu0 %v1714, 16
        %v1740 = vpop.permute.xlu0 %1739
        %vm1749 = vcmask 195712
        %1750 = vst.msk [vmem:[#allocation2] sm:$0xff] %vm1749, %v1726
        %1751 = vst.msk [vmem:[#allocation2 + $0x8] sm:$0xff] %vm1749, %v1728
        %1752 = vst.msk [vmem:[#allocation2 + $0x10] sm:$0xff] %vm1749, %v1730
        %1753 = vst.msk [vmem:[#allocation2 + $0x18] sm:$0xff] %vm1749, %v1732
        %1754 = vst.msk [vmem:[#allocation2 + $0x20] sm:$0xff] %vm1749, %v1734
        %1755 = vst.msk [vmem:[#allocation2 + $0x28] sm:$0xff] %vm1749, %v1736
        %1756 = vst.msk [vmem:[#allocation2 + $0x30] sm:$0xff] %vm1749, %v1738
        %1757 = vst.msk [vmem:[#allocation2 + $0x38] sm:$0xff] %vm1749, %v1740
        %1758 = vrot.lane.b32.xlu0 %v697, 104
        %v1759 = vpop.permute.xlu0 %1758
        %1760 = vrot.lane.b32.xlu0 %v698, 104
        %v1761 = vpop.permute.xlu0 %1760
        %1762 = vrot.lane.b32.xlu0 %v699, 104
        %v1763 = vpop.permute.xlu0 %1762
        %1764 = vrot.lane.b32.xlu0 %v700, 104
        %v1765 = vpop.permute.xlu0 %1764
        %1766 = vrot.lane.b32.xlu0 %v697, 72
        %v1767 = vpop.permute.xlu0 %1766
        %1768 = vrot.lane.b32.xlu0 %v698, 72
        %v1769 = vpop.permute.xlu0 %1768
        %1770 = vrot.lane.b32.xlu0 %v699, 72
        %v1771 = vpop.permute.xlu0 %1770
        %1772 = vrot.lane.b32.xlu0 %v700, 72
        %v1773 = vpop.permute.xlu0 %1772
        %v1775 = vsel %vm713, %v1759, 0
        %v1778 = vsel %vm713, %v1761, 0
        %v1781 = vsel %vm713, %v1763, 0
        %v1784 = vsel %vm713, %v1765, 0
        %v1787 = vsel %vm713, %v1767, 0
        %v1790 = vsel %vm713, %v1769, 0
        %v1793 = vsel %vm713, %v1771, 0
        %v1796 = vsel %vm713, %v1773, 0
        %1798 = vmatprep.subr.bf16.mxu0 0
        %1799 = vmatpush1.bf16.xpose.msra.mxu0 0
        %1800 = vmatprep.subr.bf16.mxu0 0
        %1801 = vmatpush1.bf16.xpose.msra.mxu0 0
        %1802 = vmatprep.subr.bf16.mxu0 0
        %1803 = vmatpush1.bf16.xpose.msra.mxu0 0
        %1804 = vmatprep.subr.bf16.mxu0 0
        %1805 = vmatpush1.bf16.xpose.msra.mxu0 0
        %1806 = vmatprep.subr.bf16.mxu0 0
        %1807 = vmatpush1.bf16.xpose.msra.mxu0 %v1796
        %1808 = vmatprep.subr.bf16.mxu0 0
        %1809 = vmatpush1.bf16.xpose.msra.mxu0 %v1793
        %1810 = vmatprep.subr.bf16.mxu0 0
        %1811 = vmatpush1.bf16.xpose.msra.mxu0 %v1790
        %1812 = vmatprep.subr.bf16.mxu0 0
        %1813 = vmatpush1.bf16.xpose.msra.mxu0 %v1787
        %1814 = vmatprep.subr.bf16.mxu0 0
        %1815 = vmatpush2.bf16.xpose.msra.mxu0 0
        %1816 = vmatprep.subr.bf16.mxu0 0
        %1817 = vmatpush2.bf16.xpose.msra.mxu0 0
        %1818 = vmatprep.subr.bf16.mxu0 0
        %1819 = vmatpush2.bf16.xpose.msra.mxu0 0
        %1820 = vmatprep.subr.bf16.mxu0 0
        %1821 = vmatpush2.bf16.xpose.msra.mxu0 0
        %1822 = vmatprep.subr.bf16.mxu0 0
        %1823 = vmatpush2.bf16.xpose.msra.mxu0 0
        %1824 = vmatprep.subr.bf16.mxu0 0
        %1825 = vmatpush2.bf16.xpose.msra.mxu0 0
        %1826 = vmatprep.subr.bf16.mxu0 0
        %1827 = vmatpush2.bf16.xpose.msra.mxu0 0
        %1828 = vmatprep.subr.bf16.mxu0 0
        %1829 = vmatpush2.bf16.xpose.msra.mxu0 0
        %1830 = vmatprep.mubr.bf16.mxu0 0
        %1831 = vmatmul.mubr.bf16.gmra.mxu0 %v1775
        %v1832 = vpop.f32.mrf.mxu0
        %v1833 = vadd.f32 0.0, %v1832
        %v1834 = vpop.f32.mrf.mxu0
        %v1835 = vpop.f32.mrf.mxu0
        %v1836 = vadd.f32 0.0, %v1835
        %v1837 = vpop.f32.mrf.mxu0
        %1838 = vmatprep.mubr.bf16.mxu0 0
        %1839 = vmatmul.mubr.bf16.gmra.mxu0 %v1778
        %v1840 = vpop.f32.mrf.mxu0
        %v1841 = vadd.f32 0.0, %v1840
        %v1842 = vpop.f32.mrf.mxu0
        %v1843 = vpop.f32.mrf.mxu0
        %v1844 = vadd.f32 0.0, %v1843
        %v1845 = vpop.f32.mrf.mxu0
        %1846 = vmatprep.mubr.bf16.mxu0 0
        %1847 = vmatmul.mubr.bf16.gmra.mxu0 %v1781
        %v1848 = vpop.f32.mrf.mxu0
        %v1849 = vadd.f32 0.0, %v1848
        %v1850 = vpop.f32.mrf.mxu0
        %v1851 = vpop.f32.mrf.mxu0
        %v1852 = vadd.f32 0.0, %v1851
        %v1853 = vpop.f32.mrf.mxu0
        %1854 = vmatprep.mubr.bf16.mxu0 0
        %1855 = vmatmul.mubr.bf16.gmra.mxu0 %v1784
        %v1856 = vpop.f32.mrf.mxu0
        %v1857 = vadd.f32 0.0, %v1856
        %v1858 = vpop.f32.mrf.mxu0
        %v1859 = vpop.f32.mrf.mxu0
        %v1860 = vadd.f32 0.0, %v1859
        %v1861 = vpop.f32.mrf.mxu0
        %1862 = vdwg.mxu0
        %v1863 = vsel %vm803, %v1833, -inf
        %1864 = vmax.xlane.f32.xlu0 %v1863
        %v1865 = vpop.xlane.xlu0 %1864
        %v1866 = vsel %vm803, %v1836, -inf
        %1867 = vmax.xlane.f32.xlu0 %v1866
        %v1868 = vpop.xlane.xlu0 %1867
        %v1869 = vsel %vm803, %v1841, -inf
        %1870 = vmax.xlane.f32.xlu0 %v1869
        %v1871 = vpop.xlane.xlu0 %1870
        %v1872 = vsel %vm803, %v1844, -inf
        %1873 = vmax.xlane.f32.xlu0 %v1872
        %v1874 = vpop.xlane.xlu0 %1873
        %v1875 = vsel %vm803, %v1849, -inf
        %1876 = vmax.xlane.f32.xlu0 %v1875
        %v1877 = vpop.xlane.xlu0 %1876
        %v1878 = vsel %vm803, %v1852, -inf
        %1879 = vmax.xlane.f32.xlu0 %v1878
        %v1880 = vpop.xlane.xlu0 %1879
        %v1881 = vsel %vm803, %v1857, -inf
        %1882 = vmax.xlane.f32.xlu0 %v1881
        %v1883 = vpop.xlane.xlu0 %1882
        %v1884 = vsel %vm803, %v1860, -inf
        %1885 = vmax.xlane.f32.xlu0 %v1884
        %v1886 = vpop.xlane.xlu0 %1885
        %v1887 = vsub.f32 %v1833, %v1865
        %v1888 = vsub.f32 %v1836, %v1868
        %v1889 = vsub.f32 %v1841, %v1871
        %v1890 = vsub.f32 %v1844, %v1874
        %v1891 = vsub.f32 %v1849, %v1877
        %v1892 = vsub.f32 %v1852, %v1880
        %v1893 = vsub.f32 %v1857, %v1883
        %v1894 = vsub.f32 %v1860, %v1886
        %v1895 = vmul.f32 %v1887, 1.442695
        %v1896 = vpow.pop %v1895
        %v1897 = vmul.f32 %v1888, 1.442695
        %v1898 = vpow.pop %v1897
        %v1899 = vmul.f32 %v1889, 1.442695
        %v1900 = vpow.pop %v1899
        %v1901 = vmul.f32 %v1890, 1.442695
        %v1902 = vpow.pop %v1901
        %v1903 = vmul.f32 %v1891, 1.442695
        %v1904 = vpow.pop %v1903
        %v1905 = vmul.f32 %v1892, 1.442695
        %v1906 = vpow.pop %v1905
        %v1907 = vmul.f32 %v1893, 1.442695
        %v1908 = vpow.pop %v1907
        %v1909 = vmul.f32 %v1894, 1.442695
        %v1910 = vpow.pop %v1909
        %v1911 = vsel %vm803, %v1896, 0.0
        %1912 = vadd.xlane.f32.xlu0 %v1911
        %v1913 = vpop.xlane.xlu0 %1912
        %v1914 = vsel %vm803, %v1898, 0.0
        %1915 = vadd.xlane.f32.xlu0 %v1914
        %v1916 = vpop.xlane.xlu0 %1915
        %v1917 = vsel %vm803, %v1900, 0.0
        %1918 = vadd.xlane.f32.xlu0 %v1917
        %v1919 = vpop.xlane.xlu0 %1918
        %v1920 = vsel %vm803, %v1902, 0.0
        %1921 = vadd.xlane.f32.xlu0 %v1920
        %v1922 = vpop.xlane.xlu0 %1921
        %v1923 = vsel %vm803, %v1904, 0.0
        %1924 = vadd.xlane.f32.xlu0 %v1923
        %v1925 = vpop.xlane.xlu0 %1924
        %v1926 = vsel %vm803, %v1906, 0.0
        %1927 = vadd.xlane.f32.xlu0 %v1926
        %v1928 = vpop.xlane.xlu0 %1927
        %v1929 = vsel %vm803, %v1908, 0.0
        %1930 = vadd.xlane.f32.xlu0 %v1929
        %v1931 = vpop.xlane.xlu0 %1930
        %v1932 = vsel %vm803, %v1910, 0.0
        %1933 = vadd.xlane.f32.xlu0 %v1932
        %v1934 = vpop.xlane.xlu0 %1933
        %v1935 = vrcp.pop %v1913
        %v1936 = vrcp.pop %v1916
        %v1937 = vrcp.pop %v1919
        %v1938 = vrcp.pop %v1922
        %v1939 = vrcp.pop %v1925
        %v1940 = vrcp.pop %v1928
        %v1941 = vrcp.pop %v1931
        %v1942 = vrcp.pop %v1934
        %v1943 = vmul.f32 %v1896, %v1935
        %v1944 = vmul.f32 %v1898, %v1936
        %v1945 = vmul.f32 %v1900, %v1937
        %v1946 = vmul.f32 %v1902, %v1938
        %v1947 = vmul.f32 %v1904, %v1939
        %v1948 = vmul.f32 %v1906, %v1940
        %v1949 = vmul.f32 %v1908, %v1941
        %v1950 = vmul.f32 %v1910, %v1942
        %v1951 = vpack.c.bf16 %v1944, %v1943
        %v1952 = vpack.c.bf16 %v1946, %v1945
        %v1953 = vpack.c.bf16 %v1948, %v1947
        %v1954 = vpack.c.bf16 %v1950, %v1949
        %v1959 = vunpack.c.l.b16 %v1951
        %v1960 = vunpack.c.h.b16 %v1951
        %v1961 = vunpack.c.l.b16 %v1952
        %v1962 = vunpack.c.h.b16 %v1952
        %v1963 = vunpack.c.l.b16 %v1953
        %v1964 = vunpack.c.h.b16 %v1953
        %v1965 = vunpack.c.l.b16 %v1954
        %v1966 = vunpack.c.h.b16 %v1954
        %v1967 = vpack.c.b16 %v1959, %v1959
        %v1968 = vpack.c.b16 %v1960, %v1960
        %v1969 = vpack.c.b16 %v1961, %v1961
        %v1970 = vpack.c.b16 %v1962, %v1962
        %v1971 = vpack.c.b16 %v1963, %v1963
        %v1972 = vpack.c.b16 %v1964, %v1964
        %v1973 = vpack.c.b16 %v1965, %v1965
        %v1974 = vpack.c.b16 %v1966, %v1966
        %s1983 = scalar_lea.vmem %s442, 96 [#allocation3]
        %1984 = vst.msk [vmem:[%s1983] sm:$0xf] %vm924, %v1967
        %1985 = vst.msk [vmem:[%s1983 + $0x4] sm:$0xf] %vm924, %v1968
        %1986 = vst.msk [vmem:[%s1983 + $0x8] sm:$0xf] %vm924, %v1969
        %1987 = vst.msk [vmem:[%s1983 + $0xc] sm:$0xf] %vm924, %v1970
        %1988 = vst.msk [vmem:[%s1983 + $0x10] sm:$0xf] %vm924, %v1971
        %1989 = vst.msk [vmem:[%s1983 + $0x14] sm:$0xf] %vm924, %v1972
        %1990 = vst.msk [vmem:[%s1983 + $0x18] sm:$0xf] %vm924, %v1973
        %1991 = vst.msk [vmem:[%s1983 + $0x1c] sm:$0xf] %vm924, %v1974
        %1992 = vrot.lane.b32.xlu0 %v697, 40
        %v1993 = vpop.permute.xlu0 %1992
        %1994 = vrot.lane.b32.xlu0 %v698, 40
        %v1995 = vpop.permute.xlu0 %1994
        %1996 = vrot.lane.b32.xlu0 %v699, 40
        %v1997 = vpop.permute.xlu0 %1996
        %1998 = vrot.lane.b32.xlu0 %v700, 40
        %v1999 = vpop.permute.xlu0 %1998
        %v2005 = vsel %vm803, %v1951, 0
        %v2008 = vsel %vm803, %v1952, 0
        %v2011 = vsel %vm803, %v1953, 0
        %v2014 = vsel %vm803, %v1954, 0
        %2016 = vmatprep.subr.bf16.mxu0 0
        %2017 = vmatpush1.bf16.msra.mxu0 0
        %2018 = vmatprep.subr.bf16.mxu0 0
        %2019 = vmatpush1.bf16.msra.mxu0 0
        %2020 = vmatprep.subr.bf16.mxu0 0
        %2021 = vmatpush1.bf16.msra.mxu0 0
        %2022 = vmatprep.subr.bf16.mxu0 0
        %2023 = vmatpush1.bf16.msra.mxu0 0
        %2024 = vmatprep.subr.bf16.mxu0 0
        %2025 = vmatpush1.bf16.msra.mxu0 %v1999
        %2026 = vmatprep.subr.bf16.mxu0 0
        %2027 = vmatpush1.bf16.msra.mxu0 %v1997
        %2028 = vmatprep.subr.bf16.mxu0 0
        %2029 = vmatpush1.bf16.msra.mxu0 %v1995
        %2030 = vmatprep.subr.bf16.mxu0 0
        %2031 = vmatpush1.bf16.msra.mxu0 %v1993
        %2032 = vmatprep.subr.bf16.mxu0 0
        %2033 = vmatpush2.bf16.msra.mxu0 0
        %2034 = vmatprep.subr.bf16.mxu0 0
        %2035 = vmatpush2.bf16.msra.mxu0 0
        %2036 = vmatprep.subr.bf16.mxu0 0
        %2037 = vmatpush2.bf16.msra.mxu0 0
        %2038 = vmatprep.subr.bf16.mxu0 0
        %2039 = vmatpush2.bf16.msra.mxu0 0
        %2040 = vmatprep.subr.bf16.mxu0 0
        %2041 = vmatpush2.bf16.msra.mxu0 0
        %2042 = vmatprep.subr.bf16.mxu0 0
        %2043 = vmatpush2.bf16.msra.mxu0 0
        %2044 = vmatprep.subr.bf16.mxu0 0
        %2045 = vmatpush2.bf16.msra.mxu0 0
        %2046 = vmatprep.subr.bf16.mxu0 0
        %2047 = vmatpush2.bf16.msra.mxu0 0
        %2048 = vmatprep.mubr.bf16.mxu0 0
        %2049 = vmatmul.mubr.bf16.gmra.mxu0 %v2005
        %v2050 = vpop.f32.mrf.mxu0
        %v2051 = vadd.f32 0.0, %v2050
        %v2052 = vpop.f32.mrf.mxu0
        %v2053 = vpop.f32.mrf.mxu0
        %v2054 = vadd.f32 0.0, %v2053
        %v2055 = vpop.f32.mrf.mxu0
        %2056 = vmatprep.mubr.bf16.mxu0 0
        %2057 = vmatmul.mubr.bf16.gmra.mxu0 %v2008
        %v2058 = vpop.f32.mrf.mxu0
        %v2059 = vadd.f32 0.0, %v2058
        %v2060 = vpop.f32.mrf.mxu0
        %v2061 = vpop.f32.mrf.mxu0
        %v2062 = vadd.f32 0.0, %v2061
        %v2063 = vpop.f32.mrf.mxu0
        %2064 = vmatprep.mubr.bf16.mxu0 0
        %2065 = vmatmul.mubr.bf16.gmra.mxu0 %v2011
        %v2066 = vpop.f32.mrf.mxu0
        %v2067 = vadd.f32 0.0, %v2066
        %v2068 = vpop.f32.mrf.mxu0
        %v2069 = vpop.f32.mrf.mxu0
        %v2070 = vadd.f32 0.0, %v2069
        %v2071 = vpop.f32.mrf.mxu0
        %2072 = vmatprep.mubr.bf16.mxu0 0
        %2073 = vmatmul.mubr.bf16.gmra.mxu0 %v2014
        %v2074 = vpop.f32.mrf.mxu0
        %v2075 = vadd.f32 0.0, %v2074
        %v2076 = vpop.f32.mrf.mxu0
        %v2077 = vpop.f32.mrf.mxu0
        %v2078 = vadd.f32 0.0, %v2077
        %v2079 = vpop.f32.mrf.mxu0
        %2080 = vdwg.mxu0
        %2089 = vrot.lane.b32.xlu0 %v2051, 24
        %v2090 = vpop.permute.xlu0 %2089
        %2091 = vrot.lane.b32.xlu0 %v2054, 24
        %v2092 = vpop.permute.xlu0 %2091
        %2093 = vrot.lane.b32.xlu0 %v2059, 24
        %v2094 = vpop.permute.xlu0 %2093
        %2095 = vrot.lane.b32.xlu0 %v2062, 24
        %v2096 = vpop.permute.xlu0 %2095
        %2097 = vrot.lane.b32.xlu0 %v2067, 24
        %v2098 = vpop.permute.xlu0 %2097
        %2099 = vrot.lane.b32.xlu0 %v2070, 24
        %v2100 = vpop.permute.xlu0 %2099
        %2101 = vrot.lane.b32.xlu0 %v2075, 24
        %v2102 = vpop.permute.xlu0 %2101
        %2103 = vrot.lane.b32.xlu0 %v2078, 24
        %v2104 = vpop.permute.xlu0 %2103
        %vm2113 = vcmask 261312
        %2114 = vst.msk [vmem:[#allocation2] sm:$0xff] %vm2113, %v2090
        %2115 = vst.msk [vmem:[#allocation2 + $0x8] sm:$0xff] %vm2113, %v2092
        %2116 = vst.msk [vmem:[#allocation2 + $0x10] sm:$0xff] %vm2113, %v2094
        %2117 = vst.msk [vmem:[#allocation2 + $0x18] sm:$0xff] %vm2113, %v2096
        %2118 = vst.msk [vmem:[#allocation2 + $0x20] sm:$0xff] %vm2113, %v2098
        %2119 = vst.msk [vmem:[#allocation2 + $0x28] sm:$0xff] %vm2113, %v2100
        %2120 = vst.msk [vmem:[#allocation2 + $0x30] sm:$0xff] %vm2113, %v2102
        %2121 = vst.msk [vmem:[#allocation2 + $0x38] sm:$0xff] %vm2113, %v2104
        %v2122 = vld [vmem:[#allocation2] sm:$0xff]
        %v2123 = vld [vmem:[#allocation2 + $0x8] sm:$0xff]
        %v2124 = vld [vmem:[#allocation2 + $0x10] sm:$0xff]
        %v2125 = vld [vmem:[#allocation2 + $0x18] sm:$0xff]
        %v2126 = vld [vmem:[#allocation2 + $0x20] sm:$0xff]
        %v2127 = vld [vmem:[#allocation2 + $0x28] sm:$0xff]
        %v2128 = vld [vmem:[#allocation2 + $0x30] sm:$0xff]
        %v2129 = vld [vmem:[#allocation2 + $0x38] sm:$0xff]
        %v2130 = vpack.c.bf16 %v2123, %v2122
        %v2131 = vpack.c.bf16 %v2125, %v2124
        %v2132 = vpack.c.bf16 %v2127, %v2126
        %v2133 = vpack.c.bf16 %v2129, %v2128
        %v2134 = vld [vmem:[%s4] sm:$0xf]
        %v2135 = vld [vmem:[%s4 + $0x4] sm:$0xf]
        %v2136 = vld [vmem:[%s4 + $0x8] sm:$0xf]
        %v2137 = vld [vmem:[%s4 + $0xc] sm:$0xf]
        %v2138 = vld [vmem:[%s5] sm:$0x1]
        %v2140 = vlaneseq
        %v2141 = vshrl.u32 %v2140, 7
        %v2142 = vsub.s32 0, %v2141
        %v2143 = vrot.slane %v2138, %v2142
        %v2149 = vunpack.c.l.b16 %v2134
        %v2150 = vunpack.c.l.b16 %v2135
        %v2151 = vunpack.c.l.b16 %v2136
        %v2152 = vunpack.c.l.b16 %v2137
        %v2153 = vpack.c.b16 %v2150, %v2149
        %v2154 = vpack.c.b16 %v2152, %v2151
        %v2158 = vsel %vm464, %v2130, 0
        %v2161 = vsel %vm464, %v2131, 0
        %v2164 = vsel %vm464, %v2132, 0
        %v2167 = vsel %vm464, %v2133, 0
        %2169 = vmatprep.subr.bf16.mxu0 0
        %2170 = vmatpush1.bf16.msra.mxu0 0
        %2171 = vmatprep.subr.bf16.mxu0 0
        %2172 = vmatpush1.bf16.msra.mxu0 0
        %2173 = vmatprep.subr.bf16.mxu0 0
        %2174 = vmatpush1.bf16.msra.mxu0 0
        %2175 = vmatprep.subr.bf16.mxu0 0
        %2176 = vmatpush1.bf16.msra.mxu0 0
        %2177 = vmatprep.subr.bf16.mxu0 0
        %2178 = vmatpush1.bf16.msra.mxu0 0
        %2179 = vmatprep.subr.bf16.mxu0 0
        %2180 = vmatpush1.bf16.msra.mxu0 0
        %2181 = vmatprep.subr.bf16.mxu0 0
        %2182 = vmatpush1.bf16.msra.mxu0 %v2154
        %2183 = vmatprep.subr.bf16.mxu0 0
        %2184 = vmatpush1.bf16.msra.mxu0 %v2153
        %2185 = vmatprep.subr.bf16.mxu0 0
        %2186 = vmatpush2.bf16.msra.mxu0 0
        %2187 = vmatprep.subr.bf16.mxu0 0
        %2188 = vmatpush2.bf16.msra.mxu0 0
        %2189 = vmatprep.subr.bf16.mxu0 0
        %2190 = vmatpush2.bf16.msra.mxu0 0
        %2191 = vmatprep.subr.bf16.mxu0 0
        %2192 = vmatpush2.bf16.msra.mxu0 0
        %2193 = vmatprep.subr.bf16.mxu0 0
        %2194 = vmatpush2.bf16.msra.mxu0 0
        %2195 = vmatprep.subr.bf16.mxu0 0
        %2196 = vmatpush2.bf16.msra.mxu0 0
        %2197 = vmatprep.subr.bf16.mxu0 0
        %2198 = vmatpush2.bf16.msra.mxu0 0
        %2199 = vmatprep.subr.bf16.mxu0 0
        %2200 = vmatpush2.bf16.msra.mxu0 0
        %2201 = vmatprep.mubr.bf16.mxu0 0
        %2202 = vmatmul.mubr.bf16.gmra.mxu0 %v2158
        %v2203 = vpop.f32.mrf.mxu0
        %v2204 = vadd.f32 %v2143, %v2203
        %v2205 = vpop.f32.mrf.mxu0
        %v2206 = vpop.f32.mrf.mxu0
        %v2207 = vadd.f32 %v2143, %v2206
        %v2208 = vpop.f32.mrf.mxu0
        %2209 = vmatprep.mubr.bf16.mxu0 0
        %2210 = vmatmul.mubr.bf16.gmra.mxu0 %v2161
        %v2211 = vpop.f32.mrf.mxu0
        %v2212 = vadd.f32 %v2143, %v2211
        %v2213 = vpop.f32.mrf.mxu0
        %v2214 = vpop.f32.mrf.mxu0
        %v2215 = vadd.f32 %v2143, %v2214
        %v2216 = vpop.f32.mrf.mxu0
        %2217 = vmatprep.mubr.bf16.mxu0 0
        %2218 = vmatmul.mubr.bf16.gmra.mxu0 %v2164
        %v2219 = vpop.f32.mrf.mxu0
        %v2220 = vadd.f32 %v2143, %v2219
        %v2221 = vpop.f32.mrf.mxu0
        %v2222 = vpop.f32.mrf.mxu0
        %v2223 = vadd.f32 %v2143, %v2222
        %v2224 = vpop.f32.mrf.mxu0
        %2225 = vmatprep.mubr.bf16.mxu0 0
        %2226 = vmatmul.mubr.bf16.gmra.mxu0 %v2167
        %v2227 = vpop.f32.mrf.mxu0
        %v2228 = vadd.f32 %v2143, %v2227
        %v2229 = vpop.f32.mrf.mxu0
        %v2230 = vpop.f32.mrf.mxu0
        %v2231 = vadd.f32 %v2143, %v2230
        %v2232 = vpop.f32.mrf.mxu0
        %2233 = vdwg.mxu0
        %v2234 = vadd.f32 %v456, %v2204
        %v2235 = vadd.f32 %v457, %v2207
        %v2236 = vadd.f32 %v458, %v2212
        %v2237 = vadd.f32 %v459, %v2215
        %v2238 = vadd.f32 %v460, %v2220
        %v2239 = vadd.f32 %v461, %v2223
        %v2240 = vadd.f32 %v462, %v2228
        %v2241 = vadd.f32 %v463, %v2231
        %v2242 = vsel %vm464, %v2234, 0.0
        %2243 = vadd.xlane.f32.xlu0 %v2242
        %v2244 = vpop.xlane.xlu0 %2243
        %v2245 = vsel %vm464, %v2235, 0.0
        %2246 = vadd.xlane.f32.xlu0 %v2245
        %v2247 = vpop.xlane.xlu0 %2246
        %v2248 = vsel %vm464, %v2236, 0.0
        %2249 = vadd.xlane.f32.xlu0 %v2248
        %v2250 = vpop.xlane.xlu0 %2249
        %v2251 = vsel %vm464, %v2237, 0.0
        %2252 = vadd.xlane.f32.xlu0 %v2251
        %v2253 = vpop.xlane.xlu0 %2252
        %v2254 = vsel %vm464, %v2238, 0.0
        %2255 = vadd.xlane.f32.xlu0 %v2254
        %v2256 = vpop.xlane.xlu0 %2255
        %v2257 = vsel %vm464, %v2239, 0.0
        %2258 = vadd.xlane.f32.xlu0 %v2257
        %v2259 = vpop.xlane.xlu0 %2258
        %v2260 = vsel %vm464, %v2240, 0.0
        %2261 = vadd.xlane.f32.xlu0 %v2260
        %v2262 = vpop.xlane.xlu0 %2261
        %v2263 = vsel %vm464, %v2241, 0.0
        %2264 = vadd.xlane.f32.xlu0 %v2263
        %v2265 = vpop.xlane.xlu0 %2264
        %v2266 = vmul.f32 %v2244, %v489
        %v2267 = vmul.f32 %v2247, %v489
        %v2268 = vmul.f32 %v2250, %v489
        %v2269 = vmul.f32 %v2253, %v489
        %v2270 = vmul.f32 %v2256, %v489
        %v2271 = vmul.f32 %v2259, %v489
        %v2272 = vmul.f32 %v2262, %v489
        %v2273 = vmul.f32 %v2265, %v489
        %v2274 = vsub.f32 %v2234, %v2266
        %v2275 = vsub.f32 %v2235, %v2267
        %v2276 = vsub.f32 %v2236, %v2268
        %v2277 = vsub.f32 %v2237, %v2269
        %v2278 = vsub.f32 %v2238, %v2270
        %v2279 = vsub.f32 %v2239, %v2271
        %v2280 = vsub.f32 %v2240, %v2272
        %v2281 = vsub.f32 %v2241, %v2273
        %v2282 = vmul.f32 %v2274, %v2274
        %v2283 = vmul.f32 %v2275, %v2275
        %v2284 = vmul.f32 %v2276, %v2276
        %v2285 = vmul.f32 %v2277, %v2277
        %v2286 = vmul.f32 %v2278, %v2278
        %v2287 = vmul.f32 %v2279, %v2279
        %v2288 = vmul.f32 %v2280, %v2280
        %v2289 = vmul.f32 %v2281, %v2281
        %v2290 = vsel %vm464, %v2282, 0.0
        %2291 = vadd.xlane.f32.xlu0 %v2290
        %v2292 = vpop.xlane.xlu0 %2291
        %v2293 = vsel %vm464, %v2283, 0.0
        %2294 = vadd.xlane.f32.xlu0 %v2293
        %v2295 = vpop.xlane.xlu0 %2294
        %v2296 = vsel %vm464, %v2284, 0.0
        %2297 = vadd.xlane.f32.xlu0 %v2296
        %v2298 = vpop.xlane.xlu0 %2297
        %v2299 = vsel %vm464, %v2285, 0.0
        %2300 = vadd.xlane.f32.xlu0 %v2299
        %v2301 = vpop.xlane.xlu0 %2300
        %v2302 = vsel %vm464, %v2286, 0.0
        %2303 = vadd.xlane.f32.xlu0 %v2302
        %v2304 = vpop.xlane.xlu0 %2303
        %v2305 = vsel %vm464, %v2287, 0.0
        %2306 = vadd.xlane.f32.xlu0 %v2305
        %v2307 = vpop.xlane.xlu0 %2306
        %v2308 = vsel %vm464, %v2288, 0.0
        %2309 = vadd.xlane.f32.xlu0 %v2308
        %v2310 = vpop.xlane.xlu0 %2309
        %v2311 = vsel %vm464, %v2289, 0.0
        %2312 = vadd.xlane.f32.xlu0 %v2311
        %v2313 = vpop.xlane.xlu0 %2312
        %v2314 = vmul.f32 %v2292, %v489
        %v2315 = vmul.f32 %v2295, %v489
        %v2316 = vmul.f32 %v2298, %v489
        %v2317 = vmul.f32 %v2301, %v489
        %v2318 = vmul.f32 %v2304, %v489
        %v2319 = vmul.f32 %v2307, %v489
        %v2320 = vmul.f32 %v2310, %v489
        %v2321 = vmul.f32 %v2313, %v489
        %v2322 = vadd.f32 %v2314, 1e-05
        %v2323 = vadd.f32 %v2315, 1e-05
        %v2324 = vadd.f32 %v2316, 1e-05
        %v2325 = vadd.f32 %v2317, 1e-05
        %v2326 = vadd.f32 %v2318, 1e-05
        %v2327 = vadd.f32 %v2319, 1e-05
        %v2328 = vadd.f32 %v2320, 1e-05
        %v2329 = vadd.f32 %v2321, 1e-05
        %v2330 = vrsqrt.pop %v2322
        %v2331 = vrsqrt.pop %v2323
        %v2332 = vrsqrt.pop %v2324
        %v2333 = vrsqrt.pop %v2325
        %v2334 = vrsqrt.pop %v2326
        %v2335 = vrsqrt.pop %v2327
        %v2336 = vrsqrt.pop %v2328
        %v2337 = vrsqrt.pop %v2329
        %v2338 = vmul.f32 %v2274, %v2330
        %v2339 = vmul.f32 %v2275, %v2331
        %v2340 = vmul.f32 %v2276, %v2332
        %v2341 = vmul.f32 %v2277, %v2333
        %v2342 = vmul.f32 %v2278, %v2334
        %v2343 = vmul.f32 %v2279, %v2335
        %v2344 = vmul.f32 %v2280, %v2336
        %v2345 = vmul.f32 %v2281, %v2337
        %v2346 = vld [vmem:[%s6] sm:$0x1]
        %v2348 = vlaneseq
        %v2349 = vshrl.u32 %v2348, 7
        %v2350 = vsub.s32 0, %v2349
        %v2351 = vrot.slane %v2346, %v2350
        %v2353 = vmul.f32 %v2338, %v2351
        %v2354 = vmul.f32 %v2339, %v2351
        %v2355 = vmul.f32 %v2340, %v2351
        %v2356 = vmul.f32 %v2341, %v2351
        %v2357 = vmul.f32 %v2342, %v2351
        %v2358 = vmul.f32 %v2343, %v2351
        %v2359 = vmul.f32 %v2344, %v2351
        %v2360 = vmul.f32 %v2345, %v2351
        %v2361 = vld [vmem:[%s7] sm:$0x1]
        %v2363 = vlaneseq
        %v2364 = vshrl.u32 %v2363, 7
        %v2365 = vsub.s32 0, %v2364
        %v2366 = vrot.slane %v2361, %v2365
        %v2368 = vadd.f32 %v2353, %v2366
        %v2369 = vadd.f32 %v2354, %v2366
        %v2370 = vadd.f32 %v2355, %v2366
        %v2371 = vadd.f32 %v2356, %v2366
        %v2372 = vadd.f32 %v2357, %v2366
        %v2373 = vadd.f32 %v2358, %v2366
        %v2374 = vadd.f32 %v2359, %v2366
        %v2375 = vadd.f32 %v2360, %v2366
        %v2376 = vpack.c.bf16 %v2369, %v2368
        %v2377 = vpack.c.bf16 %v2371, %v2370
        %v2378 = vpack.c.bf16 %v2373, %v2372
        %v2379 = vpack.c.bf16 %v2375, %v2374
        %v2380 = vld [vmem:[%s8] sm:$0xf]
        %v2381 = vld [vmem:[%s8 + $0x4] sm:$0xf]
        %v2382 = vld [vmem:[%s8 + $0x8] sm:$0xf]
        %v2383 = vld [vmem:[%s8 + $0xc] sm:$0xf]
        %v2384 = vld [vmem:[%s9] sm:$0x1]
        %v2386 = vlaneseq
        %v2387 = vshrl.u32 %v2386, 7
        %v2388 = vsub.s32 0, %v2387
        %v2389 = vrot.slane %v2384, %v2388
        %v2395 = vunpack.c.l.b16 %v2380
        %v2396 = vunpack.c.l.b16 %v2381
        %v2397 = vunpack.c.l.b16 %v2382
        %v2398 = vunpack.c.l.b16 %v2383
        %v2399 = vpack.c.b16 %v2396, %v2395
        %v2400 = vpack.c.b16 %v2398, %v2397
        %v2404 = vsel %vm464, %v2376, 0
        %v2407 = vsel %vm464, %v2377, 0
        %v2410 = vsel %vm464, %v2378, 0
        %v2413 = vsel %vm464, %v2379, 0
        %2415 = vmatprep.subr.bf16.mxu0 0
        %2416 = vmatpush1.bf16.msra.mxu0 0
        %2417 = vmatprep.subr.bf16.mxu0 0
        %2418 = vmatpush1.bf16.msra.mxu0 0
        %2419 = vmatprep.subr.bf16.mxu0 0
        %2420 = vmatpush1.bf16.msra.mxu0 0
        %2421 = vmatprep.subr.bf16.mxu0 0
        %2422 = vmatpush1.bf16.msra.mxu0 0
        %2423 = vmatprep.subr.bf16.mxu0 0
        %2424 = vmatpush1.bf16.msra.mxu0 0
        %2425 = vmatprep.subr.bf16.mxu0 0
        %2426 = vmatpush1.bf16.msra.mxu0 0
        %2427 = vmatprep.subr.bf16.mxu0 0
        %2428 = vmatpush1.bf16.msra.mxu0 %v2400
        %2429 = vmatprep.subr.bf16.mxu0 0
        %2430 = vmatpush1.bf16.msra.mxu0 %v2399
        %2431 = vmatprep.subr.bf16.mxu0 0
        %2432 = vmatpush2.bf16.msra.mxu0 0
        %2433 = vmatprep.subr.bf16.mxu0 0
        %2434 = vmatpush2.bf16.msra.mxu0 0
        %2435 = vmatprep.subr.bf16.mxu0 0
        %2436 = vmatpush2.bf16.msra.mxu0 0
        %2437 = vmatprep.subr.bf16.mxu0 0
        %2438 = vmatpush2.bf16.msra.mxu0 0
        %2439 = vmatprep.subr.bf16.mxu0 0
        %2440 = vmatpush2.bf16.msra.mxu0 0
        %2441 = vmatprep.subr.bf16.mxu0 0
        %2442 = vmatpush2.bf16.msra.mxu0 0
        %2443 = vmatprep.subr.bf16.mxu0 0
        %2444 = vmatpush2.bf16.msra.mxu0 0
        %2445 = vmatprep.subr.bf16.mxu0 0
        %2446 = vmatpush2.bf16.msra.mxu0 0
        %2447 = vmatprep.mubr.bf16.mxu0 0
        %2448 = vmatmul.mubr.bf16.gmra.mxu0 %v2404
        %v2449 = vpop.f32.mrf.mxu0
        %v2450 = vadd.f32 %v2389, %v2449
        %v2451 = vpop.f32.mrf.mxu0
        %v2452 = vpop.f32.mrf.mxu0
        %v2453 = vadd.f32 %v2389, %v2452
        %v2454 = vpop.f32.mrf.mxu0
        %2455 = vmatprep.mubr.bf16.mxu0 0
        %2456 = vmatmul.mubr.bf16.gmra.mxu0 %v2407
        %v2457 = vpop.f32.mrf.mxu0
        %v2458 = vadd.f32 %v2389, %v2457
        %v2459 = vpop.f32.mrf.mxu0
        %v2460 = vpop.f32.mrf.mxu0
        %v2461 = vadd.f32 %v2389, %v2460
        %v2462 = vpop.f32.mrf.mxu0
        %2463 = vmatprep.mubr.bf16.mxu0 0
        %2464 = vmatmul.mubr.bf16.gmra.mxu0 %v2410
        %v2465 = vpop.f32.mrf.mxu0
        %v2466 = vadd.f32 %v2389, %v2465
        %v2467 = vpop.f32.mrf.mxu0
        %v2468 = vpop.f32.mrf.mxu0
        %v2469 = vadd.f32 %v2389, %v2468
        %v2470 = vpop.f32.mrf.mxu0
        %2471 = vmatprep.mubr.bf16.mxu0 0
        %2472 = vmatmul.mubr.bf16.gmra.mxu0 %v2413
        %v2473 = vpop.f32.mrf.mxu0
        %v2474 = vadd.f32 %v2389, %v2473
        %v2475 = vpop.f32.mrf.mxu0
        %v2476 = vpop.f32.mrf.mxu0
        %v2477 = vadd.f32 %v2389, %v2476
        %v2478 = vpop.f32.mrf.mxu0
        %2479 = vdwg.mxu0
        %v2480 = vmul.f32 %v2450, 0.5
        %v2481 = vmul.f32 %v2453, 0.5
        %v2482 = vmul.f32 %v2458, 0.5
        %v2483 = vmul.f32 %v2461, 0.5
        %v2484 = vmul.f32 %v2466, 0.5
        %v2485 = vmul.f32 %v2469, 0.5
        %v2486 = vmul.f32 %v2474, 0.5
        %v2487 = vmul.f32 %v2477, 0.5
        %v2488 = vmul.f32 %v2450, 0.70710677
        %v2489 = vmul.f32 %v2453, 0.70710677
        %v2490 = vmul.f32 %v2458, 0.70710677
        %v2491 = vmul.f32 %v2461, 0.70710677
        %v2492 = vmul.f32 %v2466, 0.70710677
        %v2493 = vmul.f32 %v2469, 0.70710677
        %v2494 = vmul.f32 %v2474, 0.70710677
        %v2495 = vmul.f32 %v2477, 0.70710677
        %v2496 = vand.u32 2147483647, %v2488
        %v2497 = vand.u32 2147483647, %v2489
        %v2498 = vand.u32 2147483647, %v2490
        %v2499 = vand.u32 2147483647, %v2491
        %v2500 = vand.u32 2147483647, %v2492
        %v2501 = vand.u32 2147483647, %v2493
        %v2502 = vand.u32 2147483647, %v2494
        %v2503 = vand.u32 2147483647, %v2495
        %v2504 = vmul.f32 %v2496, 0.3275911
        %v2505 = vmul.f32 %v2497, 0.3275911
        %v2506 = vmul.f32 %v2498, 0.3275911
        %v2507 = vmul.f32 %v2499, 0.3275911
        %v2508 = vmul.f32 %v2500, 0.3275911
        %v2509 = vmul.f32 %v2501, 0.3275911
        %v2510 = vmul.f32 %v2502, 0.3275911
        %v2511 = vmul.f32 %v2503, 0.3275911
        %v2512 = vadd.f32 %v2504, 1.0
        %v2513 = vadd.f32 %v2505, 1.0
        %v2514 = vadd.f32 %v2506, 1.0
        %v2515 = vadd.f32 %v2507, 1.0
        %v2516 = vadd.f32 %v2508, 1.0
        %v2517 = vadd.f32 %v2509, 1.0
        %v2518 = vadd.f32 %v2510, 1.0
        %v2519 = vadd.f32 %v2511, 1.0
        %v2520 = vrcp.pop %v2512
        %v2521 = vmul.f32 1.0, %v2520
        %v2522 = vrcp.pop %v2513
        %v2523 = vmul.f32 1.0, %v2522
        %v2524 = vrcp.pop %v2514
        %v2525 = vmul.f32 1.0, %v2524
        %v2526 = vrcp.pop %v2515
        %v2527 = vmul.f32 1.0, %v2526
        %v2528 = vrcp.pop %v2516
        %v2529 = vmul.f32 1.0, %v2528
        %v2530 = vrcp.pop %v2517
        %v2531 = vmul.f32 1.0, %v2530
        %v2532 = vrcp.pop %v2518
        %v2533 = vmul.f32 1.0, %v2532
        %v2534 = vrcp.pop %v2519
        %v2535 = vmul.f32 1.0, %v2534
        %v2536 = vmul.f32 %v2521, 1.0614054
        %v2537 = vmul.f32 %v2523, 1.0614054
        %v2538 = vmul.f32 %v2525, 1.0614054
        %v2539 = vmul.f32 %v2527, 1.0614054
        %v2540 = vmul.f32 %v2529, 1.0614054
        %v2541 = vmul.f32 %v2531, 1.0614054
        %v2542 = vmul.f32 %v2533, 1.0614054
        %v2543 = vmul.f32 %v2535, 1.0614054
        %v2544 = vadd.f32 %v2536, -1.4531521
        %v2545 = vadd.f32 %v2537, -1.4531521
        %v2546 = vadd.f32 %v2538, -1.4531521
        %v2547 = vadd.f32 %v2539, -1.4531521
        %v2548 = vadd.f32 %v2540, -1.4531521
        %v2549 = vadd.f32 %v2541, -1.4531521
        %v2550 = vadd.f32 %v2542, -1.4531521
        %v2551 = vadd.f32 %v2543, -1.4531521
        %v2552 = vmul.f32 %v2544, %v2521
        %v2553 = vmul.f32 %v2545, %v2523
        %v2554 = vmul.f32 %v2546, %v2525
        %v2555 = vmul.f32 %v2547, %v2527
        %v2556 = vmul.f32 %v2548, %v2529
        %v2557 = vmul.f32 %v2549, %v2531
        %v2558 = vmul.f32 %v2550, %v2533
        %v2559 = vmul.f32 %v2551, %v2535
        %v2560 = vadd.f32 %v2552, 1.4214138
        %v2561 = vadd.f32 %v2553, 1.4214138
        %v2562 = vadd.f32 %v2554, 1.4214138
        %v2563 = vadd.f32 %v2555, 1.4214138
        %v2564 = vadd.f32 %v2556, 1.4214138
        %v2565 = vadd.f32 %v2557, 1.4214138
        %v2566 = vadd.f32 %v2558, 1.4214138
        %v2567 = vadd.f32 %v2559, 1.4214138
        %v2568 = vmul.f32 %v2560, %v2521
        %v2569 = vmul.f32 %v2561, %v2523
        %v2570 = vmul.f32 %v2562, %v2525
        %v2571 = vmul.f32 %v2563, %v2527
        %v2572 = vmul.f32 %v2564, %v2529
        %v2573 = vmul.f32 %v2565, %v2531
        %v2574 = vmul.f32 %v2566, %v2533
        %v2575 = vmul.f32 %v2567, %v2535
        %v2576 = vadd.f32 %v2568, -0.28449672
        %v2577 = vadd.f32 %v2569, -0.28449672
        %v2578 = vadd.f32 %v2570, -0.28449672
        %v2579 = vadd.f32 %v2571, -0.28449672
        %v2580 = vadd.f32 %v2572, -0.28449672
        %v2581 = vadd.f32 %v2573, -0.28449672
        %v2582 = vadd.f32 %v2574, -0.28449672
        %v2583 = vadd.f32 %v2575, -0.28449672
        %v2584 = vmul.f32 %v2576, %v2521
        %v2585 = vmul.f32 %v2577, %v2523
        %v2586 = vmul.f32 %v2578, %v2525
        %v2587 = vmul.f32 %v2579, %v2527
        %v2588 = vmul.f32 %v2580, %v2529
        %v2589 = vmul.f32 %v2581, %v2531
        %v2590 = vmul.f32 %v2582, %v2533
        %v2591 = vmul.f32 %v2583, %v2535
        %v2592 = vadd.f32 %v2584, 0.2548296
        %v2593 = vadd.f32 %v2585, 0.2548296
        %v2594 = vadd.f32 %v2586, 0.2548296
        %v2595 = vadd.f32 %v2587, 0.2548296
        %v2596 = vadd.f32 %v2588, 0.2548296
        %v2597 = vadd.f32 %v2589, 0.2548296
        %v2598 = vadd.f32 %v2590, 0.2548296
        %v2599 = vadd.f32 %v2591, 0.2548296
        %v2600 = vmul.f32 %v2592, %v2521
        %v2601 = vmul.f32 %v2593, %v2523
        %v2602 = vmul.f32 %v2594, %v2525
        %v2603 = vmul.f32 %v2595, %v2527
        %v2604 = vmul.f32 %v2596, %v2529
        %v2605 = vmul.f32 %v2597, %v2531
        %v2606 = vmul.f32 %v2598, %v2533
        %v2607 = vmul.f32 %v2599, %v2535
        %v2608 = vsub.f32 0.0, %v2496
        %v2609 = vsub.f32 0.0, %v2497
        %v2610 = vsub.f32 0.0, %v2498
        %v2611 = vsub.f32 0.0, %v2499
        %v2612 = vsub.f32 0.0, %v2500
        %v2613 = vsub.f32 0.0, %v2501
        %v2614 = vsub.f32 0.0, %v2502
        %v2615 = vsub.f32 0.0, %v2503
        %v2616 = vmul.f32 %v2608, %v2496
        %v2617 = vmul.f32 %v2609, %v2497
        %v2618 = vmul.f32 %v2610, %v2498
        %v2619 = vmul.f32 %v2611, %v2499
        %v2620 = vmul.f32 %v2612, %v2500
        %v2621 = vmul.f32 %v2613, %v2501
        %v2622 = vmul.f32 %v2614, %v2502
        %v2623 = vmul.f32 %v2615, %v2503
        %v2624 = vmul.f32 %v2616, 1.442695
        %v2625 = vpow.pop %v2624
        %v2626 = vmul.f32 %v2617, 1.442695
        %v2627 = vpow.pop %v2626
        %v2628 = vmul.f32 %v2618, 1.442695
        %v2629 = vpow.pop %v2628
        %v2630 = vmul.f32 %v2619, 1.442695
        %v2631 = vpow.pop %v2630
        %v2632 = vmul.f32 %v2620, 1.442695
        %v2633 = vpow.pop %v2632
        %v2634 = vmul.f32 %v2621, 1.442695
        %v2635 = vpow.pop %v2634
        %v2636 = vmul.f32 %v2622, 1.442695
        %v2637 = vpow.pop %v2636
        %v2638 = vmul.f32 %v2623, 1.442695
        %v2639 = vpow.pop %v2638
        %v2640 = vmul.f32 %v2600, %v2625
        %v2641 = vmul.f32 %v2601, %v2627
        %v2642 = vmul.f32 %v2602, %v2629
        %v2643 = vmul.f32 %v2603, %v2631
        %v2644 = vmul.f32 %v2604, %v2633
        %v2645 = vmul.f32 %v2605, %v2635
        %v2646 = vmul.f32 %v2606, %v2637
        %v2647 = vmul.f32 %v2607, %v2639
        %v2648 = vsub.f32 1.0, %v2640
        %v2649 = vsub.f32 1.0, %v2641
        %v2650 = vsub.f32 1.0, %v2642
        %v2651 = vsub.f32 1.0, %v2643
        %v2652 = vsub.f32 1.0, %v2644
        %v2653 = vsub.f32 1.0, %v2645
        %v2654 = vsub.f32 1.0, %v2646
        %v2655 = vsub.f32 1.0, %v2647
        %vm2656 = vcmp.lt.f32.partialorder %v2488, 0.0
        %vm2657 = vcmp.lt.f32.partialorder %v2489, 0.0
        %vm2658 = vcmp.lt.f32.partialorder %v2490, 0.0
        %vm2659 = vcmp.lt.f32.partialorder %v2491, 0.0
        %vm2660 = vcmp.lt.f32.partialorder %v2492, 0.0
        %vm2661 = vcmp.lt.f32.partialorder %v2493, 0.0
        %vm2662 = vcmp.lt.f32.partialorder %v2494, 0.0
        %vm2663 = vcmp.lt.f32.partialorder %v2495, 0.0
        %v2664 = vsub.f32 0.0, %v2648
        %v2665 = vsub.f32 0.0, %v2649
        %v2666 = vsub.f32 0.0, %v2650
        %v2667 = vsub.f32 0.0, %v2651
        %v2668 = vsub.f32 0.0, %v2652
        %v2669 = vsub.f32 0.0, %v2653
        %v2670 = vsub.f32 0.0, %v2654
        %v2671 = vsub.f32 0.0, %v2655
        %v2672 = vsel %vm2656, %v2664, %v2648
        %v2673 = vsel %vm2657, %v2665, %v2649
        %v2674 = vsel %vm2658, %v2666, %v2650
        %v2675 = vsel %vm2659, %v2667, %v2651
        %v2676 = vsel %vm2660, %v2668, %v2652
        %v2677 = vsel %vm2661, %v2669, %v2653
        %v2678 = vsel %vm2662, %v2670, %v2654
        %v2679 = vsel %vm2663, %v2671, %v2655
        %v2680 = vadd.f32 %v2672, 1.0
        %v2681 = vadd.f32 %v2673, 1.0
        %v2682 = vadd.f32 %v2674, 1.0
        %v2683 = vadd.f32 %v2675, 1.0
        %v2684 = vadd.f32 %v2676, 1.0
        %v2685 = vadd.f32 %v2677, 1.0
        %v2686 = vadd.f32 %v2678, 1.0
        %v2687 = vadd.f32 %v2679, 1.0
        %v2688 = vmul.f32 %v2480, %v2680
        %v2689 = vmul.f32 %v2481, %v2681
        %v2690 = vmul.f32 %v2482, %v2682
        %v2691 = vmul.f32 %v2483, %v2683
        %v2692 = vmul.f32 %v2484, %v2684
        %v2693 = vmul.f32 %v2485, %v2685
        %v2694 = vmul.f32 %v2486, %v2686
        %v2695 = vmul.f32 %v2487, %v2687
        %v2696 = vpack.c.bf16 %v2689, %v2688
        %v2697 = vpack.c.bf16 %v2691, %v2690
        %v2698 = vpack.c.bf16 %v2693, %v2692
        %v2699 = vpack.c.bf16 %v2695, %v2694
        %v2700 = vld [vmem:[%s10] sm:$0xf]
        %v2701 = vld [vmem:[%s10 + $0x4] sm:$0xf]
        %v2702 = vld [vmem:[%s10 + $0x8] sm:$0xf]
        %v2703 = vld [vmem:[%s10 + $0xc] sm:$0xf]
        %v2704 = vld [vmem:[%s10 + $0x10] sm:$0xf]
        %v2705 = vld [vmem:[%s10 + $0x14] sm:$0xf]
        %v2706 = vld [vmem:[%s10 + $0x18] sm:$0xf]
        %v2707 = vld [vmem:[%s10 + $0x1c] sm:$0xf]
        %v2708 = vld [vmem:[%s10 + $0x20] sm:$0xf]
        %v2709 = vld [vmem:[%s10 + $0x24] sm:$0xf]
        %v2710 = vld [vmem:[%s10 + $0x28] sm:$0xf]
        %v2711 = vld [vmem:[%s10 + $0x2c] sm:$0xf]
        %v2712 = vld [vmem:[%s10 + $0x30] sm:$0xf]
        %v2713 = vld [vmem:[%s10 + $0x34] sm:$0xf]
        %v2714 = vld [vmem:[%s10 + $0x38] sm:$0xf]
        %v2715 = vld [vmem:[%s10 + $0x3c] sm:$0xf]
        %v2716 = vld [vmem:[%s11] sm:$0x1]
        %v2718 = vlaneseq
        %v2719 = vshrl.u32 %v2718, 7
        %v2720 = vsub.s32 0, %v2719
        %v2721 = vrot.slane %v2716, %v2720
        %v2739 = vunpack.c.l.b16 %v2700
        %v2740 = vunpack.c.l.b16 %v2701
        %v2741 = vunpack.c.l.b16 %v2702
        %v2742 = vunpack.c.l.b16 %v2703
        %v2743 = vunpack.c.l.b16 %v2704
        %v2744 = vunpack.c.l.b16 %v2705
        %v2745 = vunpack.c.l.b16 %v2706
        %v2746 = vunpack.c.l.b16 %v2707
        %v2747 = vunpack.c.l.b16 %v2708
        %v2748 = vunpack.c.l.b16 %v2709
        %v2749 = vunpack.c.l.b16 %v2710
        %v2750 = vunpack.c.l.b16 %v2711
        %v2751 = vunpack.c.l.b16 %v2712
        %v2752 = vunpack.c.l.b16 %v2713
        %v2753 = vunpack.c.l.b16 %v2714
        %v2754 = vunpack.c.l.b16 %v2715
        %v2755 = vpack.c.b16 %v2740, %v2739
        %v2756 = vpack.c.b16 %v2742, %v2741
        %v2757 = vpack.c.b16 %v2744, %v2743
        %v2758 = vpack.c.b16 %v2746, %v2745
        %v2759 = vpack.c.b16 %v2748, %v2747
        %v2760 = vpack.c.b16 %v2750, %v2749
        %v2761 = vpack.c.b16 %v2752, %v2751
        %v2762 = vpack.c.b16 %v2754, %v2753
        %2771 = vmatprep.subr.bf16.mxu0 0
        %2772 = vmatpush1.bf16.msra.mxu0 %v2762
        %2773 = vmatprep.subr.bf16.mxu0 0
        %2774 = vmatpush1.bf16.msra.mxu0 %v2761
        %2775 = vmatprep.subr.bf16.mxu0 0
        %2776 = vmatpush1.bf16.msra.mxu0 %v2760
        %2777 = vmatprep.subr.bf16.mxu0 0
        %2778 = vmatpush1.bf16.msra.mxu0 %v2759
        %2779 = vmatprep.subr.bf16.mxu0 0
        %2780 = vmatpush1.bf16.msra.mxu0 %v2758
        %2781 = vmatprep.subr.bf16.mxu0 0
        %2782 = vmatpush1.bf16.msra.mxu0 %v2757
        %2783 = vmatprep.subr.bf16.mxu0 0
        %2784 = vmatpush1.bf16.msra.mxu0 %v2756
        %2785 = vmatprep.subr.bf16.mxu0 0
        %2786 = vmatpush1.bf16.msra.mxu0 %v2755
        %2787 = vmatprep.subr.bf16.mxu0 0
        %2788 = vmatpush2.bf16.msra.mxu0 0
        %2789 = vmatprep.subr.bf16.mxu0 0
        %2790 = vmatpush2.bf16.msra.mxu0 0
        %2791 = vmatprep.subr.bf16.mxu0 0
        %2792 = vmatpush2.bf16.msra.mxu0 0
        %2793 = vmatprep.subr.bf16.mxu0 0
        %2794 = vmatpush2.bf16.msra.mxu0 0
        %2795 = vmatprep.subr.bf16.mxu0 0
        %2796 = vmatpush2.bf16.msra.mxu0 0
        %2797 = vmatprep.subr.bf16.mxu0 0
        %2798 = vmatpush2.bf16.msra.mxu0 0
        %2799 = vmatprep.subr.bf16.mxu0 0
        %2800 = vmatpush2.bf16.msra.mxu0 0
        %2801 = vmatprep.subr.bf16.mxu0 0
        %2802 = vmatpush2.bf16.msra.mxu0 0
        %2803 = vmatprep.mubr.bf16.mxu0 0
        %2804 = vmatmul.mubr.bf16.gmra.mxu0 %v2696
        %v2805 = vpop.f32.mrf.mxu0
        %v2806 = vadd.f32 %v2721, %v2805
        %v2807 = vpop.f32.mrf.mxu0
        %v2808 = vpop.f32.mrf.mxu0
        %v2809 = vadd.f32 %v2721, %v2808
        %v2810 = vpop.f32.mrf.mxu0
        %2811 = vmatprep.mubr.bf16.mxu0 0
        %2812 = vmatmul.mubr.bf16.gmra.mxu0 %v2697
        %v2813 = vpop.f32.mrf.mxu0
        %v2814 = vadd.f32 %v2721, %v2813
        %v2815 = vpop.f32.mrf.mxu0
        %v2816 = vpop.f32.mrf.mxu0
        %v2817 = vadd.f32 %v2721, %v2816
        %v2818 = vpop.f32.mrf.mxu0
        %2819 = vmatprep.mubr.bf16.mxu0 0
        %2820 = vmatmul.mubr.bf16.gmra.mxu0 %v2698
        %v2821 = vpop.f32.mrf.mxu0
        %v2822 = vadd.f32 %v2721, %v2821
        %v2823 = vpop.f32.mrf.mxu0
        %v2824 = vpop.f32.mrf.mxu0
        %v2825 = vadd.f32 %v2721, %v2824
        %v2826 = vpop.f32.mrf.mxu0
        %2827 = vmatprep.mubr.bf16.mxu0 0
        %2828 = vmatmul.mubr.bf16.gmra.mxu0 %v2699
        %v2829 = vpop.f32.mrf.mxu0
        %v2830 = vadd.f32 %v2721, %v2829
        %v2831 = vpop.f32.mrf.mxu0
        %v2832 = vpop.f32.mrf.mxu0
        %v2833 = vadd.f32 %v2721, %v2832
        %v2834 = vpop.f32.mrf.mxu0
        %2835 = vdwg.mxu0
        %v2836 = vadd.f32 %v2234, %v2806
        %v2837 = vadd.f32 %v2235, %v2809
        %v2838 = vadd.f32 %v2236, %v2814
        %v2839 = vadd.f32 %v2237, %v2817
        %v2840 = vadd.f32 %v2238, %v2822
        %v2841 = vadd.f32 %v2239, %v2825
        %v2842 = vadd.f32 %v2240, %v2830
        %v2843 = vadd.f32 %v2241, %v2833
        %2844 = vst.msk [vmem:[%s453] sm:$0xff] %vm464, %v2836
        %2845 = vst.msk [vmem:[%s453 + $0x8] sm:$0xff] %vm464, %v2837
        %2846 = vst.msk [vmem:[%s453 + $0x10] sm:$0xff] %vm464, %v2838
        %2847 = vst.msk [vmem:[%s453 + $0x18] sm:$0xff] %vm464, %v2839
        %2848 = vst.msk [vmem:[%s453 + $0x20] sm:$0xff] %vm464, %v2840
        %2849 = vst.msk [vmem:[%s453 + $0x28] sm:$0xff] %vm464, %v2841
        %2850 = vst.msk [vmem:[%s453 + $0x30] sm:$0xff] %vm464, %v2842
        %2851 = vst.msk [vmem:[%s453 + $0x38] sm:$0xff] %vm464, %v2843
        %s2852 = smul.u32 8, %s28
        %p2853 = scmp.lt.s32.totalorder %s2852, 15
        %s2854 = scalar_select %p2853, %s2852, 15
        %s2855 = smul.addr %s2854, 8
        %s2856 = scalar_lea.vmem %s12, %s2855
        %s2857 = sand.u32 %s319, 1
        %s2858 = scalar_lea.sflag [#allocation4], %s2857
        %s2859 = sand.u32 %s319, 1
        %s2860 = smul.addr %s2859, 128
        %s2861 = scalar_lea.vmem [#allocation3], %s2860
        // Predicated region
        $region69: #{tpu_custom_call.1} parent=67 // pred_check
          %p2862 = pneg %p303
        $region70: #{tpu_custom_call.1} parent=67 // pred_check_branch
          %2864 = sbr.rel (%p2862) target = $region72
        $region71: #{tpu_custom_call.1} parent=67 // pred_region
          %s2865 = smul.u32 8, %s28
        $region72: #{tpu_custom_call.1} parent=67 // pred_fallthru
          _
        // Predicated region
        $region73: #{tpu_custom_call.1} parent=67 // pred_check
          %p2866 = pneg %p329
        $region74: #{tpu_custom_call.1} parent=67 // pred_check_branch
          %2868 = sbr.rel (%p2866) target = $region76
        $region75: #{tpu_custom_call.1} parent=67 // pred_region
          %s2870 = ssub.s32 2048, 2048
          %2871 = vsyncadd %s2858, %s2870
          %s2872 = smul.addr %s28, 32
          %s2873 = smul.addr %s2872, 64
          %s2874 = scalar_lea.hbm %s13, %s2873
          %s2875 = sshll.u32 %s2861, 4
          %s2876 = int_to_ptr.vmem [resolvable:$true] %s2875
          %2881 = dma.vmem_to_hbm [thread:$0]  %s2876, 2048, %s2874, %s2858, 64, 64, 4
        $region76: #{tpu_custom_call.1} parent=67 // pred_fallthru
          _
      $region68: #{tpu_custom_call.1} parent=5 // pred_fallthru
        _
      %p2882 = scmp.le.s32.totalorder 2, %s23
      // Predicated region
      $region77: #{tpu_custom_call.1} parent=5 // pred_check
        %p2883 = pneg %p2882
      $region78: #{tpu_custom_call.1} parent=5 // pred_check_branch
        %2885 = sbr.rel (%p2883) target = $region80
      $region79: #{tpu_custom_call.1} parent=5 // pred_region
        %s2886 = ssub.s32 %s23, 2
        // Predicated region
        $region81: #{tpu_custom_call.1} parent=79 // pred_check
          %p2887 = pneg %p309
        $region82: #{tpu_custom_call.1} parent=79 // pred_check_branch
          %2889 = sbr.rel (%p2887) target = $region84
        $region83: #{tpu_custom_call.1} parent=79 // pred_region
          %s2890 = smul.u32 8, %s29
          %p2891 = scmp.lt.s32.totalorder %s2890, 15
          %s2892 = scalar_select %p2891, %s2890, 15
          %s2893 = smul.addr %s2892, 8
          %s2894 = scalar_lea.vmem %s12, %s2893
        $region84: #{tpu_custom_call.1} parent=79 // pred_fallthru
          _
        // Predicated region
        $region85: #{tpu_custom_call.1} parent=79 // pred_check
          %p2895 = pneg %p335
        $region86: #{tpu_custom_call.1} parent=79 // pred_check_branch
          %2897 = sbr.rel (%p2895) target = $region88
        $region87: #{tpu_custom_call.1} parent=79 // pred_region
          %s2898 = sand.u32 %s320, 1
          %s2899 = scalar_lea.sflag [#allocation4], %s2898
          %s2900 = sand.u32 %s320, 1
          %s2901 = smul.addr %s2900, 128
          %s2902 = scalar_lea.vmem [#allocation3], %s2901
          %2903 = dma.done %s2899, 2048
        $region88: #{tpu_custom_call.1} parent=79 // pred_fallthru
          _
      $region80: #{tpu_custom_call.1} parent=5 // pred_fallthru
        _
    $region6: #{tpu_custom_call.1} parent=1 // loop_footer
      %s27 = sadd.s32 1, %s23
    $region7: #{tpu_custom_call.1} parent=1 // loop_footer_branch
      %22 = sbr.rel target = $region3
    $region8: #{tpu_custom_call.1} parent=1 // loop_exit
      _
    %2904 = vsyncpa [#allocation4], 1
    %s2905 = scalar_lea.sflag [#allocation4], 1
    %2906 = vsyncpa %s2905, 1

</llo_original>
